<compile_context>
chip_gen: v7x
topology: tpu7x:2x2x1
jax: 0.10.0
libtpu: 0.0.40
codegen_flags: <defaults>
</compile_context>

<pallas_src>
import functools

import jax
import jax.numpy as jnp
import numpy as np
from jax import lax
from jax.experimental import pallas as pl
from jax.experimental.pallas import tpu as pltpu

EPS = 1e-5  # PyTorch GroupNorm default eps


# ----------------------------------------------------------------------------
# Fused kernel (one grid step = one image)
# ----------------------------------------------------------------------------
def _make_kernel(H, W, Cin, Cout, mm_dtype, has_proj):
    HW = H * W

    def kernel(x_ref, p1_ref, g1_ref, be1_ref, w1_ref, b1_ref,
               p2_ref, g2_ref, be2_ref, w2_ref, bias_ref, *rest):
        if has_proj:
            ws_ref, o_ref, halo1, halo2 = rest
        else:
            o_ref, halo1, halo2 = rest

        f32 = jnp.float32

        # ---- NCHW -> channels-last for this image (one small transpose) ----
        x = x_ref[...].T                                        # (HW, Cin) f32

        # Column-boundary masks shared by both convs (built once per step).
        col = lax.broadcasted_iota(jnp.int32, (HW, 1), 0) % W
        not_last_col = col != (W - 1)      # valid source cols for the (w-1) tap
        not_first_col = col != 0           # valid source cols for the (w+1) tap

        # ---- GroupNorm1 + SiLU (one-pass stats: var = E[x^2] - mean^2) -----
        s1 = jnp.sum(x, axis=0, keepdims=True)                  # (1, Cin)
        q1 = jnp.sum(x * x, axis=0, keepdims=True)              # (1, Cin)
        mean1 = jnp.dot(s1, p1_ref[...], preferred_element_type=f32)
        ex2_1 = jnp.dot(q1, p1_ref[...], preferred_element_type=f32)
        scale1 = lax.rsqrt(ex2_1 - mean1 * mean1 + EPS) * g1_ref[...]
        shift1 = be1_ref[...] - mean1 * scale1
        y1 = x * scale1 + shift1
        y1 = y1 * jax.nn.sigmoid(y1)                            # SiLU, (HW, Cin)

        def conv3x3(halo, y, w_ref, C):
            """3x3 'same' conv on y (HW, C) via a packed-halo scratch.

            halo lanes [0:C)  : left-tap copy  (kx=0) -> y stored one row lower,
                                last image column zeroed
                 lanes [C:2C) : centre copy    (kx=1)
                 lanes [2C:3C): right-tap copy (kx=2) -> y stored one row higher,
                                first image column zeroed
            Per dy one aligned (HW, 3C) slab read feeds ONE packed matmul.
            """
            # Zero only the border rows; all interior rows are overwritten below.
            halo[0:W + 1, :] = jnp.zeros((W + 1, 3 * C), halo.dtype)
            halo[W + HW - 1:2 * W + HW, :] = jnp.zeros((W + 1, 3 * C), halo.dtype)

            yL = jnp.where(not_last_col, y, 0.0)   # feeds the (w-1) tap
            yR = jnp.where(not_first_col, y, 0.0)  # feeds the (w+1) tap
            halo[W:W + HW, C:2 * C] = y                         # centre, aligned
            halo[W + 1:W + 1 + HW, 0:C] = yL                    # +1 row shift
            halo[W - 1:W - 1 + HW, 2 * C:3 * C] = yR            # -1 row shift

            acc = jnp.zeros((HW, w_ref.shape[-1]), f32)
            for ky in range(3):
                slab = halo[ky * W:ky * W + HW, :].astype(mm_dtype)   # (HW, 3C)
                acc = acc + jnp.dot(slab, w_ref[ky],
                                    preferred_element_type=f32)
            return acc

        acc1 = conv3x3(halo1, y1, w1_ref, Cin)          # (HW, Cout), b1 not yet added

        # ---- GroupNorm2 + SiLU with conv1 bias b1 folded into the stats ----
        b1 = b1_ref[...]                                        # (1, Cout)
        s2 = jnp.sum(acc1, axis=0, keepdims=True)
        q2 = jnp.sum(acc1 * acc1, axis=0, keepdims=True)
        s2b = s2 + HW * b1
        q2b = q2 + 2.0 * b1 * s2 + HW * b1 * b1
        mean2 = jnp.dot(s2b, p2_ref[...], preferred_element_type=f32)
        ex2_2 = jnp.dot(q2b, p2_ref[...], preferred_element_type=f32)
        scale2 = lax.rsqrt(ex2_2 - mean2 * mean2 + EPS) * g2_ref[...]
        shift2 = be2_ref[...] + (b1 - mean2) * scale2
        y2 = acc1 * scale2 + shift2
        y2 = y2 * jax.nn.sigmoid(y2)                            # (HW, Cout)

        acc2 = conv3x3(halo2, y2, w2_ref, Cout)                 # (HW, Cout)

        # ---- shortcut + fused bias (b2 [+ bs]) + residual, NCHW store -------
        if has_proj:
            sc = jnp.dot(x.astype(mm_dtype), ws_ref[...],
                         preferred_element_type=f32)            # 1x1 projection
        else:
            sc = x                                              # identity, exact f32
        out = acc2 + sc + bias_ref[...]                         # (HW, Cout)
        o_ref[...] = out.T.astype(o_ref.dtype)                  # (Cout, HW) lane-dense

    return kernel


# ----------------------------------------------------------------------------
# Wrapper
# ----------------------------------------------------------------------------
def _group_average_matrix(C, n_groups, hw):
    """(C, C) matrix P with P[i, j] = 1/(hw*cpg) iff i, j belong to the same group."""
    cpg = C // n_groups
    g = jnp.arange(C) // cpg
    return (g[:, None] == g[None, :]).astype(jnp.float32) / float(hw * cpg)


def residual_block(x_nchw, params, n_groups, *, matmul_dtype=jnp.bfloat16):
    """Forward pass matching the PyTorch ResidualBlock (NCHW in, NCHW out).

    If params contains "ws"/"bs" the 1x1 projection shortcut is used, otherwise
    the identity shortcut (requires in_channels == out_channels).
    """
    N, Cin, H, W = x_nchw.shape
    Cout = params["w1"].shape[-1]
    HW = H * W
    has_proj = "ws" in params
    if not has_proj:
        assert Cin == Cout, "identity shortcut needs in_channels == out_channels"

    x_flat = x_nchw.reshape(N, Cin, HW)                # free reshape, stays NC(HW)
    P1 = _group_average_matrix(Cin, n_groups, HW)
    P2 = _group_average_matrix(Cout, n_groups, HW)
    # (3,3,Ci,Co) -> (3, 3*Ci, Co): per-dy tap-packed weights (kx-major, matches
    # the [left | centre | right] lane layout of the packed halo).
    w1p = params["w1"].reshape(3, 3 * Cin, Cout).astype(matmul_dtype)
    w2p = params["w2"].reshape(3, 3 * Cout, Cout).astype(matmul_dtype)
    bias = params["b2"] + (params["bs"] if has_proj else 0.0)   # fused output bias

    kernel = _make_kernel(H, W, Cin, Cout, matmul_dtype, has_proj)

    def full(shape):                                   # whole-array, grid-invariant
        nd = len(shape)
        return pl.BlockSpec(shape, lambda n, nd=nd: (0,) * nd)

    in_specs = [
        pl.BlockSpec((None, Cin, HW), lambda n: (n, 0, 0)),     # x (one image/step)
        full((Cin, Cin)),                                       # P1
        full((1, Cin)), full((1, Cin)),                         # gamma1, beta1
        full((3, 3 * Cin, Cout)),                               # packed w1
        full((1, Cout)),                                        # b1
        full((Cout, Cout)),                                     # P2
        full((1, Cout)), full((1, Cout)),                       # gamma2, beta2
        full((3, 3 * Cout, Cout)),                              # packed w2
        full((1, Cout)),                                        # b2 (+ bs)
    ]
    args = [x_flat, P1,
            params["gamma1"].reshape(1, Cin), params["beta1"].reshape(1, Cin),
            w1p, params["b1"].reshape(1, Cout),
            P2,
            params["gamma2"].reshape(1, Cout), params["beta2"].reshape(1, Cout),
            w2p, bias.reshape(1, Cout)]
    if has_proj:
        in_specs.append(full((Cin, Cout)))                      # ws (1x1 shortcut)
        args.append(params["ws"].astype(matmul_dtype))

    out = pl.pallas_call(
        kernel,
        out_shape=jax.ShapeDtypeStruct((N, Cout, HW), jnp.float32),
        grid=(N,),
        in_specs=in_specs,
        out_specs=pl.BlockSpec((None, Cout, HW), lambda n: (n, 0, 0)),
        scratch_shapes=[
            pltpu.VMEM((HW + 2 * W, 3 * Cin), jnp.float32),     # packed halo, conv1
            pltpu.VMEM((HW + 2 * W, 3 * Cout), jnp.float32),    # packed halo, conv2
        ],
        compiler_params=pltpu.CompilerParams(
            dimension_semantics=("parallel",)),
    )(*args)

    return out.reshape(N, Cout, H, W)


# ----------------------------------------------------------------------------
# Pure-JAX reference (mirrors the PyTorch module semantics)
# ----------------------------------------------------------------------------
def reference_block(x, params, n_groups):
    def gn(z, gamma, beta):
        N, C, H, W = z.shape
        zg = z.reshape(N, n_groups, C // n_groups, H, W)
        m = zg.mean(axis=(2, 3, 4), keepdims=True)
        v = ((zg - m) ** 2).mean(axis=(2, 3, 4), keepdims=True)
        zn = ((zg - m) * lax.rsqrt(v + EPS)).reshape(N, C, H, W)
        return zn * gamma[None, :, None, None] + beta[None, :, None, None]

    def silu(z):
        return z * jax.nn.sigmoid(z)

    def conv(z, w_hwio, b):
        y = lax.conv_general_dilated(z, w_hwio, (1, 1), [(1, 1), (1, 1)],
                                     dimension_numbers=("NCHW", "HWIO", "NCHW"))
        return y + b[None, :, None, None]

    h = conv(silu(gn(x, params["gamma1"], params["beta1"])), params["w1"], params["b1"])
    h = conv(silu(gn(h, params["gamma2"], params["beta2"])), params["w2"], params["b2"])
    if "ws" in params:
        sc = jnp.einsum("nchw,co->nohw", x, params["ws"]) + params["bs"][None, :, None, None]
    else:
        sc = x
    return h + sc


if __name__ == "__main__":
    N, Cin, Cout, H, W, G = 2, 32, 64, 16, 16, 8

    key = jax.random.PRNGKey(0)
    ks = jax.random.split(key, 12)
    params = {
        "gamma1": 1.0 + 0.1 * jax.random.normal(ks[0], (Cin,), jnp.float32),
        "beta1": 0.1 * jax.random.normal(ks[1], (Cin,), jnp.float32),
        "w1": jax.random.normal(ks[2], (3, 3, Cin, Cout), jnp.float32) / np.sqrt(9 * Cin),
        "b1": 0.1 * jax.random.normal(ks[3], (Cout,), jnp.float32),
        "gamma2": 1.0 + 0.1 * jax.random.normal(ks[4], (Cout,), jnp.float32),
        "beta2": 0.1 * jax.random.normal(ks[5], (Cout,), jnp.float32),
        "w2": jax.random.normal(ks[6], (3, 3, Cout, Cout), jnp.float32) / np.sqrt(9 * Cout),
        "b2": 0.1 * jax.random.normal(ks[7], (Cout,), jnp.float32),
        "ws": jax.random.normal(ks[8], (Cin, Cout), jnp.float32) / np.sqrt(Cin),
        "bs": 0.1 * jax.random.normal(ks[9], (Cout,), jnp.float32),
    }
    x = jax.random.normal(ks[10], (N, Cin, H, W), jnp.float32)   # NCHW, like PyTorch

    ref = reference_block(x, params, G)

    # f32 MXU path (projection shortcut): tight tolerance.
    fwd_f32 = jax.jit(functools.partial(residual_block, n_groups=G,
                                        matmul_dtype=jnp.float32))
    out_f32 = jax.block_until_ready(fwd_f32(x, params))
    np.testing.assert_allclose(np.asarray(out_f32), np.asarray(ref),
                               rtol=2e-3, atol=2e-3)

    # bf16 operands + f32 accumulation (default): looser tolerance.
    fwd_bf16 = jax.jit(functools.partial(residual_block, n_groups=G))
    out_bf16 = jax.block_until_ready(fwd_bf16(x, params))
    np.testing.assert_allclose(np.asarray(out_bf16), np.asarray(ref),
                               rtol=5e-2, atol=5e-2)

    # Identity-shortcut case (in_channels == out_channels): projection matmul skipped.
    C = Cin
    params_id = {
        "gamma1": params["gamma1"], "beta1": params["beta1"],
        "w1": jax.random.normal(ks[11], (3, 3, C, C), jnp.float32) / np.sqrt(9 * C),
        "b1": 0.1 * jax.random.normal(ks[3], (C,), jnp.float32),
        "gamma2": 1.0 + 0.1 * jax.random.normal(ks[4], (C,), jnp.float32),
        "beta2": 0.1 * jax.random.normal(ks[5], (C,), jnp.float32),
        "w2": jax.random.normal(ks[6], (3, 3, C, C), jnp.float32) / np.sqrt(9 * C),
        "b2": 0.1 * jax.random.normal(ks[7], (C,), jnp.float32),
    }
    ref_id = reference_block(x, params_id, G)
    fwd_id = jax.jit(functools.partial(residual_block, n_groups=G))
    out_id = jax.block_until_ready(fwd_id(x, params_id))
    np.testing.assert_allclose(np.asarray(out_id), np.asarray(ref_id),
                               rtol=5e-2, atol=5e-2)

    print("KERNEL_OK")
</pallas_src>

<mosaic_0001>
module attributes {stable_mosaic.version = 11 : i64} {
  func.func @kernel(%arg0: i32, %arg1: memref<1x32x256xf32, #tpu.memory_space<vmem>>, %arg2: memref<32x32xf32, #tpu.memory_space<vmem>>, %arg3: memref<1x32xf32, #tpu.memory_space<vmem>>, %arg4: memref<1x32xf32, #tpu.memory_space<vmem>>, %arg5: memref<3x96x64xf32, #tpu.memory_space<vmem>>, %arg6: memref<1x64xf32, #tpu.memory_space<vmem>>, %arg7: memref<64x64xf32, #tpu.memory_space<vmem>>, %arg8: memref<1x64xf32, #tpu.memory_space<vmem>>, %arg9: memref<1x64xf32, #tpu.memory_space<vmem>>, %arg10: memref<3x192x64xf32, #tpu.memory_space<vmem>>, %arg11: memref<1x64xf32, #tpu.memory_space<vmem>>, %arg12: memref<32x64xf32, #tpu.memory_space<vmem>>, %arg13: memref<1x64x256xf32, #tpu.memory_space<vmem>>, %arg14: memref<288x96xf32, #tpu.memory_space<vmem>>, %arg15: memref<288x192xf32, #tpu.memory_space<vmem>>) attributes {dimension_semantics = [#tpu.dimension_semantics<parallel>], iteration_bounds = array<i64: 2>, scalar_prefetch = 0 : i64, scratch_operands = 2 : i64, tpu.core_type = #tpu.core_type<tc>, window_params = [{transform_indices = @transform_0, window_bounds = array<i64: 1, 32, 256>}, {pipeline_mode = #tpu.pipeline_mode<synchronous>, transform_indices = @transform_1, window_bounds = array<i64: 32, 32>}, {pipeline_mode = #tpu.pipeline_mode<synchronous>, transform_indices = @transform_2, window_bounds = array<i64: 1, 32>}, {pipeline_mode = #tpu.pipeline_mode<synchronous>, transform_indices = @transform_3, window_bounds = array<i64: 1, 32>}, {pipeline_mode = #tpu.pipeline_mode<synchronous>, transform_indices = @transform_4, window_bounds = array<i64: 3, 96, 64>}, {pipeline_mode = #tpu.pipeline_mode<synchronous>, transform_indices = @transform_5, window_bounds = array<i64: 1, 64>}, {pipeline_mode = #tpu.pipeline_mode<synchronous>, transform_indices = @transform_6, window_bounds = array<i64: 64, 64>}, {pipeline_mode = #tpu.pipeline_mode<synchronous>, transform_indices = @transform_7, window_bounds = array<i64: 1, 64>}, {pipeline_mode = #tpu.pipeline_mode<synchronous>, transform_indices = @transform_8, window_bounds = array<i64: 1, 64>}, {pipeline_mode = #tpu.pipeline_mode<synchronous>, transform_indices = @transform_9, window_bounds = array<i64: 3, 192, 64>}, {pipeline_mode = #tpu.pipeline_mode<synchronous>, transform_indices = @transform_10, window_bounds = array<i64: 1, 64>}, {pipeline_mode = #tpu.pipeline_mode<synchronous>, transform_indices = @transform_11, window_bounds = array<i64: 32, 64>}, {transform_indices = @transform_12, window_bounds = array<i64: 1, 64, 256>}]} {
    %c0 = arith.constant 0 : index
    %c0_0 = arith.constant 0 : index
    %c0_1 = arith.constant 0 : index
    %0 = vector.load %arg1[%c0, %c0_0, %c0_1] : memref<1x32x256xf32, #tpu.memory_space<vmem>>, vector<1x32x256xf32>
    %1 = vector.shape_cast %0 : vector<1x32x256xf32> to vector<32x256xf32>
    %2 = tpu.transpose %1, [1, 0] : vector<32x256xf32> -> vector<256x32xf32>
    %3 = tpu.iota {dimensions = array<i32: 0>} : vector<256x1xi32>
    %c16_i32 = arith.constant 16 : i32
    %c0_i32 = arith.constant 0 : i32
    %4 = arith.cmpi eq, %c16_i32, %c0_i32 : i32
    %c1_i32 = arith.constant 1 : i32
    %5 = arith.select %4, %c1_i32, %c16_i32 : i32
    %6 = vector.broadcast %5 : i32 to vector<256x1xi32>
    %7 = arith.remsi %3, %6 : vector<256x1xi32>
    %c0_i32_2 = arith.constant 0 : i32
    %8 = vector.broadcast %c0_i32_2 : i32 to vector<256x1xi32>
    %9 = arith.cmpi ne, %7, %8 : vector<256x1xi32>
    %c0_i32_3 = arith.constant 0 : i32
    %10 = vector.broadcast %c0_i32_3 : i32 to vector<256x1xi32>
    %11 = arith.cmpi slt, %7, %10 : vector<256x1xi32>
    %c0_i32_4 = arith.constant 0 : i32
    %12 = arith.cmpi slt, %5, %c0_i32_4 : i32
    %13 = vector.broadcast %12 : i1 to vector<256x1xi1>
    %14 = vector.broadcast %13 : vector<256x1xi1> to vector<256x1xi1>
    %15 = arith.xori %11, %14 : vector<256x1xi1>
    %16 = arith.andi %15, %9 : vector<256x1xi1>
    %17 = vector.broadcast %5 : i32 to vector<256x1xi32>
    %18 = arith.addi %7, %17 : vector<256x1xi32>
    %19 = arith.select %16, %18, %7 : vector<256x1xi1>, vector<256x1xi32>
    %c15_i32 = arith.constant 15 : i32
    %20 = vector.broadcast %c15_i32 : i32 to vector<256x1xi32>
    %21 = arith.cmpi ne, %19, %20 : vector<256x1xi32>
    %c0_i32_5 = arith.constant 0 : i32
    %22 = vector.broadcast %c0_i32_5 : i32 to vector<256x1xi32>
    %23 = arith.cmpi ne, %19, %22 : vector<256x1xi32>
    %cst = arith.constant dense<0.000000e+00> : vector<32xf32>
    %24 = vector.multi_reduction <add>, %2, %cst [0] : vector<256x32xf32> to vector<32xf32>
    %25 = vector.shape_cast %24 : vector<32xf32> to vector<1x32xf32>
    %26 = arith.mulf %2, %2 : vector<256x32xf32>
    %cst_6 = arith.constant dense<0.000000e+00> : vector<32xf32>
    %27 = vector.multi_reduction <add>, %26, %cst_6 [0] : vector<256x32xf32> to vector<32xf32>
    %28 = vector.shape_cast %27 : vector<32xf32> to vector<1x32xf32>
    %c0_7 = arith.constant 0 : index
    %c0_8 = arith.constant 0 : index
    %29 = vector.load %arg2[%c0_7, %c0_8] : memref<32x32xf32, #tpu.memory_space<vmem>>, vector<32x32xf32>
    %cst_9 = arith.constant dense<0.000000e+00> : vector<1x32xf32>
    %30 = tpu.matmul %25, %29, %cst_9 {dimension_numbers = #tpu.dot_dimension_numbers<[1], [0], [0], [1], [0, 0, 1, 1], [], []>} : vector<1x32xf32>, vector<32x32xf32>, vector<1x32xf32> -> vector<1x32xf32>
    %c0_10 = arith.constant 0 : index
    %c0_11 = arith.constant 0 : index
    %31 = vector.load %arg2[%c0_10, %c0_11] : memref<32x32xf32, #tpu.memory_space<vmem>>, vector<32x32xf32>
    %cst_12 = arith.constant dense<0.000000e+00> : vector<1x32xf32>
    %32 = tpu.matmul %28, %31, %cst_12 {dimension_numbers = #tpu.dot_dimension_numbers<[1], [0], [0], [1], [0, 0, 1, 1], [], []>} : vector<1x32xf32>, vector<32x32xf32>, vector<1x32xf32> -> vector<1x32xf32>
    %33 = arith.mulf %30, %30 : vector<1x32xf32>
    %34 = arith.subf %32, %33 : vector<1x32xf32>
    %cst_13 = arith.constant 9.99999974E-6 : f32
    %35 = vector.broadcast %cst_13 : f32 to vector<1x32xf32>
    %36 = arith.addf %34, %35 : vector<1x32xf32>
    %37 = math.rsqrt %36 : vector<1x32xf32>
    %c0_14 = arith.constant 0 : index
    %c0_15 = arith.constant 0 : index
    %38 = vector.load %arg3[%c0_14, %c0_15] : memref<1x32xf32, #tpu.memory_space<vmem>>, vector<1x32xf32>
    %39 = arith.mulf %37, %38 : vector<1x32xf32>
    %c0_16 = arith.constant 0 : index
    %c0_17 = arith.constant 0 : index
    %40 = vector.load %arg4[%c0_16, %c0_17] : memref<1x32xf32, #tpu.memory_space<vmem>>, vector<1x32xf32>
    %41 = arith.mulf %30, %39 : vector<1x32xf32>
    %42 = arith.subf %40, %41 : vector<1x32xf32>
    %43 = vector.broadcast %39 : vector<1x32xf32> to vector<256x32xf32>
    %44 = arith.mulf %2, %43 : vector<256x32xf32>
    %45 = vector.broadcast %42 : vector<1x32xf32> to vector<256x32xf32>
    %46 = arith.addf %44, %45 : vector<256x32xf32>
    %47 = arith.negf %46 : vector<256x32xf32>
    %48 = math.exp %47 : vector<256x32xf32>
    %cst_18 = arith.constant 1.000000e+00 : f32
    %49 = vector.broadcast %cst_18 : f32 to vector<256x32xf32>
    %50 = arith.addf %49, %48 : vector<256x32xf32>
    %51 = arith.divf %49, %50 : vector<256x32xf32>
    %52 = arith.mulf %46, %51 : vector<256x32xf32>
    %cst_19 = arith.constant 0.000000e+00 : f32
    %53 = vector.broadcast %cst_19 : f32 to vector<17x96xf32>
    %c0_20 = arith.constant 0 : index
    %c0_21 = arith.constant 0 : index
    %54 = vector.load %arg14[%c0_20, %c0_21] : memref<288x96xf32, #tpu.memory_space<vmem>>, vector<17x96xf32>
    tpu.vector_store %arg14[%c0_20, %c0_21], %53 {strides = array<i32>} : memref<288x96xf32, #tpu.memory_space<vmem>>, vector<17x96xf32>,
    %cst_22 = arith.constant 0.000000e+00 : f32
    %55 = vector.broadcast %cst_22 : f32 to vector<17x96xf32>
    %c271 = arith.constant 271 : index
    %c0_23 = arith.constant 0 : index
    %56 = vector.load %arg14[%c271, %c0_23] : memref<288x96xf32, #tpu.memory_space<vmem>>, vector<17x96xf32>
    tpu.vector_store %arg14[%c271, %c0_23], %55 {strides = array<i32>} : memref<288x96xf32, #tpu.memory_space<vmem>>, vector<17x96xf32>,
    %cst_24 = arith.constant 0.000000e+00 : f32
    %57 = vector.shape_cast %21 : vector<256x1xi1> to vector<256x1xi1>
    %58 = vector.broadcast %57 : vector<256x1xi1> to vector<256x32xi1>
    %59 = vector.broadcast %cst_24 : f32 to vector<256x32xf32>
    %60 = arith.select %58, %52, %59 : vector<256x32xi1>, vector<256x32xf32>
    %cst_25 = arith.constant 0.000000e+00 : f32
    %61 = vector.shape_cast %23 : vector<256x1xi1> to vector<256x1xi1>
    %62 = vector.broadcast %61 : vector<256x1xi1> to vector<256x32xi1>
    %63 = vector.broadcast %cst_25 : f32 to vector<256x32xf32>
    %64 = arith.select %62, %52, %63 : vector<256x32xi1>, vector<256x32xf32>
    %c16 = arith.constant 16 : index
    %c32 = arith.constant 32 : index
    %65 = vector.load %arg14[%c16, %c32] : memref<288x96xf32, #tpu.memory_space<vmem>>, vector<256x32xf32>
    tpu.vector_store %arg14[%c16, %c32], %52 {strides = array<i32>} : memref<288x96xf32, #tpu.memory_space<vmem>>, vector<256x32xf32>,
    %c17 = arith.constant 17 : index
    %c0_26 = arith.constant 0 : index
    %66 = vector.load %arg14[%c17, %c0_26] : memref<288x96xf32, #tpu.memory_space<vmem>>, vector<256x32xf32>
    tpu.vector_store %arg14[%c17, %c0_26], %60 {strides = array<i32>} : memref<288x96xf32, #tpu.memory_space<vmem>>, vector<256x32xf32>,
    %c15 = arith.constant 15 : index
    %c64 = arith.constant 64 : index
    %67 = vector.load %arg14[%c15, %c64] : memref<288x96xf32, #tpu.memory_space<vmem>>, vector<256x32xf32>
    tpu.vector_store %arg14[%c15, %c64], %64 {strides = array<i32>} : memref<288x96xf32, #tpu.memory_space<vmem>>, vector<256x32xf32>,
    %cst_27 = arith.constant 0.000000e+00 : f32
    %68 = vector.broadcast %cst_27 : f32 to vector<256x64xf32>
    %c0_28 = arith.constant 0 : index
    %c0_29 = arith.constant 0 : index
    %69 = vector.load %arg14[%c0_28, %c0_29] : memref<288x96xf32, #tpu.memory_space<vmem>>, vector<256x96xf32>
    %c0_30 = arith.constant 0 : index
    %c0_31 = arith.constant 0 : index
    %c0_32 = arith.constant 0 : index
    %70 = vector.load %arg5[%c0_30, %c0_31, %c0_32] : memref<3x96x64xf32, #tpu.memory_space<vmem>>, vector<1x96x64xf32>
    %71 = vector.shape_cast %70 : vector<1x96x64xf32> to vector<96x64xf32>
    %cst_33 = arith.constant dense<0.000000e+00> : vector<256x64xf32>
    %72 = tpu.matmul %69, %71, %cst_33 {dimension_numbers = #tpu.dot_dimension_numbers<[1], [0], [0], [1], [0, 0, 1, 1], [], []>} : vector<256x96xf32>, vector<96x64xf32>, vector<256x64xf32> -> vector<256x64xf32>
    %73 = arith.addf %68, %72 : vector<256x64xf32>
    %c16_34 = arith.constant 16 : index
    %c0_35 = arith.constant 0 : index
    %74 = vector.load %arg14[%c16_34, %c0_35] : memref<288x96xf32, #tpu.memory_space<vmem>>, vector<256x96xf32>
    %c1 = arith.constant 1 : index
    %c0_36 = arith.constant 0 : index
    %c0_37 = arith.constant 0 : index
    %75 = vector.load %arg5[%c1, %c0_36, %c0_37] : memref<3x96x64xf32, #tpu.memory_space<vmem>>, vector<1x96x64xf32>
    %76 = vector.shape_cast %75 : vector<1x96x64xf32> to vector<96x64xf32>
    %cst_38 = arith.constant dense<0.000000e+00> : vector<256x64xf32>
    %77 = tpu.matmul %74, %76, %cst_38 {dimension_numbers = #tpu.dot_dimension_numbers<[1], [0], [0], [1], [0, 0, 1, 1], [], []>} : vector<256x96xf32>, vector<96x64xf32>, vector<256x64xf32> -> vector<256x64xf32>
    %78 = arith.addf %73, %77 : vector<256x64xf32>
    %c32_39 = arith.constant 32 : index
    %c0_40 = arith.constant 0 : index
    %79 = vector.load %arg14[%c32_39, %c0_40] : memref<288x96xf32, #tpu.memory_space<vmem>>, vector<256x96xf32>
    %c2 = arith.constant 2 : index
    %c0_41 = arith.constant 0 : index
    %c0_42 = arith.constant 0 : index
    %80 = vector.load %arg5[%c2, %c0_41, %c0_42] : memref<3x96x64xf32, #tpu.memory_space<vmem>>, vector<1x96x64xf32>
    %81 = vector.shape_cast %80 : vector<1x96x64xf32> to vector<96x64xf32>
    %cst_43 = arith.constant dense<0.000000e+00> : vector<256x64xf32>
    %82 = tpu.matmul %79, %81, %cst_43 {dimension_numbers = #tpu.dot_dimension_numbers<[1], [0], [0], [1], [0, 0, 1, 1], [], []>} : vector<256x96xf32>, vector<96x64xf32>, vector<256x64xf32> -> vector<256x64xf32>
    %83 = arith.addf %78, %82 : vector<256x64xf32>
    %c0_44 = arith.constant 0 : index
    %c0_45 = arith.constant 0 : index
    %84 = vector.load %arg6[%c0_44, %c0_45] : memref<1x64xf32, #tpu.memory_space<vmem>>, vector<1x64xf32>
    %cst_46 = arith.constant dense<0.000000e+00> : vector<64xf32>
    %85 = vector.multi_reduction <add>, %83, %cst_46 [0] : vector<256x64xf32> to vector<64xf32>
    %86 = vector.shape_cast %85 : vector<64xf32> to vector<1x64xf32>
    %87 = arith.mulf %83, %83 : vector<256x64xf32>
    %cst_47 = arith.constant dense<0.000000e+00> : vector<64xf32>
    %88 = vector.multi_reduction <add>, %87, %cst_47 [0] : vector<256x64xf32> to vector<64xf32>
    %89 = vector.shape_cast %88 : vector<64xf32> to vector<1x64xf32>
    %cst_48 = arith.constant 2.560000e+02 : f32
    %90 = vector.broadcast %cst_48 : f32 to vector<1x64xf32>
    %91 = arith.mulf %90, %84 : vector<1x64xf32>
    %92 = arith.addf %86, %91 : vector<1x64xf32>
    %cst_49 = arith.constant 2.000000e+00 : f32
    %93 = vector.broadcast %cst_49 : f32 to vector<1x64xf32>
    %94 = arith.mulf %93, %84 : vector<1x64xf32>
    %95 = arith.mulf %94, %86 : vector<1x64xf32>
    %96 = arith.addf %89, %95 : vector<1x64xf32>
    %cst_50 = arith.constant 2.560000e+02 : f32
    %97 = vector.broadcast %cst_50 : f32 to vector<1x64xf32>
    %98 = arith.mulf %97, %84 : vector<1x64xf32>
    %99 = arith.mulf %98, %84 : vector<1x64xf32>
    %100 = arith.addf %96, %99 : vector<1x64xf32>
    %c0_51 = arith.constant 0 : index
    %c0_52 = arith.constant 0 : index
    %101 = vector.load %arg7[%c0_51, %c0_52] : memref<64x64xf32, #tpu.memory_space<vmem>>, vector<64x64xf32>
    %cst_53 = arith.constant dense<0.000000e+00> : vector<1x64xf32>
    %102 = tpu.matmul %92, %101, %cst_53 {dimension_numbers = #tpu.dot_dimension_numbers<[1], [0], [0], [1], [0, 0, 1, 1], [], []>} : vector<1x64xf32>, vector<64x64xf32>, vector<1x64xf32> -> vector<1x64xf32>
    %c0_54 = arith.constant 0 : index
    %c0_55 = arith.constant 0 : index
    %103 = vector.load %arg7[%c0_54, %c0_55] : memref<64x64xf32, #tpu.memory_space<vmem>>, vector<64x64xf32>
    %cst_56 = arith.constant dense<0.000000e+00> : vector<1x64xf32>
    %104 = tpu.matmul %100, %103, %cst_56 {dimension_numbers = #tpu.dot_dimension_numbers<[1], [0], [0], [1], [0, 0, 1, 1], [], []>} : vector<1x64xf32>, vector<64x64xf32>, vector<1x64xf32> -> vector<1x64xf32>
    %105 = arith.mulf %102, %102 : vector<1x64xf32>
    %106 = arith.subf %104, %105 : vector<1x64xf32>
    %cst_57 = arith.constant 9.99999974E-6 : f32
    %107 = vector.broadcast %cst_57 : f32 to vector<1x64xf32>
    %108 = arith.addf %106, %107 : vector<1x64xf32>
    %109 = math.rsqrt %108 : vector<1x64xf32>
    %c0_58 = arith.constant 0 : index
    %c0_59 = arith.constant 0 : index
    %110 = vector.load %arg8[%c0_58, %c0_59] : memref<1x64xf32, #tpu.memory_space<vmem>>, vector<1x64xf32>
    %111 = arith.mulf %109, %110 : vector<1x64xf32>
    %c0_60 = arith.constant 0 : index
    %c0_61 = arith.constant 0 : index
    %112 = vector.load %arg9[%c0_60, %c0_61] : memref<1x64xf32, #tpu.memory_space<vmem>>, vector<1x64xf32>
    %113 = arith.subf %84, %102 : vector<1x64xf32>
    %114 = arith.mulf %113, %111 : vector<1x64xf32>
    %115 = arith.addf %112, %114 : vector<1x64xf32>
    %116 = vector.broadcast %111 : vector<1x64xf32> to vector<256x64xf32>
    %117 = arith.mulf %83, %116 : vector<256x64xf32>
    %118 = vector.broadcast %115 : vector<1x64xf32> to vector<256x64xf32>
    %119 = arith.addf %117, %118 : vector<256x64xf32>
    %120 = arith.negf %119 : vector<256x64xf32>
    %121 = math.exp %120 : vector<256x64xf32>
    %cst_62 = arith.constant 1.000000e+00 : f32
    %122 = vector.broadcast %cst_62 : f32 to vector<256x64xf32>
    %123 = arith.addf %122, %121 : vector<256x64xf32>
    %124 = arith.divf %122, %123 : vector<256x64xf32>
    %125 = arith.mulf %119, %124 : vector<256x64xf32>
    %cst_63 = arith.constant 0.000000e+00 : f32
    %126 = vector.broadcast %cst_63 : f32 to vector<17x192xf32>
    %c0_64 = arith.constant 0 : index
    %c0_65 = arith.constant 0 : index
    %127 = vector.load %arg15[%c0_64, %c0_65] : memref<288x192xf32, #tpu.memory_space<vmem>>, vector<17x192xf32>
    tpu.vector_store %arg15[%c0_64, %c0_65], %126 {strides = array<i32>} : memref<288x192xf32, #tpu.memory_space<vmem>>, vector<17x192xf32>,
    %cst_66 = arith.constant 0.000000e+00 : f32
    %128 = vector.broadcast %cst_66 : f32 to vector<17x192xf32>
    %c271_67 = arith.constant 271 : index
    %c0_68 = arith.constant 0 : index
    %129 = vector.load %arg15[%c271_67, %c0_68] : memref<288x192xf32, #tpu.memory_space<vmem>>, vector<17x192xf32>
    tpu.vector_store %arg15[%c271_67, %c0_68], %128 {strides = array<i32>} : memref<288x192xf32, #tpu.memory_space<vmem>>, vector<17x192xf32>,
    %cst_69 = arith.constant 0.000000e+00 : f32
    %130 = vector.shape_cast %21 : vector<256x1xi1> to vector<256x1xi1>
    %131 = vector.broadcast %130 : vector<256x1xi1> to vector<256x64xi1>
    %132 = vector.broadcast %cst_69 : f32 to vector<256x64xf32>
    %133 = arith.select %131, %125, %132 : vector<256x64xi1>, vector<256x64xf32>
    %cst_70 = arith.constant 0.000000e+00 : f32
    %134 = vector.shape_cast %23 : vector<256x1xi1> to vector<256x1xi1>
    %135 = vector.broadcast %134 : vector<256x1xi1> to vector<256x64xi1>
    %136 = vector.broadcast %cst_70 : f32 to vector<256x64xf32>
    %137 = arith.select %135, %125, %136 : vector<256x64xi1>, vector<256x64xf32>
    %c16_71 = arith.constant 16 : index
    %c64_72 = arith.constant 64 : index
    %138 = vector.load %arg15[%c16_71, %c64_72] : memref<288x192xf32, #tpu.memory_space<vmem>>, vector<256x64xf32>
    tpu.vector_store %arg15[%c16_71, %c64_72], %125 {strides = array<i32>} : memref<288x192xf32, #tpu.memory_space<vmem>>, vector<256x64xf32>,
    %c17_73 = arith.constant 17 : index
    %c0_74 = arith.constant 0 : index
    %139 = vector.load %arg15[%c17_73, %c0_74] : memref<288x192xf32, #tpu.memory_space<vmem>>, vector<256x64xf32>
    tpu.vector_store %arg15[%c17_73, %c0_74], %133 {strides = array<i32>} : memref<288x192xf32, #tpu.memory_space<vmem>>, vector<256x64xf32>,
    %c15_75 = arith.constant 15 : index
    %c128 = arith.constant 128 : index
    %140 = vector.load %arg15[%c15_75, %c128] : memref<288x192xf32, #tpu.memory_space<vmem>>, vector<256x64xf32>
    tpu.vector_store %arg15[%c15_75, %c128], %137 {strides = array<i32>} : memref<288x192xf32, #tpu.memory_space<vmem>>, vector<256x64xf32>,
    %cst_76 = arith.constant 0.000000e+00 : f32
    %141 = vector.broadcast %cst_76 : f32 to vector<256x64xf32>
    %c0_77 = arith.constant 0 : index
    %c0_78 = arith.constant 0 : index
    %142 = vector.load %arg15[%c0_77, %c0_78] : memref<288x192xf32, #tpu.memory_space<vmem>>, vector<256x192xf32>
    %c0_79 = arith.constant 0 : index
    %c0_80 = arith.constant 0 : index
    %c0_81 = arith.constant 0 : index
    %143 = vector.load %arg10[%c0_79, %c0_80, %c0_81] : memref<3x192x64xf32, #tpu.memory_space<vmem>>, vector<1x192x64xf32>
    %144 = vector.shape_cast %143 : vector<1x192x64xf32> to vector<192x64xf32>
    %cst_82 = arith.constant dense<0.000000e+00> : vector<256x64xf32>
    %145 = tpu.matmul %142, %144, %cst_82 {dimension_numbers = #tpu.dot_dimension_numbers<[1], [0], [0], [1], [0, 0, 1, 1], [], []>} : vector<256x192xf32>, vector<192x64xf32>, vector<256x64xf32> -> vector<256x64xf32>
    %146 = arith.addf %141, %145 : vector<256x64xf32>
    %c16_83 = arith.constant 16 : index
    %c0_84 = arith.constant 0 : index
    %147 = vector.load %arg15[%c16_83, %c0_84] : memref<288x192xf32, #tpu.memory_space<vmem>>, vector<256x192xf32>
    %c1_85 = arith.constant 1 : index
    %c0_86 = arith.constant 0 : index
    %c0_87 = arith.constant 0 : index
    %148 = vector.load %arg10[%c1_85, %c0_86, %c0_87] : memref<3x192x64xf32, #tpu.memory_space<vmem>>, vector<1x192x64xf32>
    %149 = vector.shape_cast %148 : vector<1x192x64xf32> to vector<192x64xf32>
    %cst_88 = arith.constant dense<0.000000e+00> : vector<256x64xf32>
    %150 = tpu.matmul %147, %149, %cst_88 {dimension_numbers = #tpu.dot_dimension_numbers<[1], [0], [0], [1], [0, 0, 1, 1], [], []>} : vector<256x192xf32>, vector<192x64xf32>, vector<256x64xf32> -> vector<256x64xf32>
    %151 = arith.addf %146, %150 : vector<256x64xf32>
    %c32_89 = arith.constant 32 : index
    %c0_90 = arith.constant 0 : index
    %152 = vector.load %arg15[%c32_89, %c0_90] : memref<288x192xf32, #tpu.memory_space<vmem>>, vector<256x192xf32>
    %c2_91 = arith.constant 2 : index
    %c0_92 = arith.constant 0 : index
    %c0_93 = arith.constant 0 : index
    %153 = vector.load %arg10[%c2_91, %c0_92, %c0_93] : memref<3x192x64xf32, #tpu.memory_space<vmem>>, vector<1x192x64xf32>
    %154 = vector.shape_cast %153 : vector<1x192x64xf32> to vector<192x64xf32>
    %cst_94 = arith.constant dense<0.000000e+00> : vector<256x64xf32>
    %155 = tpu.matmul %152, %154, %cst_94 {dimension_numbers = #tpu.dot_dimension_numbers<[1], [0], [0], [1], [0, 0, 1, 1], [], []>} : vector<256x192xf32>, vector<192x64xf32>, vector<256x64xf32> -> vector<256x64xf32>
    %156 = arith.addf %151, %155 : vector<256x64xf32>
    %c0_95 = arith.constant 0 : index
    %c0_96 = arith.constant 0 : index
    %157 = vector.load %arg12[%c0_95, %c0_96] : memref<32x64xf32, #tpu.memory_space<vmem>>, vector<32x64xf32>
    %cst_97 = arith.constant dense<0.000000e+00> : vector<256x64xf32>
    %158 = tpu.matmul %2, %157, %cst_97 {dimension_numbers = #tpu.dot_dimension_numbers<[1], [0], [0], [1], [0, 0, 1, 1], [], []>} : vector<256x32xf32>, vector<32x64xf32>, vector<256x64xf32> -> vector<256x64xf32>
    %159 = arith.addf %156, %158 : vector<256x64xf32>
    %c0_98 = arith.constant 0 : index
    %c0_99 = arith.constant 0 : index
    %160 = vector.load %arg11[%c0_98, %c0_99] : memref<1x64xf32, #tpu.memory_space<vmem>>, vector<1x64xf32>
    %161 = vector.broadcast %160 : vector<1x64xf32> to vector<256x64xf32>
    %162 = arith.addf %159, %161 : vector<256x64xf32>
    %163 = tpu.transpose %162, [1, 0] : vector<256x64xf32> -> vector<64x256xf32>
    %c0_100 = arith.constant 0 : index
    %c0_101 = arith.constant 0 : index
    %c0_102 = arith.constant 0 : index
    %164 = vector.load %arg13[%c0_100, %c0_101, %c0_102] : memref<1x64x256xf32, #tpu.memory_space<vmem>>, vector<1x64x256xf32>
    %165 = vector.shape_cast %164 : vector<1x64x256xf32> to vector<64x256xf32>
    %166 = vector.shape_cast %163 : vector<64x256xf32> to vector<1x64x256xf32>
    tpu.vector_store %arg13[%c0_100, %c0_101, %c0_102], %166 {strides = array<i32>} : memref<1x64x256xf32, #tpu.memory_space<vmem>>, vector<1x64x256xf32>,
    return
  }
  func.func @transform_0(%arg0: i32) -> (i32, i32, i32) {
    %c0_i32 = arith.constant 0 : i32
    %c0_i32_0 = arith.constant 0 : i32
    %c0_i32_1 = arith.constant 0 : i32
    return %arg0, %c0_i32, %c0_i32_0 : i32, i32, i32
  }
  func.func @transform_1(%arg0: i32) -> (i32, i32) {
    %c0_i32 = arith.constant 0 : i32
    %c0_i32_0 = arith.constant 0 : i32
    %c0_i32_1 = arith.constant 0 : i32
    return %c0_i32, %c0_i32_0 : i32, i32
  }
  func.func @transform_2(%arg0: i32) -> (i32, i32) {
    %c0_i32 = arith.constant 0 : i32
    %c0_i32_0 = arith.constant 0 : i32
    %c0_i32_1 = arith.constant 0 : i32
    return %c0_i32, %c0_i32_0 : i32, i32
  }
  func.func @transform_3(%arg0: i32) -> (i32, i32) {
    %c0_i32 = arith.constant 0 : i32
    %c0_i32_0 = arith.constant 0 : i32
    %c0_i32_1 = arith.constant 0 : i32
    return %c0_i32, %c0_i32_0 : i32, i32
  }
  func.func @transform_4(%arg0: i32) -> (i32, i32, i32) {
    %c0_i32 = arith.constant 0 : i32
    %c0_i32_0 = arith.constant 0 : i32
    %c0_i32_1 = arith.constant 0 : i32
    %c0_i32_2 = arith.constant 0 : i32
    return %c0_i32, %c0_i32_0, %c0_i32_1 : i32, i32, i32
  }
  func.func @transform_5(%arg0: i32) -> (i32, i32) {
    %c0_i32 = arith.constant 0 : i32
    %c0_i32_0 = arith.constant 0 : i32
    %c0_i32_1 = arith.constant 0 : i32
    return %c0_i32, %c0_i32_0 : i32, i32
  }
  func.func @transform_6(%arg0: i32) -> (i32, i32) {
    %c0_i32 = arith.constant 0 : i32
    %c0_i32_0 = arith.constant 0 : i32
    %c0_i32_1 = arith.constant 0 : i32
    return %c0_i32, %c0_i32_0 : i32, i32
  }
  func.func @transform_7(%arg0: i32) -> (i32, i32) {
    %c0_i32 = arith.constant 0 : i32
    %c0_i32_0 = arith.constant 0 : i32
    %c0_i32_1 = arith.constant 0 : i32
    return %c0_i32, %c0_i32_0 : i32, i32
  }
  func.func @transform_8(%arg0: i32) -> (i32, i32) {
    %c0_i32 = arith.constant 0 : i32
    %c0_i32_0 = arith.constant 0 : i32
    %c0_i32_1 = arith.constant 0 : i32
    return %c0_i32, %c0_i32_0 : i32, i32
  }
  func.func @transform_9(%arg0: i32) -> (i32, i32, i32) {
    %c0_i32 = arith.constant 0 : i32
    %c0_i32_0 = arith.constant 0 : i32
    %c0_i32_1 = arith.constant 0 : i32
    %c0_i32_2 = arith.constant 0 : i32
    return %c0_i32, %c0_i32_0, %c0_i32_1 : i32, i32, i32
  }
  func.func @transform_10(%arg0: i32) -> (i32, i32) {
    %c0_i32 = arith.constant 0 : i32
    %c0_i32_0 = arith.constant 0 : i32
    %c0_i32_1 = arith.constant 0 : i32
    return %c0_i32, %c0_i32_0 : i32, i32
  }
  func.func @transform_11(%arg0: i32) -> (i32, i32) {
    %c0_i32 = arith.constant 0 : i32
    %c0_i32_0 = arith.constant 0 : i32
    %c0_i32_1 = arith.constant 0 : i32
    return %c0_i32, %c0_i32_0 : i32, i32
  }
  func.func @transform_12(%arg0: i32) -> (i32, i32, i32) {
    %c0_i32 = arith.constant 0 : i32
    %c0_i32_0 = arith.constant 0 : i32
    %c0_i32_1 = arith.constant 0 : i32
    return %arg0, %c0_i32, %c0_i32_0 : i32, i32, i32
  }
}

</mosaic_0001>

<llo_original>
// kernel: residual_block.1
$region0: #{residual_block.1}
  #allocation0 [shape = 'u32[]', space=smem, size = 0x4, offset = 0x4, fixed_abs, tag = 'smem constant byte address 0x4 - core index']
  #allocation1 [shape = 'u32[144,128]{1,0:T(1,128)}', space=vmem, size = 0x12000, scoped, tag = 'internal scratch']
  #allocation2 [shape = 'f32[288,96]{1,0:T(8,128)}', space=vmem, size = 0x24000, scoped, tag = 'scratch operand']
  #allocation3 [shape = 'f32[288,192]{1,0:T(8,128)}', space=vmem, size = 0x48000, scoped, tag = 'scratch operand']
  %s0 = inlined_call_operand.vmem [shape: f32[2,32,256], index: 0, kind: input, shape index: {}]
  %s1 = inlined_call_operand.vmem [shape: f32[32,32], index: 1, kind: input, shape index: {}]
  %s2 = inlined_call_operand.vmem [shape: f32[1,32], index: 2, kind: input, shape index: {}]
  %s3 = inlined_call_operand.vmem [shape: f32[1,32], index: 3, kind: input, shape index: {}]
  %s4 = inlined_call_operand.hbm [shape: f32[3,96,64], index: 4, kind: input, shape index: {}]
  %s5 = inlined_call_operand.vmem [shape: f32[1,64], index: 5, kind: input, shape index: {}]
  %s6 = inlined_call_operand.vmem [shape: f32[64,64], index: 6, kind: input, shape index: {}]
  %s7 = inlined_call_operand.vmem [shape: f32[1,64], index: 7, kind: input, shape index: {}]
  %s8 = inlined_call_operand.vmem [shape: f32[1,64], index: 8, kind: input, shape index: {}]
  %s9 = inlined_call_operand.vmem [shape: f32[3,192,64], index: 9, kind: input, shape index: {}]
  %s10 = inlined_call_operand.vmem [shape: f32[1,64], index: 10, kind: input, shape index: {}]
  %s11 = inlined_call_operand.vmem [shape: f32[32,64], index: 11, kind: input, shape index: {}]
  %s12 = inlined_call_operand.vmem [shape: f32[2,64,256], index: 12, kind: output, shape index: {}]
  %s13 = sld [smem:[#allocation0]]
  $region85: #{residual_block.1} parent=0
    _
  %s15 = ssub.s32 1, %s13
  %s16 = scalar_select 0, %s15, %s13
  $region1: #{residual_block.1} parent=0
    #allocation4 [shape = 'u8[147456]{0}', space=vmem, size = 0x24000, scoped, tag = 'input window, operand 4, single buffered']
    #allocation5 [shape = 's32[2]{0}', space=sflag, size = 0x8, scoped, tag = 'scoped memory for residual_block.1']
    %17 = vsyncpa [#allocation5], 0
    loop: start=0, step=1, limit=4
    $region2: #{residual_block.1} parent=1 // loop_pre_header
      _
    $region3: #{residual_block.1} parent=1 // loop_header
      %s19 = sphi 0, %s23
      %p20 = scmp.ge.s32.totalorder %s19, 4
      %s29 = sphi 0, %s31
      %s32 = sphi 0, %s29
      %s33 = sphi 0, %s32
      %s49 = sphi 0, %s33
      %s53 = sphi 0, %s53
      %s55 = sphi 0, %s53
      %s56 = sphi 0, %s55
      %s70 = sphi 0, %s56
      %s74 = sphi 0, %s74
      %s76 = sphi 0, %s74
      %s77 = sphi 0, %s76
      %s91 = sphi 0, %s77
      %s95 = sphi 0, %s95
      %s97 = sphi 0, %s95
      %s98 = sphi 0, %s97
      %s112 = sphi 0, %s98
      %s116 = sphi 0, %s116
      %s118 = sphi 0, %s116
      %s119 = sphi 0, %s118
      %s133 = sphi 0, %s119
      %s137 = sphi 0, %s137
      %s139 = sphi 0, %s137
      %s140 = sphi 0, %s139
      %s154 = sphi 0, %s140
      %s158 = sphi 0, %s158
      %s160 = sphi 0, %s158
      %s161 = sphi 0, %s160
      %s175 = sphi 0, %s161
      %s179 = sphi 0, %s179
      %s181 = sphi 0, %s179
      %s182 = sphi 0, %s181
      %s196 = sphi 0, %s182
      %s200 = sphi 0, %s200
      %s202 = sphi 0, %s200
      %s203 = sphi 0, %s202
      %s217 = sphi 0, %s203
      %s221 = sphi 0, %s221
      %s223 = sphi 0, %s221
      %s224 = sphi 0, %s223
      %s238 = sphi 0, %s224
      %s242 = sphi 0, %s242
      %s244 = sphi 0, %s242
      %s245 = sphi 0, %s244
      %s259 = sphi 0, %s245
      %s263 = sphi 0, %s263
      %s265 = sphi 0, %s263
      %s266 = sphi 0, %s265
      %s280 = sphi 0, %s266
      %s286 = sphi 0, %s288
      %s289 = sphi 0, %s286
      %s290 = sphi 0, %s289
      %s306 = sphi 0, %s290
    $region4: #{residual_block.1} parent=1 // loop_header_branch
      %22 = sbr.rel (%p20) target = $region8
    $region5: #{residual_block.1} parent=1 // loop_body
      %s24 = ssub.s32 %s19, 1
      %s25 = ssub.s32 %s19, 2
      %s26 = sadd.s32 %s19, 1
      %s27 = ssub.s32 %s19, %s26
      %p28 = scmp.eq.s32.totalorder %s27, 0
      %s30 = sadd.s32 %s29, 1
      %s31 = scalar_select %p28, %s29, %s30
      %p34 = pneg %p28
      %p35 = scmp.eq.s32.totalorder %s19, 1
      %p36 = por %p34, %p35
      %p37 = scmp.ne.s32.totalorder %s29, %s32
      %p38 = scmp.eq.s32.totalorder %s19, 0
      %p39 = por %p37, %p38
      %p40 = scmp.ne.s32.totalorder %s29, %s32
      %p41 = scmp.eq.s32.totalorder %s24, 1
      %p42 = por %p40, %p41
      %p43 = scmp.ne.s32.totalorder %s32, %s33
      %p44 = scmp.eq.s32.totalorder %s24, 0
      %p45 = por %p43, %p44
      %p46 = scmp.ne.s32.totalorder %s32, %s33
      %p47 = scmp.eq.s32.totalorder %s25, 1
      %p48 = por %p46, %p47
      %p50 = scmp.ne.s32.totalorder %s33, %s49
      %p51 = scmp.eq.s32.totalorder %s25, 0
      %p52 = por %p50, %p51
      %s54 = sadd.s32 %s53, 1
      %p57 = scmp.eq.s32.totalorder %s19, 1
      %p58 = scmp.ne.s32.totalorder %s53, %s55
      %p59 = scmp.eq.s32.totalorder %s19, 0
      %p60 = por %p58, %p59
      %p61 = scmp.ne.s32.totalorder %s53, %s55
      %p62 = scmp.eq.s32.totalorder %s24, 1
      %p63 = por %p61, %p62
      %p64 = scmp.ne.s32.totalorder %s55, %s56
      %p65 = scmp.eq.s32.totalorder %s24, 0
      %p66 = por %p64, %p65
      %p67 = scmp.ne.s32.totalorder %s55, %s56
      %p68 = scmp.eq.s32.totalorder %s25, 1
      %p69 = por %p67, %p68
      %p71 = scmp.ne.s32.totalorder %s56, %s70
      %p72 = scmp.eq.s32.totalorder %s25, 0
      %p73 = por %p71, %p72
      %s75 = sadd.s32 %s74, 1
      %p78 = scmp.eq.s32.totalorder %s19, 1
      %p79 = scmp.ne.s32.totalorder %s74, %s76
      %p80 = scmp.eq.s32.totalorder %s19, 0
      %p81 = por %p79, %p80
      %p82 = scmp.ne.s32.totalorder %s74, %s76
      %p83 = scmp.eq.s32.totalorder %s24, 1
      %p84 = por %p82, %p83
      %p85 = scmp.ne.s32.totalorder %s76, %s77
      %p86 = scmp.eq.s32.totalorder %s24, 0
      %p87 = por %p85, %p86
      %p88 = scmp.ne.s32.totalorder %s76, %s77
      %p89 = scmp.eq.s32.totalorder %s25, 1
      %p90 = por %p88, %p89
      %p92 = scmp.ne.s32.totalorder %s77, %s91
      %p93 = scmp.eq.s32.totalorder %s25, 0
      %p94 = por %p92, %p93
      %s96 = sadd.s32 %s95, 1
      %p99 = scmp.eq.s32.totalorder %s19, 1
      %p100 = scmp.ne.s32.totalorder %s95, %s97
      %p101 = scmp.eq.s32.totalorder %s19, 0
      %p102 = por %p100, %p101
      %p103 = scmp.ne.s32.totalorder %s95, %s97
      %p104 = scmp.eq.s32.totalorder %s24, 1
      %p105 = por %p103, %p104
      %p106 = scmp.ne.s32.totalorder %s97, %s98
      %p107 = scmp.eq.s32.totalorder %s24, 0
      %p108 = por %p106, %p107
      %p109 = scmp.ne.s32.totalorder %s97, %s98
      %p110 = scmp.eq.s32.totalorder %s25, 1
      %p111 = por %p109, %p110
      %p113 = scmp.ne.s32.totalorder %s98, %s112
      %p114 = scmp.eq.s32.totalorder %s25, 0
      %p115 = por %p113, %p114
      %s117 = sadd.s32 %s116, 1
      %p120 = scmp.eq.s32.totalorder %s19, 1
      %p121 = scmp.ne.s32.totalorder %s116, %s118
      %p122 = scmp.eq.s32.totalorder %s19, 0
      %p123 = por %p121, %p122
      %p124 = scmp.ne.s32.totalorder %s116, %s118
      %p125 = scmp.eq.s32.totalorder %s24, 1
      %p126 = por %p124, %p125
      %p127 = scmp.ne.s32.totalorder %s118, %s119
      %p128 = scmp.eq.s32.totalorder %s24, 0
      %p129 = por %p127, %p128
      %p130 = scmp.ne.s32.totalorder %s118, %s119
      %p131 = scmp.eq.s32.totalorder %s25, 1
      %p132 = por %p130, %p131
      %p134 = scmp.ne.s32.totalorder %s119, %s133
      %p135 = scmp.eq.s32.totalorder %s25, 0
      %p136 = por %p134, %p135
      %s138 = sadd.s32 %s137, 1
      %p141 = scmp.eq.s32.totalorder %s19, 1
      %p142 = scmp.ne.s32.totalorder %s137, %s139
      %p143 = scmp.eq.s32.totalorder %s19, 0
      %p144 = por %p142, %p143
      %p145 = scmp.ne.s32.totalorder %s137, %s139
      %p146 = scmp.eq.s32.totalorder %s24, 1
      %p147 = por %p145, %p146
      %p148 = scmp.ne.s32.totalorder %s139, %s140
      %p149 = scmp.eq.s32.totalorder %s24, 0
      %p150 = por %p148, %p149
      %p151 = scmp.ne.s32.totalorder %s139, %s140
      %p152 = scmp.eq.s32.totalorder %s25, 1
      %p153 = por %p151, %p152
      %p155 = scmp.ne.s32.totalorder %s140, %s154
      %p156 = scmp.eq.s32.totalorder %s25, 0
      %p157 = por %p155, %p156
      %s159 = sadd.s32 %s158, 1
      %p162 = scmp.eq.s32.totalorder %s19, 1
      %p163 = scmp.ne.s32.totalorder %s158, %s160
      %p164 = scmp.eq.s32.totalorder %s19, 0
      %p165 = por %p163, %p164
      %p166 = scmp.ne.s32.totalorder %s158, %s160
      %p167 = scmp.eq.s32.totalorder %s24, 1
      %p168 = por %p166, %p167
      %p169 = scmp.ne.s32.totalorder %s160, %s161
      %p170 = scmp.eq.s32.totalorder %s24, 0
      %p171 = por %p169, %p170
      %p172 = scmp.ne.s32.totalorder %s160, %s161
      %p173 = scmp.eq.s32.totalorder %s25, 1
      %p174 = por %p172, %p173
      %p176 = scmp.ne.s32.totalorder %s161, %s175
      %p177 = scmp.eq.s32.totalorder %s25, 0
      %p178 = por %p176, %p177
      %s180 = sadd.s32 %s179, 1
      %p183 = scmp.eq.s32.totalorder %s19, 1
      %p184 = scmp.ne.s32.totalorder %s179, %s181
      %p185 = scmp.eq.s32.totalorder %s19, 0
      %p186 = por %p184, %p185
      %p187 = scmp.ne.s32.totalorder %s179, %s181
      %p188 = scmp.eq.s32.totalorder %s24, 1
      %p189 = por %p187, %p188
      %p190 = scmp.ne.s32.totalorder %s181, %s182
      %p191 = scmp.eq.s32.totalorder %s24, 0
      %p192 = por %p190, %p191
      %p193 = scmp.ne.s32.totalorder %s181, %s182
      %p194 = scmp.eq.s32.totalorder %s25, 1
      %p195 = por %p193, %p194
      %p197 = scmp.ne.s32.totalorder %s182, %s196
      %p198 = scmp.eq.s32.totalorder %s25, 0
      %p199 = por %p197, %p198
      %s201 = sadd.s32 %s200, 1
      %p204 = scmp.eq.s32.totalorder %s19, 1
      %p205 = scmp.ne.s32.totalorder %s200, %s202
      %p206 = scmp.eq.s32.totalorder %s19, 0
      %p207 = por %p205, %p206
      %p208 = scmp.ne.s32.totalorder %s200, %s202
      %p209 = scmp.eq.s32.totalorder %s24, 1
      %p210 = por %p208, %p209
      %p211 = scmp.ne.s32.totalorder %s202, %s203
      %p212 = scmp.eq.s32.totalorder %s24, 0
      %p213 = por %p211, %p212
      %p214 = scmp.ne.s32.totalorder %s202, %s203
      %p215 = scmp.eq.s32.totalorder %s25, 1
      %p216 = por %p214, %p215
      %p218 = scmp.ne.s32.totalorder %s203, %s217
      %p219 = scmp.eq.s32.totalorder %s25, 0
      %p220 = por %p218, %p219
      %s222 = sadd.s32 %s221, 1
      %p225 = scmp.eq.s32.totalorder %s19, 1
      %p226 = scmp.ne.s32.totalorder %s221, %s223
      %p227 = scmp.eq.s32.totalorder %s19, 0
      %p228 = por %p226, %p227
      %p229 = scmp.ne.s32.totalorder %s221, %s223
      %p230 = scmp.eq.s32.totalorder %s24, 1
      %p231 = por %p229, %p230
      %p232 = scmp.ne.s32.totalorder %s223, %s224
      %p233 = scmp.eq.s32.totalorder %s24, 0
      %p234 = por %p232, %p233
      %p235 = scmp.ne.s32.totalorder %s223, %s224
      %p236 = scmp.eq.s32.totalorder %s25, 1
      %p237 = por %p235, %p236
      %p239 = scmp.ne.s32.totalorder %s224, %s238
      %p240 = scmp.eq.s32.totalorder %s25, 0
      %p241 = por %p239, %p240
      %s243 = sadd.s32 %s242, 1
      %p246 = scmp.eq.s32.totalorder %s19, 1
      %p247 = scmp.ne.s32.totalorder %s242, %s244
      %p248 = scmp.eq.s32.totalorder %s19, 0
      %p249 = por %p247, %p248
      %p250 = scmp.ne.s32.totalorder %s242, %s244
      %p251 = scmp.eq.s32.totalorder %s24, 1
      %p252 = por %p250, %p251
      %p253 = scmp.ne.s32.totalorder %s244, %s245
      %p254 = scmp.eq.s32.totalorder %s24, 0
      %p255 = por %p253, %p254
      %p256 = scmp.ne.s32.totalorder %s244, %s245
      %p257 = scmp.eq.s32.totalorder %s25, 1
      %p258 = por %p256, %p257
      %p260 = scmp.ne.s32.totalorder %s245, %s259
      %p261 = scmp.eq.s32.totalorder %s25, 0
      %p262 = por %p260, %p261
      %s264 = sadd.s32 %s263, 1
      %p267 = scmp.eq.s32.totalorder %s19, 1
      %p268 = scmp.ne.s32.totalorder %s263, %s265
      %p269 = scmp.eq.s32.totalorder %s19, 0
      %p270 = por %p268, %p269
      %p271 = scmp.ne.s32.totalorder %s263, %s265
      %p272 = scmp.eq.s32.totalorder %s24, 1
      %p273 = por %p271, %p272
      %p274 = scmp.ne.s32.totalorder %s265, %s266
      %p275 = scmp.eq.s32.totalorder %s24, 0
      %p276 = por %p274, %p275
      %p277 = scmp.ne.s32.totalorder %s265, %s266
      %p278 = scmp.eq.s32.totalorder %s25, 1
      %p279 = por %p277, %p278
      %p281 = scmp.ne.s32.totalorder %s266, %s280
      %p282 = scmp.eq.s32.totalorder %s25, 0
      %p283 = por %p281, %p282
      %s284 = ssub.s32 %s19, %s26
      %p285 = scmp.eq.s32.totalorder %s284, 0
      %s287 = sadd.s32 %s286, 1
      %s288 = scalar_select %p285, %s286, %s287
      %p291 = pneg %p285
      %p292 = scmp.eq.s32.totalorder %s19, 1
      %p293 = por %p291, %p292
      %p294 = scmp.ne.s32.totalorder %s286, %s289
      %p295 = scmp.eq.s32.totalorder %s19, 0
      %p296 = por %p294, %p295
      %p297 = scmp.ne.s32.totalorder %s286, %s289
      %p298 = scmp.eq.s32.totalorder %s24, 1
      %p299 = por %p297, %p298
      %p300 = scmp.ne.s32.totalorder %s289, %s290
      %p301 = scmp.eq.s32.totalorder %s24, 0
      %p302 = por %p300, %p301
      %p303 = scmp.ne.s32.totalorder %s289, %s290
      %p304 = scmp.eq.s32.totalorder %s25, 1
      %p305 = por %p303, %p304
      %p307 = scmp.ne.s32.totalorder %s290, %s306
      %p308 = scmp.eq.s32.totalorder %s25, 0
      %p309 = por %p307, %p308
      %p310 = scmp.le.s32.totalorder 1, %s19
      %p311 = scmp.lt.s32.totalorder %s19, 3
      %p312 = pnand %p310, %p311
      %p313 = pneg %p312
      // Predicated region
      $region9: #{residual_block.1} parent=5 // pred_check
        _
      $region10: #{residual_block.1} parent=5 // pred_check_branch
        %315 = sbr.rel (%p312) target = $region12
      $region11: #{residual_block.1} parent=5 // pred_region
        %s316 = ssub.s32 %s19, 1
        // Predicated region
        $region13: #{residual_block.1} parent=11 // pred_check
          %p317 = pneg %p66
        $region14: #{residual_block.1} parent=11 // pred_check_branch
          %319 = sbr.rel (%p317) target = $region16
        $region15: #{residual_block.1} parent=11 // pred_region
          _
        $region16: #{residual_block.1} parent=11 // pred_fallthru
          _
        // Predicated region
        $region17: #{residual_block.1} parent=11 // pred_check
          %p320 = pneg %p87
        $region18: #{residual_block.1} parent=11 // pred_check_branch
          %322 = sbr.rel (%p320) target = $region20
        $region19: #{residual_block.1} parent=11 // pred_region
          _
        $region20: #{residual_block.1} parent=11 // pred_fallthru
          _
        // Predicated region
        $region21: #{residual_block.1} parent=11 // pred_check
          %p323 = pneg %p108
        $region22: #{residual_block.1} parent=11 // pred_check_branch
          %325 = sbr.rel (%p323) target = $region24
        $region23: #{residual_block.1} parent=11 // pred_region
          _
        $region24: #{residual_block.1} parent=11 // pred_fallthru
          _
        // Predicated region
        $region25: #{residual_block.1} parent=11 // pred_check
          %p326 = pneg %p129
        $region26: #{residual_block.1} parent=11 // pred_check_branch
          %328 = sbr.rel (%p326) target = $region28
        $region27: #{residual_block.1} parent=11 // pred_region
          %s330 = ssub.s32 4608, 4608
          %331 = vsyncadd [#allocation5], %s330
          %s332 = sshll.u32 [#allocation4], 4
          %s333 = int_to_ptr.vmem [resolvable:$true] %s332
          %338 = dma.hbm_to_vmem [thread:$0]  %s4, 4608, %s333, [#allocation5], 128, 128, 8
        $region28: #{residual_block.1} parent=11 // pred_fallthru
          _
        // Predicated region
        $region29: #{residual_block.1} parent=11 // pred_check
          %p339 = pneg %p150
        $region30: #{residual_block.1} parent=11 // pred_check_branch
          %341 = sbr.rel (%p339) target = $region32
        $region31: #{residual_block.1} parent=11 // pred_region
          _
        $region32: #{residual_block.1} parent=11 // pred_fallthru
          _
        // Predicated region
        $region33: #{residual_block.1} parent=11 // pred_check
          %p342 = pneg %p171
        $region34: #{residual_block.1} parent=11 // pred_check_branch
          %344 = sbr.rel (%p342) target = $region36
        $region35: #{residual_block.1} parent=11 // pred_region
          _
        $region36: #{residual_block.1} parent=11 // pred_fallthru
          _
        // Predicated region
        $region37: #{residual_block.1} parent=11 // pred_check
          %p345 = pneg %p192
        $region38: #{residual_block.1} parent=11 // pred_check_branch
          %347 = sbr.rel (%p345) target = $region40
        $region39: #{residual_block.1} parent=11 // pred_region
          _
        $region40: #{residual_block.1} parent=11 // pred_fallthru
          _
        // Predicated region
        $region41: #{residual_block.1} parent=11 // pred_check
          %p348 = pneg %p213
        $region42: #{residual_block.1} parent=11 // pred_check_branch
          %350 = sbr.rel (%p348) target = $region44
        $region43: #{residual_block.1} parent=11 // pred_region
          _
        $region44: #{residual_block.1} parent=11 // pred_fallthru
          _
        // Predicated region
        $region45: #{residual_block.1} parent=11 // pred_check
          %p351 = pneg %p234
        $region46: #{residual_block.1} parent=11 // pred_check_branch
          %353 = sbr.rel (%p351) target = $region48
        $region47: #{residual_block.1} parent=11 // pred_region
          _
        $region48: #{residual_block.1} parent=11 // pred_fallthru
          _
        // Predicated region
        $region49: #{residual_block.1} parent=11 // pred_check
          %p354 = pneg %p255
        $region50: #{residual_block.1} parent=11 // pred_check_branch
          %356 = sbr.rel (%p354) target = $region52
        $region51: #{residual_block.1} parent=11 // pred_region
          _
        $region52: #{residual_block.1} parent=11 // pred_fallthru
          _
        // Predicated region
        $region53: #{residual_block.1} parent=11 // pred_check
          %p357 = pneg %p276
        $region54: #{residual_block.1} parent=11 // pred_check_branch
          %359 = sbr.rel (%p357) target = $region56
        $region55: #{residual_block.1} parent=11 // pred_region
          _
        $region56: #{residual_block.1} parent=11 // pred_fallthru
          _
      $region12: #{residual_block.1} parent=5 // pred_fallthru
        _
      %p360 = scmp.lt.s32.totalorder %s19, 2
      // Predicated region
      $region57: #{residual_block.1} parent=5 // pred_check
        %p361 = pneg %p360
      $region58: #{residual_block.1} parent=5 // pred_check_branch
        %363 = sbr.rel (%p361) target = $region60
      $region59: #{residual_block.1} parent=5 // pred_region
        // Predicated region
        $region61: #{residual_block.1} parent=59 // pred_check
          %p364 = pneg %p39
        $region62: #{residual_block.1} parent=59 // pred_check_branch
          %366 = sbr.rel (%p364) target = $region64
        $region63: #{residual_block.1} parent=59 // pred_region
          %p367 = scmp.lt.s32.totalorder %s19, 1
          %s368 = scalar_select %p367, %s19, 1
          %s369 = smul.addr %s368, 8
          %s370 = smul.addr %s369, 8
          %s371 = scalar_lea.vmem %s0, %s370
        $region64: #{residual_block.1} parent=59 // pred_fallthru
          _
      $region60: #{residual_block.1} parent=5 // pred_fallthru
        _
      %p372 = scmp.le.s32.totalorder 1, %s19
      %p373 = scmp.lt.s32.totalorder %s19, 3
      %p374 = pnand %p372, %p373
      %p375 = pneg %p374
      // Predicated region
      $region65: #{residual_block.1} parent=5 // pred_check
        _
      $region66: #{residual_block.1} parent=5 // pred_check_branch
        %377 = sbr.rel (%p374) target = $region68
      $region67: #{residual_block.1} parent=5 // pred_region
        %s378 = ssub.s32 %s19, 1
        // Predicated region
        $region69: #{residual_block.1} parent=67 // pred_check
          %p379 = pneg %p129
        $region70: #{residual_block.1} parent=67 // pred_check_branch
          %381 = sbr.rel (%p379) target = $region72
        $region71: #{residual_block.1} parent=67 // pred_region
          %382 = dma.done [#allocation5], 4608
        $region72: #{residual_block.1} parent=67 // pred_fallthru
          _
        %p383 = scmp.lt.s32.totalorder %s24, 1
        %s384 = scalar_select %p383, %s24, 1
        %s385 = smul.addr %s384, 8
        %s386 = smul.addr %s385, 8
        %s387 = scalar_lea.vmem %s0, %s386
        %p388 = pneg %p45
        %p389 = pneg %p42
        %p390 = pneg %p66
        %p391 = pneg %p63
        %p392 = pneg %p87
        %p393 = pneg %p84
        %p394 = pneg %p108
        %p395 = pneg %p105
        %p396 = pneg %p129
        %p397 = pneg %p126
        %p398 = pneg %p150
        %p399 = pneg %p147
        %p400 = pneg %p171
        %p401 = pneg %p168
        %p402 = pneg %p192
        %p403 = pneg %p189
        %p404 = pneg %p213
        %p405 = pneg %p210
        %p406 = pneg %p234
        %p407 = pneg %p231
        %p408 = pneg %p255
        %p409 = pneg %p252
        %p410 = pneg %p276
        %p411 = pneg %p273
        %p412 = pneg %p302
        %p413 = pneg %p299
        %p414 = scmp.lt.s32.totalorder %s24, 1
        %s415 = scalar_select %p414, %s24, 1
        %s416 = smul.addr %s415, 16
        %s417 = smul.addr %s416, 8
        %s418 = scalar_lea.vmem %s12, %s417
        %p419 = scmp.lt.s32.totalorder %s24, 1
        %s420 = scalar_select %p419, %s24, 1
        %s421 = smul.addr %s420, 8
        %s422 = smul.addr %s421, 8
        %s423 = scalar_lea.vmem %s0, %s422
        %p424 = scmp.lt.s32.totalorder %s24, 1
        %s425 = scalar_select %p424, %s24, 1
        %s426 = smul.addr %s425, 16
        %s427 = smul.addr %s426, 8
        %s428 = scalar_lea.vmem %s12, %s427
        %v429 = vld [vmem:[%s423] sm:$0xff]
        %v430 = vld [vmem:[%s423 + $0x8] sm:$0xff]
        %v431 = vld [vmem:[%s423 + $0x10] sm:$0xff]
        %v432 = vld [vmem:[%s423 + $0x18] sm:$0xff]
        %v433 = vld [vmem:[%s423 + $0x20] sm:$0xff]
        %v434 = vld [vmem:[%s423 + $0x28] sm:$0xff]
        %v435 = vld [vmem:[%s423 + $0x30] sm:$0xff]
        %v436 = vld [vmem:[%s423 + $0x38] sm:$0xff]
        %437 = vxpose.xlu0.b32.start [1/16] %v429, 128
        %438 = vxpose.xlu0.b32.cont [2/16] %v431, 128
        %439 = vxpose.xlu0.b32.cont [3/16] %v433, 128
        %440 = vxpose.xlu0.b32.cont [4/16] %v435, 128
        %441 = vxpose.xlu0.b32.cont [5/16] 0.0, 128
        %442 = vxpose.xlu0.b32.cont [6/16] 0.0, 128
        %443 = vxpose.xlu0.b32.cont [7/16] 0.0, 128
        %444 = vxpose.xlu0.b32.cont [8/16] 0.0, 128
        %445 = vxpose.xlu0.b32.cont [9/16] 0.0, 128
        %446 = vxpose.xlu0.b32.cont [10/16] 0.0, 128
        %447 = vxpose.xlu0.b32.cont [11/16] 0.0, 128
        %448 = vxpose.xlu0.b32.cont [12/16] 0.0, 128
        %449 = vxpose.xlu0.b32.cont [13/16] 0.0, 128
        %450 = vxpose.xlu0.b32.cont [14/16] 0.0, 128
        %451 = vxpose.xlu0.b32.cont [15/16] 0.0, 128
        %452 = vxpose.xlu0.b32.end [16/16] 0.0, 128
        %v453 = vpop.trf.xlu0
        %v454 = vpop.trf.xlu0
        %v455 = vpop.trf.xlu0
        %v456 = vpop.trf.xlu0
        %v457 = vpop.trf.xlu0
        %v458 = vpop.trf.xlu0
        %v459 = vpop.trf.xlu0
        %v460 = vpop.trf.xlu0
        %v461 = vpop.trf.xlu0
        %v462 = vpop.trf.xlu0
        %v463 = vpop.trf.xlu0
        %v464 = vpop.trf.xlu0
        %v465 = vpop.trf.xlu0
        %v466 = vpop.trf.xlu0
        %v467 = vpop.trf.xlu0
        %v468 = vpop.trf.xlu0
        %469 = vxpose.xlu0.b32.start [1/16] %v430, 128
        %470 = vxpose.xlu0.b32.cont [2/16] %v432, 128
        %471 = vxpose.xlu0.b32.cont [3/16] %v434, 128
        %472 = vxpose.xlu0.b32.cont [4/16] %v436, 128
        %473 = vxpose.xlu0.b32.cont [5/16] 0.0, 128
        %474 = vxpose.xlu0.b32.cont [6/16] 0.0, 128
        %475 = vxpose.xlu0.b32.cont [7/16] 0.0, 128
        %476 = vxpose.xlu0.b32.cont [8/16] 0.0, 128
        %477 = vxpose.xlu0.b32.cont [9/16] 0.0, 128
        %478 = vxpose.xlu0.b32.cont [10/16] 0.0, 128
        %479 = vxpose.xlu0.b32.cont [11/16] 0.0, 128
        %480 = vxpose.xlu0.b32.cont [12/16] 0.0, 128
        %481 = vxpose.xlu0.b32.cont [13/16] 0.0, 128
        %482 = vxpose.xlu0.b32.cont [14/16] 0.0, 128
        %483 = vxpose.xlu0.b32.cont [15/16] 0.0, 128
        %484 = vxpose.xlu0.b32.end [16/16] 0.0, 128
        %v485 = vpop.trf.xlu0
        %v486 = vpop.trf.xlu0
        %v487 = vpop.trf.xlu0
        %v488 = vpop.trf.xlu0
        %v489 = vpop.trf.xlu0
        %v490 = vpop.trf.xlu0
        %v491 = vpop.trf.xlu0
        %v492 = vpop.trf.xlu0
        %v493 = vpop.trf.xlu0
        %v494 = vpop.trf.xlu0
        %v495 = vpop.trf.xlu0
        %v496 = vpop.trf.xlu0
        %v497 = vpop.trf.xlu0
        %v498 = vpop.trf.xlu0
        %v499 = vpop.trf.xlu0
        %v500 = vpop.trf.xlu0
        %v501 = vlaneseq
        %v502 = vshrl.u32 %v501, 7
        %v503 = vadd.s32 %v502, 8
        %v504 = vadd.s32 %v502, 16
        %v505 = vadd.s32 %v502, 24
        %v506 = vadd.s32 %v502, 32
        %v507 = vadd.s32 %v502, 40
        %v508 = vadd.s32 %v502, 48
        %v509 = vadd.s32 %v502, 56
        %v510 = vadd.s32 %v502, 64
        %v511 = vadd.s32 %v502, 72
        %v512 = vadd.s32 %v502, 80
        %v513 = vadd.s32 %v502, 88
        %v514 = vadd.s32 %v502, 96
        %v515 = vadd.s32 %v502, 104
        %v516 = vadd.s32 %v502, 112
        %v517 = vadd.s32 %v502, 120
        %v518 = vadd.s32 %v502, 128
        %v519 = vadd.s32 %v502, 136
        %v520 = vadd.s32 %v502, 144
        %v521 = vadd.s32 %v502, 152
        %v522 = vadd.s32 %v502, 160
        %v523 = vadd.s32 %v502, 168
        %v524 = vadd.s32 %v502, 176
        %v525 = vadd.s32 %v502, 184
        %v526 = vadd.s32 %v502, 192
        %v527 = vadd.s32 %v502, 200
        %v528 = vadd.s32 %v502, 208
        %v529 = vadd.s32 %v502, 216
        %v530 = vadd.s32 %v502, 224
        %v531 = vadd.s32 %v502, 232
        %v532 = vadd.s32 %v502, 240
        %v533 = vadd.s32 %v502, 248
        %vm534 = vcmp.lt.s32.totalorder %v502, 0
        %v535 = vsub.s32 0, %v502
        %v536 = vsel %vm534, %v535, %v502
        %v537 = vshrl.u32 %v536, 4
        %v538 = vand.u32 %v536, 15
        %v539 = vsub.s32 0, %v538
        %v540 = vsel %vm534, %v539, %v538
        %vm541 = vcmp.lt.s32.totalorder %v503, 0
        %v542 = vsub.s32 0, %v503
        %v543 = vsel %vm541, %v542, %v503
        %v544 = vshrl.u32 %v543, 4
        %v545 = vand.u32 %v543, 15
        %v546 = vsub.s32 0, %v545
        %v547 = vsel %vm541, %v546, %v545
        %vm548 = vcmp.lt.s32.totalorder %v504, 0
        %v549 = vsub.s32 0, %v504
        %v550 = vsel %vm548, %v549, %v504
        %v551 = vshrl.u32 %v550, 4
        %v552 = vand.u32 %v550, 15
        %v553 = vsub.s32 0, %v552
        %v554 = vsel %vm548, %v553, %v552
        %vm555 = vcmp.lt.s32.totalorder %v505, 0
        %v556 = vsub.s32 0, %v505
        %v557 = vsel %vm555, %v556, %v505
        %v558 = vshrl.u32 %v557, 4
        %v559 = vand.u32 %v557, 15
        %v560 = vsub.s32 0, %v559
        %v561 = vsel %vm555, %v560, %v559
        %vm562 = vcmp.lt.s32.totalorder %v506, 0
        %v563 = vsub.s32 0, %v506
        %v564 = vsel %vm562, %v563, %v506
        %v565 = vshrl.u32 %v564, 4
        %v566 = vand.u32 %v564, 15
        %v567 = vsub.s32 0, %v566
        %v568 = vsel %vm562, %v567, %v566
        %vm569 = vcmp.lt.s32.totalorder %v507, 0
        %v570 = vsub.s32 0, %v507
        %v571 = vsel %vm569, %v570, %v507
        %v572 = vshrl.u32 %v571, 4
        %v573 = vand.u32 %v571, 15
        %v574 = vsub.s32 0, %v573
        %v575 = vsel %vm569, %v574, %v573
        %vm576 = vcmp.lt.s32.totalorder %v508, 0
        %v577 = vsub.s32 0, %v508
        %v578 = vsel %vm576, %v577, %v508
        %v579 = vshrl.u32 %v578, 4
        %v580 = vand.u32 %v578, 15
        %v581 = vsub.s32 0, %v580
        %v582 = vsel %vm576, %v581, %v580
        %vm583 = vcmp.lt.s32.totalorder %v509, 0
        %v584 = vsub.s32 0, %v509
        %v585 = vsel %vm583, %v584, %v509
        %v586 = vshrl.u32 %v585, 4
        %v587 = vand.u32 %v585, 15
        %v588 = vsub.s32 0, %v587
        %v589 = vsel %vm583, %v588, %v587
        %vm590 = vcmp.lt.s32.totalorder %v510, 0
        %v591 = vsub.s32 0, %v510
        %v592 = vsel %vm590, %v591, %v510
        %v593 = vshrl.u32 %v592, 4
        %v594 = vand.u32 %v592, 15
        %v595 = vsub.s32 0, %v594
        %v596 = vsel %vm590, %v595, %v594
        %vm597 = vcmp.lt.s32.totalorder %v511, 0
        %v598 = vsub.s32 0, %v511
        %v599 = vsel %vm597, %v598, %v511
        %v600 = vshrl.u32 %v599, 4
        %v601 = vand.u32 %v599, 15
        %v602 = vsub.s32 0, %v601
        %v603 = vsel %vm597, %v602, %v601
        %vm604 = vcmp.lt.s32.totalorder %v512, 0
        %v605 = vsub.s32 0, %v512
        %v606 = vsel %vm604, %v605, %v512
        %v607 = vshrl.u32 %v606, 4
        %v608 = vand.u32 %v606, 15
        %v609 = vsub.s32 0, %v608
        %v610 = vsel %vm604, %v609, %v608
        %vm611 = vcmp.lt.s32.totalorder %v513, 0
        %v612 = vsub.s32 0, %v513
        %v613 = vsel %vm611, %v612, %v513
        %v614 = vshrl.u32 %v613, 4
        %v615 = vand.u32 %v613, 15
        %v616 = vsub.s32 0, %v615
        %v617 = vsel %vm611, %v616, %v615
        %vm618 = vcmp.lt.s32.totalorder %v514, 0
        %v619 = vsub.s32 0, %v514
        %v620 = vsel %vm618, %v619, %v514
        %v621 = vshrl.u32 %v620, 4
        %v622 = vand.u32 %v620, 15
        %v623 = vsub.s32 0, %v622
        %v624 = vsel %vm618, %v623, %v622
        %vm625 = vcmp.lt.s32.totalorder %v515, 0
        %v626 = vsub.s32 0, %v515
        %v627 = vsel %vm625, %v626, %v515
        %v628 = vshrl.u32 %v627, 4
        %v629 = vand.u32 %v627, 15
        %v630 = vsub.s32 0, %v629
        %v631 = vsel %vm625, %v630, %v629
        %vm632 = vcmp.lt.s32.totalorder %v516, 0
        %v633 = vsub.s32 0, %v516
        %v634 = vsel %vm632, %v633, %v516
        %v635 = vshrl.u32 %v634, 4
        %v636 = vand.u32 %v634, 15
        %v637 = vsub.s32 0, %v636
        %v638 = vsel %vm632, %v637, %v636
        %vm639 = vcmp.lt.s32.totalorder %v517, 0
        %v640 = vsub.s32 0, %v517
        %v641 = vsel %vm639, %v640, %v517
        %v642 = vshrl.u32 %v641, 4
        %v643 = vand.u32 %v641, 15
        %v644 = vsub.s32 0, %v643
        %v645 = vsel %vm639, %v644, %v643
        %vm646 = vcmp.lt.s32.totalorder %v518, 0
        %v647 = vsub.s32 0, %v518
        %v648 = vsel %vm646, %v647, %v518
        %v649 = vshrl.u32 %v648, 4
        %v650 = vand.u32 %v648, 15
        %v651 = vsub.s32 0, %v650
        %v652 = vsel %vm646, %v651, %v650
        %vm653 = vcmp.lt.s32.totalorder %v519, 0
        %v654 = vsub.s32 0, %v519
        %v655 = vsel %vm653, %v654, %v519
        %v656 = vshrl.u32 %v655, 4
        %v657 = vand.u32 %v655, 15
        %v658 = vsub.s32 0, %v657
        %v659 = vsel %vm653, %v658, %v657
        %vm660 = vcmp.lt.s32.totalorder %v520, 0
        %v661 = vsub.s32 0, %v520
        %v662 = vsel %vm660, %v661, %v520
        %v663 = vshrl.u32 %v662, 4
        %v664 = vand.u32 %v662, 15
        %v665 = vsub.s32 0, %v664
        %v666 = vsel %vm660, %v665, %v664
        %vm667 = vcmp.lt.s32.totalorder %v521, 0
        %v668 = vsub.s32 0, %v521
        %v669 = vsel %vm667, %v668, %v521
        %v670 = vshrl.u32 %v669, 4
        %v671 = vand.u32 %v669, 15
        %v672 = vsub.s32 0, %v671
        %v673 = vsel %vm667, %v672, %v671
        %vm674 = vcmp.lt.s32.totalorder %v522, 0
        %v675 = vsub.s32 0, %v522
        %v676 = vsel %vm674, %v675, %v522
        %v677 = vshrl.u32 %v676, 4
        %v678 = vand.u32 %v676, 15
        %v679 = vsub.s32 0, %v678
        %v680 = vsel %vm674, %v679, %v678
        %vm681 = vcmp.lt.s32.totalorder %v523, 0
        %v682 = vsub.s32 0, %v523
        %v683 = vsel %vm681, %v682, %v523
        %v684 = vshrl.u32 %v683, 4
        %v685 = vand.u32 %v683, 15
        %v686 = vsub.s32 0, %v685
        %v687 = vsel %vm681, %v686, %v685
        %vm688 = vcmp.lt.s32.totalorder %v524, 0
        %v689 = vsub.s32 0, %v524
        %v690 = vsel %vm688, %v689, %v524
        %v691 = vshrl.u32 %v690, 4
        %v692 = vand.u32 %v690, 15
        %v693 = vsub.s32 0, %v692
        %v694 = vsel %vm688, %v693, %v692
        %vm695 = vcmp.lt.s32.totalorder %v525, 0
        %v696 = vsub.s32 0, %v525
        %v697 = vsel %vm695, %v696, %v525
        %v698 = vshrl.u32 %v697, 4
        %v699 = vand.u32 %v697, 15
        %v700 = vsub.s32 0, %v699
        %v701 = vsel %vm695, %v700, %v699
        %vm702 = vcmp.lt.s32.totalorder %v526, 0
        %v703 = vsub.s32 0, %v526
        %v704 = vsel %vm702, %v703, %v526
        %v705 = vshrl.u32 %v704, 4
        %v706 = vand.u32 %v704, 15
        %v707 = vsub.s32 0, %v706
        %v708 = vsel %vm702, %v707, %v706
        %vm709 = vcmp.lt.s32.totalorder %v527, 0
        %v710 = vsub.s32 0, %v527
        %v711 = vsel %vm709, %v710, %v527
        %v712 = vshrl.u32 %v711, 4
        %v713 = vand.u32 %v711, 15
        %v714 = vsub.s32 0, %v713
        %v715 = vsel %vm709, %v714, %v713
        %vm716 = vcmp.lt.s32.totalorder %v528, 0
        %v717 = vsub.s32 0, %v528
        %v718 = vsel %vm716, %v717, %v528
        %v719 = vshrl.u32 %v718, 4
        %v720 = vand.u32 %v718, 15
        %v721 = vsub.s32 0, %v720
        %v722 = vsel %vm716, %v721, %v720
        %vm723 = vcmp.lt.s32.totalorder %v529, 0
        %v724 = vsub.s32 0, %v529
        %v725 = vsel %vm723, %v724, %v529
        %v726 = vshrl.u32 %v725, 4
        %v727 = vand.u32 %v725, 15
        %v728 = vsub.s32 0, %v727
        %v729 = vsel %vm723, %v728, %v727
        %vm730 = vcmp.lt.s32.totalorder %v530, 0
        %v731 = vsub.s32 0, %v530
        %v732 = vsel %vm730, %v731, %v530
        %v733 = vshrl.u32 %v732, 4
        %v734 = vand.u32 %v732, 15
        %v735 = vsub.s32 0, %v734
        %v736 = vsel %vm730, %v735, %v734
        %vm737 = vcmp.lt.s32.totalorder %v531, 0
        %v738 = vsub.s32 0, %v531
        %v739 = vsel %vm737, %v738, %v531
        %v740 = vshrl.u32 %v739, 4
        %v741 = vand.u32 %v739, 15
        %v742 = vsub.s32 0, %v741
        %v743 = vsel %vm737, %v742, %v741
        %vm744 = vcmp.lt.s32.totalorder %v532, 0
        %v745 = vsub.s32 0, %v532
        %v746 = vsel %vm744, %v745, %v532
        %v747 = vshrl.u32 %v746, 4
        %v748 = vand.u32 %v746, 15
        %v749 = vsub.s32 0, %v748
        %v750 = vsel %vm744, %v749, %v748
        %vm751 = vcmp.lt.s32.totalorder %v533, 0
        %v752 = vsub.s32 0, %v533
        %v753 = vsel %vm751, %v752, %v533
        %v754 = vshrl.u32 %v753, 4
        %v755 = vand.u32 %v753, 15
        %v756 = vsub.s32 0, %v755
        %v757 = vsel %vm751, %v756, %v755
        %vm758 = vcmp.ne.s32.totalorder %v540, 0
        %vm759 = vcmp.ne.s32.totalorder %v547, 0
        %vm760 = vcmp.ne.s32.totalorder %v554, 0
        %vm761 = vcmp.ne.s32.totalorder %v561, 0
        %vm762 = vcmp.ne.s32.totalorder %v568, 0
        %vm763 = vcmp.ne.s32.totalorder %v575, 0
        %vm764 = vcmp.ne.s32.totalorder %v582, 0
        %vm765 = vcmp.ne.s32.totalorder %v589, 0
        %vm766 = vcmp.ne.s32.totalorder %v596, 0
        %vm767 = vcmp.ne.s32.totalorder %v603, 0
        %vm768 = vcmp.ne.s32.totalorder %v610, 0
        %vm769 = vcmp.ne.s32.totalorder %v617, 0
        %vm770 = vcmp.ne.s32.totalorder %v624, 0
        %vm771 = vcmp.ne.s32.totalorder %v631, 0
        %vm772 = vcmp.ne.s32.totalorder %v638, 0
        %vm773 = vcmp.ne.s32.totalorder %v645, 0
        %vm774 = vcmp.ne.s32.totalorder %v652, 0
        %vm775 = vcmp.ne.s32.totalorder %v659, 0
        %vm776 = vcmp.ne.s32.totalorder %v666, 0
        %vm777 = vcmp.ne.s32.totalorder %v673, 0
        %vm778 = vcmp.ne.s32.totalorder %v680, 0
        %vm779 = vcmp.ne.s32.totalorder %v687, 0
        %vm780 = vcmp.ne.s32.totalorder %v694, 0
        %vm781 = vcmp.ne.s32.totalorder %v701, 0
        %vm782 = vcmp.ne.s32.totalorder %v708, 0
        %vm783 = vcmp.ne.s32.totalorder %v715, 0
        %vm784 = vcmp.ne.s32.totalorder %v722, 0
        %vm785 = vcmp.ne.s32.totalorder %v729, 0
        %vm786 = vcmp.ne.s32.totalorder %v736, 0
        %vm787 = vcmp.ne.s32.totalorder %v743, 0
        %vm788 = vcmp.ne.s32.totalorder %v750, 0
        %vm789 = vcmp.ne.s32.totalorder %v757, 0
        %vm790 = vcmp.lt.s32.totalorder %v540, 0
        %vm791 = vcmp.lt.s32.totalorder %v547, 0
        %vm792 = vcmp.lt.s32.totalorder %v554, 0
        %vm793 = vcmp.lt.s32.totalorder %v561, 0
        %vm794 = vcmp.lt.s32.totalorder %v568, 0
        %vm795 = vcmp.lt.s32.totalorder %v575, 0
        %vm796 = vcmp.lt.s32.totalorder %v582, 0
        %vm797 = vcmp.lt.s32.totalorder %v589, 0
        %vm798 = vcmp.lt.s32.totalorder %v596, 0
        %vm799 = vcmp.lt.s32.totalorder %v603, 0
        %vm800 = vcmp.lt.s32.totalorder %v610, 0
        %vm801 = vcmp.lt.s32.totalorder %v617, 0
        %vm802 = vcmp.lt.s32.totalorder %v624, 0
        %vm803 = vcmp.lt.s32.totalorder %v631, 0
        %vm804 = vcmp.lt.s32.totalorder %v638, 0
        %vm805 = vcmp.lt.s32.totalorder %v645, 0
        %vm806 = vcmp.lt.s32.totalorder %v652, 0
        %vm807 = vcmp.lt.s32.totalorder %v659, 0
        %vm808 = vcmp.lt.s32.totalorder %v666, 0
        %vm809 = vcmp.lt.s32.totalorder %v673, 0
        %vm810 = vcmp.lt.s32.totalorder %v680, 0
        %vm811 = vcmp.lt.s32.totalorder %v687, 0
        %vm812 = vcmp.lt.s32.totalorder %v694, 0
        %vm813 = vcmp.lt.s32.totalorder %v701, 0
        %vm814 = vcmp.lt.s32.totalorder %v708, 0
        %vm815 = vcmp.lt.s32.totalorder %v715, 0
        %vm816 = vcmp.lt.s32.totalorder %v722, 0
        %vm817 = vcmp.lt.s32.totalorder %v729, 0
        %vm818 = vcmp.lt.s32.totalorder %v736, 0
        %vm819 = vcmp.lt.s32.totalorder %v743, 0
        %vm820 = vcmp.lt.s32.totalorder %v750, 0
        %vm821 = vcmp.lt.s32.totalorder %v757, 0
        %vm822 = vmand %vm790, %vm758
        %vm823 = vmand %vm791, %vm759
        %vm824 = vmand %vm792, %vm760
        %vm825 = vmand %vm793, %vm761
        %vm826 = vmand %vm794, %vm762
        %vm827 = vmand %vm795, %vm763
        %vm828 = vmand %vm796, %vm764
        %vm829 = vmand %vm797, %vm765
        %vm830 = vmand %vm798, %vm766
        %vm831 = vmand %vm799, %vm767
        %vm832 = vmand %vm800, %vm768
        %vm833 = vmand %vm801, %vm769
        %vm834 = vmand %vm802, %vm770
        %vm835 = vmand %vm803, %vm771
        %vm836 = vmand %vm804, %vm772
        %vm837 = vmand %vm805, %vm773
        %vm838 = vmand %vm806, %vm774
        %vm839 = vmand %vm807, %vm775
        %vm840 = vmand %vm808, %vm776
        %vm841 = vmand %vm809, %vm777
        %vm842 = vmand %vm810, %vm778
        %vm843 = vmand %vm811, %vm779
        %vm844 = vmand %vm812, %vm780
        %vm845 = vmand %vm813, %vm781
        %vm846 = vmand %vm814, %vm782
        %vm847 = vmand %vm815, %vm783
        %vm848 = vmand %vm816, %vm784
        %vm849 = vmand %vm817, %vm785
        %vm850 = vmand %vm818, %vm786
        %vm851 = vmand %vm819, %vm787
        %vm852 = vmand %vm820, %vm788
        %vm853 = vmand %vm821, %vm789
        %v854 = vadd.s32 %v540, 16
        %v855 = vadd.s32 %v547, 16
        %v856 = vadd.s32 %v554, 16
        %v857 = vadd.s32 %v561, 16
        %v858 = vadd.s32 %v568, 16
        %v859 = vadd.s32 %v575, 16
        %v860 = vadd.s32 %v582, 16
        %v861 = vadd.s32 %v589, 16
        %v862 = vadd.s32 %v596, 16
        %v863 = vadd.s32 %v603, 16
        %v864 = vadd.s32 %v610, 16
        %v865 = vadd.s32 %v617, 16
        %v866 = vadd.s32 %v624, 16
        %v867 = vadd.s32 %v631, 16
        %v868 = vadd.s32 %v638, 16
        %v869 = vadd.s32 %v645, 16
        %v870 = vadd.s32 %v652, 16
        %v871 = vadd.s32 %v659, 16
        %v872 = vadd.s32 %v666, 16
        %v873 = vadd.s32 %v673, 16
        %v874 = vadd.s32 %v680, 16
        %v875 = vadd.s32 %v687, 16
        %v876 = vadd.s32 %v694, 16
        %v877 = vadd.s32 %v701, 16
        %v878 = vadd.s32 %v708, 16
        %v879 = vadd.s32 %v715, 16
        %v880 = vadd.s32 %v722, 16
        %v881 = vadd.s32 %v729, 16
        %v882 = vadd.s32 %v736, 16
        %v883 = vadd.s32 %v743, 16
        %v884 = vadd.s32 %v750, 16
        %v885 = vadd.s32 %v757, 16
        %v886 = vsel %vm822, %v854, %v540
        %v887 = vsel %vm823, %v855, %v547
        %v888 = vsel %vm824, %v856, %v554
        %v889 = vsel %vm825, %v857, %v561
        %v890 = vsel %vm826, %v858, %v568
        %v891 = vsel %vm827, %v859, %v575
        %v892 = vsel %vm828, %v860, %v582
        %v893 = vsel %vm829, %v861, %v589
        %v894 = vsel %vm830, %v862, %v596
        %v895 = vsel %vm831, %v863, %v603
        %v896 = vsel %vm832, %v864, %v610
        %v897 = vsel %vm833, %v865, %v617
        %v898 = vsel %vm834, %v866, %v624
        %v899 = vsel %vm835, %v867, %v631
        %v900 = vsel %vm836, %v868, %v638
        %v901 = vsel %vm837, %v869, %v645
        %v902 = vsel %vm838, %v870, %v652
        %v903 = vsel %vm839, %v871, %v659
        %v904 = vsel %vm840, %v872, %v666
        %v905 = vsel %vm841, %v873, %v673
        %v906 = vsel %vm842, %v874, %v680
        %v907 = vsel %vm843, %v875, %v687
        %v908 = vsel %vm844, %v876, %v694
        %v909 = vsel %vm845, %v877, %v701
        %v910 = vsel %vm846, %v878, %v708
        %v911 = vsel %vm847, %v879, %v715
        %v912 = vsel %vm848, %v880, %v722
        %v913 = vsel %vm849, %v881, %v729
        %v914 = vsel %vm850, %v882, %v736
        %v915 = vsel %vm851, %v883, %v743
        %v916 = vsel %vm852, %v884, %v750
        %v917 = vsel %vm853, %v885, %v757
        %vm918 = vcmp.ne.s32.totalorder %v886, 15
        %vm919 = vcmp.ne.s32.totalorder %v887, 15
        %vm920 = vcmp.ne.s32.totalorder %v888, 15
        %vm921 = vcmp.ne.s32.totalorder %v889, 15
        %vm922 = vcmp.ne.s32.totalorder %v890, 15
        %vm923 = vcmp.ne.s32.totalorder %v891, 15
        %vm924 = vcmp.ne.s32.totalorder %v892, 15
        %vm925 = vcmp.ne.s32.totalorder %v893, 15
        %vm926 = vcmp.ne.s32.totalorder %v894, 15
        %vm927 = vcmp.ne.s32.totalorder %v895, 15
        %vm928 = vcmp.ne.s32.totalorder %v896, 15
        %vm929 = vcmp.ne.s32.totalorder %v897, 15
        %vm930 = vcmp.ne.s32.totalorder %v898, 15
        %vm931 = vcmp.ne.s32.totalorder %v899, 15
        %vm932 = vcmp.ne.s32.totalorder %v900, 15
        %vm933 = vcmp.ne.s32.totalorder %v901, 15
        %vm934 = vcmp.ne.s32.totalorder %v902, 15
        %vm935 = vcmp.ne.s32.totalorder %v903, 15
        %vm936 = vcmp.ne.s32.totalorder %v904, 15
        %vm937 = vcmp.ne.s32.totalorder %v905, 15
        %vm938 = vcmp.ne.s32.totalorder %v906, 15
        %vm939 = vcmp.ne.s32.totalorder %v907, 15
        %vm940 = vcmp.ne.s32.totalorder %v908, 15
        %vm941 = vcmp.ne.s32.totalorder %v909, 15
        %vm942 = vcmp.ne.s32.totalorder %v910, 15
        %vm943 = vcmp.ne.s32.totalorder %v911, 15
        %vm944 = vcmp.ne.s32.totalorder %v912, 15
        %vm945 = vcmp.ne.s32.totalorder %v913, 15
        %vm946 = vcmp.ne.s32.totalorder %v914, 15
        %vm947 = vcmp.ne.s32.totalorder %v915, 15
        %vm948 = vcmp.ne.s32.totalorder %v916, 15
        %vm949 = vcmp.ne.s32.totalorder %v917, 15
        %vm950 = vcmp.ne.s32.totalorder %v886, 0
        %vm951 = vcmp.ne.s32.totalorder %v887, 0
        %vm952 = vcmp.ne.s32.totalorder %v888, 0
        %vm953 = vcmp.ne.s32.totalorder %v889, 0
        %vm954 = vcmp.ne.s32.totalorder %v890, 0
        %vm955 = vcmp.ne.s32.totalorder %v891, 0
        %vm956 = vcmp.ne.s32.totalorder %v892, 0
        %vm957 = vcmp.ne.s32.totalorder %v893, 0
        %vm958 = vcmp.ne.s32.totalorder %v894, 0
        %vm959 = vcmp.ne.s32.totalorder %v895, 0
        %vm960 = vcmp.ne.s32.totalorder %v896, 0
        %vm961 = vcmp.ne.s32.totalorder %v897, 0
        %vm962 = vcmp.ne.s32.totalorder %v898, 0
        %vm963 = vcmp.ne.s32.totalorder %v899, 0
        %vm964 = vcmp.ne.s32.totalorder %v900, 0
        %vm965 = vcmp.ne.s32.totalorder %v901, 0
        %vm966 = vcmp.ne.s32.totalorder %v902, 0
        %vm967 = vcmp.ne.s32.totalorder %v903, 0
        %vm968 = vcmp.ne.s32.totalorder %v904, 0
        %vm969 = vcmp.ne.s32.totalorder %v905, 0
        %vm970 = vcmp.ne.s32.totalorder %v906, 0
        %vm971 = vcmp.ne.s32.totalorder %v907, 0
        %vm972 = vcmp.ne.s32.totalorder %v908, 0
        %vm973 = vcmp.ne.s32.totalorder %v909, 0
        %vm974 = vcmp.ne.s32.totalorder %v910, 0
        %vm975 = vcmp.ne.s32.totalorder %v911, 0
        %vm976 = vcmp.ne.s32.totalorder %v912, 0
        %vm977 = vcmp.ne.s32.totalorder %v913, 0
        %vm978 = vcmp.ne.s32.totalorder %v914, 0
        %vm979 = vcmp.ne.s32.totalorder %v915, 0
        %vm980 = vcmp.ne.s32.totalorder %v916, 0
        %vm981 = vcmp.ne.s32.totalorder %v917, 0
        %vm982 = vcmask 261120
        %v983 = vsel %vm982, %v453, 0.0
        %v984 = vsel %vm982, %v454, 0.0
        %v985 = vadd.f32 %v983, %v984
        %v986 = vsel %vm982, %v455, 0.0
        %v987 = vadd.f32 %v985, %v986
        %v988 = vsel %vm982, %v456, 0.0
        %v989 = vadd.f32 %v987, %v988
        %v990 = vsel %vm982, %v457, 0.0
        %v991 = vadd.f32 %v989, %v990
        %v992 = vsel %vm982, %v458, 0.0
        %v993 = vadd.f32 %v991, %v992
        %v994 = vsel %vm982, %v459, 0.0
        %v995 = vadd.f32 %v993, %v994
        %v996 = vsel %vm982, %v460, 0.0
        %v997 = vadd.f32 %v995, %v996
        %v998 = vsel %vm982, %v461, 0.0
        %v999 = vadd.f32 %v997, %v998
        %v1000 = vsel %vm982, %v462, 0.0
        %v1001 = vadd.f32 %v999, %v1000
        %v1002 = vsel %vm982, %v463, 0.0
        %v1003 = vadd.f32 %v1001, %v1002
        %v1004 = vsel %vm982, %v464, 0.0
        %v1005 = vadd.f32 %v1003, %v1004
        %v1006 = vsel %vm982, %v465, 0.0
        %v1007 = vadd.f32 %v1005, %v1006
        %v1008 = vsel %vm982, %v466, 0.0
        %v1009 = vadd.f32 %v1007, %v1008
        %v1010 = vsel %vm982, %v467, 0.0
        %v1011 = vadd.f32 %v1009, %v1010
        %v1012 = vsel %vm982, %v468, 0.0
        %v1013 = vadd.f32 %v1011, %v1012
        %v1014 = vsel %vm982, %v485, 0.0
        %v1015 = vadd.f32 %v1013, %v1014
        %v1016 = vsel %vm982, %v486, 0.0
        %v1017 = vadd.f32 %v1015, %v1016
        %v1018 = vsel %vm982, %v487, 0.0
        %v1019 = vadd.f32 %v1017, %v1018
        %v1020 = vsel %vm982, %v488, 0.0
        %v1021 = vadd.f32 %v1019, %v1020
        %v1022 = vsel %vm982, %v489, 0.0
        %v1023 = vadd.f32 %v1021, %v1022
        %v1024 = vsel %vm982, %v490, 0.0
        %v1025 = vadd.f32 %v1023, %v1024
        %v1026 = vsel %vm982, %v491, 0.0
        %v1027 = vadd.f32 %v1025, %v1026
        %v1028 = vsel %vm982, %v492, 0.0
        %v1029 = vadd.f32 %v1027, %v1028
        %v1030 = vsel %vm982, %v493, 0.0
        %v1031 = vadd.f32 %v1029, %v1030
        %v1032 = vsel %vm982, %v494, 0.0
        %v1033 = vadd.f32 %v1031, %v1032
        %v1034 = vsel %vm982, %v495, 0.0
        %v1035 = vadd.f32 %v1033, %v1034
        %v1036 = vsel %vm982, %v496, 0.0
        %v1037 = vadd.f32 %v1035, %v1036
        %v1038 = vsel %vm982, %v497, 0.0
        %v1039 = vadd.f32 %v1037, %v1038
        %v1040 = vsel %vm982, %v498, 0.0
        %v1041 = vadd.f32 %v1039, %v1040
        %v1042 = vsel %vm982, %v499, 0.0
        %v1043 = vadd.f32 %v1041, %v1042
        %v1044 = vsel %vm982, %v500, 0.0
        %v1045 = vadd.f32 %v1043, %v1044
        %v1046 = vrot.slane %v1045, 4
        %v1047 = vadd.f32 %v1045, %v1046
        %v1048 = vrot.slane %v1047, 2
        %v1049 = vadd.f32 %v1047, %v1048
        %v1050 = vrot.slane %v1049, 1
        %v1051 = vadd.f32 %v1049, %v1050
        %v1052 = vmul.f32 %v453, %v453
        %v1053 = vmul.f32 %v454, %v454
        %v1054 = vmul.f32 %v455, %v455
        %v1055 = vmul.f32 %v456, %v456
        %v1056 = vmul.f32 %v457, %v457
        %v1057 = vmul.f32 %v458, %v458
        %v1058 = vmul.f32 %v459, %v459
        %v1059 = vmul.f32 %v460, %v460
        %v1060 = vmul.f32 %v461, %v461
        %v1061 = vmul.f32 %v462, %v462
        %v1062 = vmul.f32 %v463, %v463
        %v1063 = vmul.f32 %v464, %v464
        %v1064 = vmul.f32 %v465, %v465
        %v1065 = vmul.f32 %v466, %v466
        %v1066 = vmul.f32 %v467, %v467
        %v1067 = vmul.f32 %v468, %v468
        %v1068 = vmul.f32 %v485, %v485
        %v1069 = vmul.f32 %v486, %v486
        %v1070 = vmul.f32 %v487, %v487
        %v1071 = vmul.f32 %v488, %v488
        %v1072 = vmul.f32 %v489, %v489
        %v1073 = vmul.f32 %v490, %v490
        %v1074 = vmul.f32 %v491, %v491
        %v1075 = vmul.f32 %v492, %v492
        %v1076 = vmul.f32 %v493, %v493
        %v1077 = vmul.f32 %v494, %v494
        %v1078 = vmul.f32 %v495, %v495
        %v1079 = vmul.f32 %v496, %v496
        %v1080 = vmul.f32 %v497, %v497
        %v1081 = vmul.f32 %v498, %v498
        %v1082 = vmul.f32 %v499, %v499
        %v1083 = vmul.f32 %v500, %v500
        %v1084 = vsel %vm982, %v1052, 0.0
        %v1085 = vsel %vm982, %v1053, 0.0
        %v1086 = vadd.f32 %v1084, %v1085
        %v1087 = vsel %vm982, %v1054, 0.0
        %v1088 = vadd.f32 %v1086, %v1087
        %v1089 = vsel %vm982, %v1055, 0.0
        %v1090 = vadd.f32 %v1088, %v1089
        %v1091 = vsel %vm982, %v1056, 0.0
        %v1092 = vadd.f32 %v1090, %v1091
        %v1093 = vsel %vm982, %v1057, 0.0
        %v1094 = vadd.f32 %v1092, %v1093
        %v1095 = vsel %vm982, %v1058, 0.0
        %v1096 = vadd.f32 %v1094, %v1095
        %v1097 = vsel %vm982, %v1059, 0.0
        %v1098 = vadd.f32 %v1096, %v1097
        %v1099 = vsel %vm982, %v1060, 0.0
        %v1100 = vadd.f32 %v1098, %v1099
        %v1101 = vsel %vm982, %v1061, 0.0
        %v1102 = vadd.f32 %v1100, %v1101
        %v1103 = vsel %vm982, %v1062, 0.0
        %v1104 = vadd.f32 %v1102, %v1103
        %v1105 = vsel %vm982, %v1063, 0.0
        %v1106 = vadd.f32 %v1104, %v1105
        %v1107 = vsel %vm982, %v1064, 0.0
        %v1108 = vadd.f32 %v1106, %v1107
        %v1109 = vsel %vm982, %v1065, 0.0
        %v1110 = vadd.f32 %v1108, %v1109
        %v1111 = vsel %vm982, %v1066, 0.0
        %v1112 = vadd.f32 %v1110, %v1111
        %v1113 = vsel %vm982, %v1067, 0.0
        %v1114 = vadd.f32 %v1112, %v1113
        %v1115 = vsel %vm982, %v1068, 0.0
        %v1116 = vadd.f32 %v1114, %v1115
        %v1117 = vsel %vm982, %v1069, 0.0
        %v1118 = vadd.f32 %v1116, %v1117
        %v1119 = vsel %vm982, %v1070, 0.0
        %v1120 = vadd.f32 %v1118, %v1119
        %v1121 = vsel %vm982, %v1071, 0.0
        %v1122 = vadd.f32 %v1120, %v1121
        %v1123 = vsel %vm982, %v1072, 0.0
        %v1124 = vadd.f32 %v1122, %v1123
        %v1125 = vsel %vm982, %v1073, 0.0
        %v1126 = vadd.f32 %v1124, %v1125
        %v1127 = vsel %vm982, %v1074, 0.0
        %v1128 = vadd.f32 %v1126, %v1127
        %v1129 = vsel %vm982, %v1075, 0.0
        %v1130 = vadd.f32 %v1128, %v1129
        %v1131 = vsel %vm982, %v1076, 0.0
        %v1132 = vadd.f32 %v1130, %v1131
        %v1133 = vsel %vm982, %v1077, 0.0
        %v1134 = vadd.f32 %v1132, %v1133
        %v1135 = vsel %vm982, %v1078, 0.0
        %v1136 = vadd.f32 %v1134, %v1135
        %v1137 = vsel %vm982, %v1079, 0.0
        %v1138 = vadd.f32 %v1136, %v1137
        %v1139 = vsel %vm982, %v1080, 0.0
        %v1140 = vadd.f32 %v1138, %v1139
        %v1141 = vsel %vm982, %v1081, 0.0
        %v1142 = vadd.f32 %v1140, %v1141
        %v1143 = vsel %vm982, %v1082, 0.0
        %v1144 = vadd.f32 %v1142, %v1143
        %v1145 = vsel %vm982, %v1083, 0.0
        %v1146 = vadd.f32 %v1144, %v1145
        %v1147 = vrot.slane %v1146, 4
        %v1148 = vadd.f32 %v1146, %v1147
        %v1149 = vrot.slane %v1148, 2
        %v1150 = vadd.f32 %v1148, %v1149
        %v1151 = vrot.slane %v1150, 1
        %v1152 = vadd.f32 %v1150, %v1151
        %v1153 = vld [vmem:[%s1] sm:$0xff]
        %v1154 = vld [vmem:[%s1 + $0x8] sm:$0xff]
        %v1155 = vld [vmem:[%s1 + $0x10] sm:$0xff]
        %v1156 = vld [vmem:[%s1 + $0x18] sm:$0xff]
        %v1158 = vsel %vm982, %v1051, 0
        %1160 = vmatprep.subr.mxu0 0.0
        %1161 = vmatpush1.msra.mxu0 %v1153
        %1162 = vmatprep.subr.mxu0 0.0
        %1163 = vmatpush1.msra.mxu0 %v1154
        %1164 = vmatprep.subr.mxu0 0.0
        %1165 = vmatpush1.msra.mxu0 %v1155
        %1166 = vmatprep.subr.mxu0 0.0
        %1167 = vmatpush1.msra.mxu0 %v1156
        %1168 = vmatprep.subr.mxu0 0.0
        %1169 = vmatpush1.msra.mxu0 0.0
        %1170 = vmatprep.subr.mxu0 0.0
        %1171 = vmatpush1.msra.mxu0 0.0
        %1172 = vmatprep.subr.mxu0 0.0
        %1173 = vmatpush1.msra.mxu0 0.0
        %1174 = vmatprep.subr.mxu0 0.0
        %1175 = vmatpush1.msra.mxu0 0.0
        %1176 = vmatprep.subr.mxu0 0.0
        %1177 = vmatpush1.msra.mxu0 0.0
        %1178 = vmatprep.subr.mxu0 0.0
        %1179 = vmatpush1.msra.mxu0 0.0
        %1180 = vmatprep.subr.mxu0 0.0
        %1181 = vmatpush1.msra.mxu0 0.0
        %1182 = vmatprep.subr.mxu0 0.0
        %1183 = vmatpush1.msra.mxu0 0.0
        %1184 = vmatprep.subr.mxu0 0.0
        %1185 = vmatpush1.msra.mxu0 0.0
        %1186 = vmatprep.subr.mxu0 0.0
        %1187 = vmatpush1.msra.mxu0 0.0
        %1188 = vmatprep.subr.mxu0 0.0
        %1189 = vmatpush1.msra.mxu0 0.0
        %1190 = vmatprep.subr.mxu0 0.0
        %1191 = vmatpush1.msra.mxu0 0.0
        %1192 = vmatprep.subr.mxu0 0.0
        %1193 = vmatpush1.msra.mxu0 0.0
        %1194 = vmatprep.subr.mxu0 0.0
        %1195 = vmatpush1.msra.mxu0 0.0
        %1196 = vmatprep.subr.mxu0 0.0
        %1197 = vmatpush1.msra.mxu0 0.0
        %1198 = vmatprep.subr.mxu0 0.0
        %1199 = vmatpush1.msra.mxu0 0.0
        %1200 = vmatprep.subr.mxu0 0.0
        %1201 = vmatpush1.msra.mxu0 0.0
        %1202 = vmatprep.subr.mxu0 0.0
        %1203 = vmatpush1.msra.mxu0 0.0
        %1204 = vmatprep.subr.mxu0 0.0
        %1205 = vmatpush1.msra.mxu0 0.0
        %1206 = vmatprep.subr.mxu0 0.0
        %1207 = vmatpush1.msra.mxu0 0.0
        %1208 = vmatprep.subr.mxu0 0.0
        %1209 = vmatpush1.msra.mxu0 0.0
        %1210 = vmatprep.subr.mxu0 0.0
        %1211 = vmatpush1.msra.mxu0 0.0
        %1212 = vmatprep.subr.mxu0 0.0
        %1213 = vmatpush1.msra.mxu0 0.0
        %1214 = vmatprep.subr.mxu0 0.0
        %1215 = vmatpush1.msra.mxu0 0.0
        %1216 = vmatprep.subr.mxu0 0.0
        %1217 = vmatpush1.msra.mxu0 0.0
        %1218 = vmatprep.subr.mxu0 0.0
        %1219 = vmatpush1.msra.mxu0 0.0
        %1220 = vmatprep.subr.mxu0 0.0
        %1221 = vmatpush1.msra.mxu0 0.0
        %1222 = vmatprep.subr.mxu0 0.0
        %1223 = vmatpush1.msra.mxu0 0.0
        %1224 = vmatprep.mubr.f32.mxu0 0.0
        %1225 = vmatmul.mubr.f32.gmra.mrb[0].mxu0 %v1158
        %v1226 = vpop.f32.mrb[0].mxu0
        %v1227 = vadd.f32 0.0, %v1226
        %v1228 = vpop.f32.mrb[0].mxu0
        %1229 = vdwg.mxu0
        %v1231 = vsel %vm982, %v1152, 0
        %1233 = vmatprep.subr.mxu0 0.0
        %1234 = vmatpush1.msra.mxu0 %v1153
        %1235 = vmatprep.subr.mxu0 0.0
        %1236 = vmatpush1.msra.mxu0 %v1154
        %1237 = vmatprep.subr.mxu0 0.0
        %1238 = vmatpush1.msra.mxu0 %v1155
        %1239 = vmatprep.subr.mxu0 0.0
        %1240 = vmatpush1.msra.mxu0 %v1156
        %1241 = vmatprep.subr.mxu0 0.0
        %1242 = vmatpush1.msra.mxu0 0.0
        %1243 = vmatprep.subr.mxu0 0.0
        %1244 = vmatpush1.msra.mxu0 0.0
        %1245 = vmatprep.subr.mxu0 0.0
        %1246 = vmatpush1.msra.mxu0 0.0
        %1247 = vmatprep.subr.mxu0 0.0
        %1248 = vmatpush1.msra.mxu0 0.0
        %1249 = vmatprep.subr.mxu0 0.0
        %1250 = vmatpush1.msra.mxu0 0.0
        %1251 = vmatprep.subr.mxu0 0.0
        %1252 = vmatpush1.msra.mxu0 0.0
        %1253 = vmatprep.subr.mxu0 0.0
        %1254 = vmatpush1.msra.mxu0 0.0
        %1255 = vmatprep.subr.mxu0 0.0
        %1256 = vmatpush1.msra.mxu0 0.0
        %1257 = vmatprep.subr.mxu0 0.0
        %1258 = vmatpush1.msra.mxu0 0.0
        %1259 = vmatprep.subr.mxu0 0.0
        %1260 = vmatpush1.msra.mxu0 0.0
        %1261 = vmatprep.subr.mxu0 0.0
        %1262 = vmatpush1.msra.mxu0 0.0
        %1263 = vmatprep.subr.mxu0 0.0
        %1264 = vmatpush1.msra.mxu0 0.0
        %1265 = vmatprep.subr.mxu0 0.0
        %1266 = vmatpush1.msra.mxu0 0.0
        %1267 = vmatprep.subr.mxu0 0.0
        %1268 = vmatpush1.msra.mxu0 0.0
        %1269 = vmatprep.subr.mxu0 0.0
        %1270 = vmatpush1.msra.mxu0 0.0
        %1271 = vmatprep.subr.mxu0 0.0
        %1272 = vmatpush1.msra.mxu0 0.0
        %1273 = vmatprep.subr.mxu0 0.0
        %1274 = vmatpush1.msra.mxu0 0.0
        %1275 = vmatprep.subr.mxu0 0.0
        %1276 = vmatpush1.msra.mxu0 0.0
        %1277 = vmatprep.subr.mxu0 0.0
        %1278 = vmatpush1.msra.mxu0 0.0
        %1279 = vmatprep.subr.mxu0 0.0
        %1280 = vmatpush1.msra.mxu0 0.0
        %1281 = vmatprep.subr.mxu0 0.0
        %1282 = vmatpush1.msra.mxu0 0.0
        %1283 = vmatprep.subr.mxu0 0.0
        %1284 = vmatpush1.msra.mxu0 0.0
        %1285 = vmatprep.subr.mxu0 0.0
        %1286 = vmatpush1.msra.mxu0 0.0
        %1287 = vmatprep.subr.mxu0 0.0
        %1288 = vmatpush1.msra.mxu0 0.0
        %1289 = vmatprep.subr.mxu0 0.0
        %1290 = vmatpush1.msra.mxu0 0.0
        %1291 = vmatprep.subr.mxu0 0.0
        %1292 = vmatpush1.msra.mxu0 0.0
        %1293 = vmatprep.subr.mxu0 0.0
        %1294 = vmatpush1.msra.mxu0 0.0
        %1295 = vmatprep.subr.mxu0 0.0
        %1296 = vmatpush1.msra.mxu0 0.0
        %1297 = vmatprep.mubr.f32.mxu0 0.0
        %1298 = vmatmul.mubr.f32.gmra.mrb[0].mxu0 %v1231
        %v1299 = vpop.f32.mrb[0].mxu0
        %v1300 = vadd.f32 0.0, %v1299
        %v1301 = vpop.f32.mrb[0].mxu0
        %1302 = vdwg.mxu0
        %v1303 = vmul.f32 %v1227, %v1227
        %v1304 = vsub.f32 %v1300, %v1303
        %v1305 = vadd.f32 %v1304, 1e-05
        %v1306 = vrsqrt.pop %v1305
        %v1307 = vld [vmem:[%s2] sm:$0x1]
        %v1308 = vmul.f32 %v1306, %v1307
        %v1309 = vld [vmem:[%s3] sm:$0x1]
        %v1310 = vmul.f32 %v1227, %v1308
        %v1311 = vsub.f32 %v1309, %v1310
        %v1312 = vlaneseq
        %v1313 = vshrl.u32 %v1312, 7
        %v1314 = vsub.s32 0, %v1313
        %v1315 = vrot.slane %v1308, %v1314
        %v1316 = vmul.f32 %v453, %v1315
        %v1317 = vmul.f32 %v454, %v1315
        %v1318 = vmul.f32 %v455, %v1315
        %v1319 = vmul.f32 %v456, %v1315
        %v1320 = vmul.f32 %v457, %v1315
        %v1321 = vmul.f32 %v458, %v1315
        %v1322 = vmul.f32 %v459, %v1315
        %v1323 = vmul.f32 %v460, %v1315
        %v1324 = vmul.f32 %v461, %v1315
        %v1325 = vmul.f32 %v462, %v1315
        %v1326 = vmul.f32 %v463, %v1315
        %v1327 = vmul.f32 %v464, %v1315
        %v1328 = vmul.f32 %v465, %v1315
        %v1329 = vmul.f32 %v466, %v1315
        %v1330 = vmul.f32 %v467, %v1315
        %v1331 = vmul.f32 %v468, %v1315
        %v1332 = vmul.f32 %v485, %v1315
        %v1333 = vmul.f32 %v486, %v1315
        %v1334 = vmul.f32 %v487, %v1315
        %v1335 = vmul.f32 %v488, %v1315
        %v1336 = vmul.f32 %v489, %v1315
        %v1337 = vmul.f32 %v490, %v1315
        %v1338 = vmul.f32 %v491, %v1315
        %v1339 = vmul.f32 %v492, %v1315
        %v1340 = vmul.f32 %v493, %v1315
        %v1341 = vmul.f32 %v494, %v1315
        %v1342 = vmul.f32 %v495, %v1315
        %v1343 = vmul.f32 %v496, %v1315
        %v1344 = vmul.f32 %v497, %v1315
        %v1345 = vmul.f32 %v498, %v1315
        %v1346 = vmul.f32 %v499, %v1315
        %v1347 = vmul.f32 %v500, %v1315
        %v1349 = vlaneseq
        %v1350 = vshrl.u32 %v1349, 7
        %v1351 = vsub.s32 0, %v1350
        %v1352 = vrot.slane %v1311, %v1351
        %v1354 = vadd.f32 %v1316, %v1352
        %v1355 = vadd.f32 %v1317, %v1352
        %v1356 = vadd.f32 %v1318, %v1352
        %v1357 = vadd.f32 %v1319, %v1352
        %v1358 = vadd.f32 %v1320, %v1352
        %v1359 = vadd.f32 %v1321, %v1352
        %v1360 = vadd.f32 %v1322, %v1352
        %v1361 = vadd.f32 %v1323, %v1352
        %v1362 = vadd.f32 %v1324, %v1352
        %v1363 = vadd.f32 %v1325, %v1352
        %v1364 = vadd.f32 %v1326, %v1352
        %v1365 = vadd.f32 %v1327, %v1352
        %v1366 = vadd.f32 %v1328, %v1352
        %v1367 = vadd.f32 %v1329, %v1352
        %v1368 = vadd.f32 %v1330, %v1352
        %v1369 = vadd.f32 %v1331, %v1352
        %v1370 = vadd.f32 %v1332, %v1352
        %v1371 = vadd.f32 %v1333, %v1352
        %v1372 = vadd.f32 %v1334, %v1352
        %v1373 = vadd.f32 %v1335, %v1352
        %v1374 = vadd.f32 %v1336, %v1352
        %v1375 = vadd.f32 %v1337, %v1352
        %v1376 = vadd.f32 %v1338, %v1352
        %v1377 = vadd.f32 %v1339, %v1352
        %v1378 = vadd.f32 %v1340, %v1352
        %v1379 = vadd.f32 %v1341, %v1352
        %v1380 = vadd.f32 %v1342, %v1352
        %v1381 = vadd.f32 %v1343, %v1352
        %v1382 = vadd.f32 %v1344, %v1352
        %v1383 = vadd.f32 %v1345, %v1352
        %v1384 = vadd.f32 %v1346, %v1352
        %v1385 = vadd.f32 %v1347, %v1352
        %v1386 = vxor.u32 %v1354, 2147483648
        %v1387 = vxor.u32 %v1355, 2147483648
        %v1388 = vxor.u32 %v1356, 2147483648
        %v1389 = vxor.u32 %v1357, 2147483648
        %v1390 = vxor.u32 %v1358, 2147483648
        %v1391 = vxor.u32 %v1359, 2147483648
        %v1392 = vxor.u32 %v1360, 2147483648
        %v1393 = vxor.u32 %v1361, 2147483648
        %v1394 = vxor.u32 %v1362, 2147483648
        %v1395 = vxor.u32 %v1363, 2147483648
        %v1396 = vxor.u32 %v1364, 2147483648
        %v1397 = vxor.u32 %v1365, 2147483648
        %v1398 = vxor.u32 %v1366, 2147483648
        %v1399 = vxor.u32 %v1367, 2147483648
        %v1400 = vxor.u32 %v1368, 2147483648
        %v1401 = vxor.u32 %v1369, 2147483648
        %v1402 = vxor.u32 %v1370, 2147483648
        %v1403 = vxor.u32 %v1371, 2147483648
        %v1404 = vxor.u32 %v1372, 2147483648
        %v1405 = vxor.u32 %v1373, 2147483648
        %v1406 = vxor.u32 %v1374, 2147483648
        %v1407 = vxor.u32 %v1375, 2147483648
        %v1408 = vxor.u32 %v1376, 2147483648
        %v1409 = vxor.u32 %v1377, 2147483648
        %v1410 = vxor.u32 %v1378, 2147483648
        %v1411 = vxor.u32 %v1379, 2147483648
        %v1412 = vxor.u32 %v1380, 2147483648
        %v1413 = vxor.u32 %v1381, 2147483648
        %v1414 = vxor.u32 %v1382, 2147483648
        %v1415 = vxor.u32 %v1383, 2147483648
        %v1416 = vxor.u32 %v1384, 2147483648
        %v1417 = vxor.u32 %v1385, 2147483648
        %v1418 = vmul.f32 %v1386, 1.442695
        %v1419 = vpow.pop %v1418
        %v1420 = vmul.f32 %v1387, 1.442695
        %v1421 = vpow.pop %v1420
        %v1422 = vmul.f32 %v1388, 1.442695
        %v1423 = vpow.pop %v1422
        %v1424 = vmul.f32 %v1389, 1.442695
        %v1425 = vpow.pop %v1424
        %v1426 = vmul.f32 %v1390, 1.442695
        %v1427 = vpow.pop %v1426
        %v1428 = vmul.f32 %v1391, 1.442695
        %v1429 = vpow.pop %v1428
        %v1430 = vmul.f32 %v1392, 1.442695
        %v1431 = vpow.pop %v1430
        %v1432 = vmul.f32 %v1393, 1.442695
        %v1433 = vpow.pop %v1432
        %v1434 = vmul.f32 %v1394, 1.442695
        %v1435 = vpow.pop %v1434
        %v1436 = vmul.f32 %v1395, 1.442695
        %v1437 = vpow.pop %v1436
        %v1438 = vmul.f32 %v1396, 1.442695
        %v1439 = vpow.pop %v1438
        %v1440 = vmul.f32 %v1397, 1.442695
        %v1441 = vpow.pop %v1440
        %v1442 = vmul.f32 %v1398, 1.442695
        %v1443 = vpow.pop %v1442
        %v1444 = vmul.f32 %v1399, 1.442695
        %v1445 = vpow.pop %v1444
        %v1446 = vmul.f32 %v1400, 1.442695
        %v1447 = vpow.pop %v1446
        %v1448 = vmul.f32 %v1401, 1.442695
        %v1449 = vpow.pop %v1448
        %v1450 = vmul.f32 %v1402, 1.442695
        %v1451 = vpow.pop %v1450
        %v1452 = vmul.f32 %v1403, 1.442695
        %v1453 = vpow.pop %v1452
        %v1454 = vmul.f32 %v1404, 1.442695
        %v1455 = vpow.pop %v1454
        %v1456 = vmul.f32 %v1405, 1.442695
        %v1457 = vpow.pop %v1456
        %v1458 = vmul.f32 %v1406, 1.442695
        %v1459 = vpow.pop %v1458
        %v1460 = vmul.f32 %v1407, 1.442695
        %v1461 = vpow.pop %v1460
        %v1462 = vmul.f32 %v1408, 1.442695
        %v1463 = vpow.pop %v1462
        %v1464 = vmul.f32 %v1409, 1.442695
        %v1465 = vpow.pop %v1464
        %v1466 = vmul.f32 %v1410, 1.442695
        %v1467 = vpow.pop %v1466
        %v1468 = vmul.f32 %v1411, 1.442695
        %v1469 = vpow.pop %v1468
        %v1470 = vmul.f32 %v1412, 1.442695
        %v1471 = vpow.pop %v1470
        %v1472 = vmul.f32 %v1413, 1.442695
        %v1473 = vpow.pop %v1472
        %v1474 = vmul.f32 %v1414, 1.442695
        %v1475 = vpow.pop %v1474
        %v1476 = vmul.f32 %v1415, 1.442695
        %v1477 = vpow.pop %v1476
        %v1478 = vmul.f32 %v1416, 1.442695
        %v1479 = vpow.pop %v1478
        %v1480 = vmul.f32 %v1417, 1.442695
        %v1481 = vpow.pop %v1480
        %v1482 = vadd.f32 %v1419, 1.0
        %v1483 = vadd.f32 %v1421, 1.0
        %v1484 = vadd.f32 %v1423, 1.0
        %v1485 = vadd.f32 %v1425, 1.0
        %v1486 = vadd.f32 %v1427, 1.0
        %v1487 = vadd.f32 %v1429, 1.0
        %v1488 = vadd.f32 %v1431, 1.0
        %v1489 = vadd.f32 %v1433, 1.0
        %v1490 = vadd.f32 %v1435, 1.0
        %v1491 = vadd.f32 %v1437, 1.0
        %v1492 = vadd.f32 %v1439, 1.0
        %v1493 = vadd.f32 %v1441, 1.0
        %v1494 = vadd.f32 %v1443, 1.0
        %v1495 = vadd.f32 %v1445, 1.0
        %v1496 = vadd.f32 %v1447, 1.0
        %v1497 = vadd.f32 %v1449, 1.0
        %v1498 = vadd.f32 %v1451, 1.0
        %v1499 = vadd.f32 %v1453, 1.0
        %v1500 = vadd.f32 %v1455, 1.0
        %v1501 = vadd.f32 %v1457, 1.0
        %v1502 = vadd.f32 %v1459, 1.0
        %v1503 = vadd.f32 %v1461, 1.0
        %v1504 = vadd.f32 %v1463, 1.0
        %v1505 = vadd.f32 %v1465, 1.0
        %v1506 = vadd.f32 %v1467, 1.0
        %v1507 = vadd.f32 %v1469, 1.0
        %v1508 = vadd.f32 %v1471, 1.0
        %v1509 = vadd.f32 %v1473, 1.0
        %v1510 = vadd.f32 %v1475, 1.0
        %v1511 = vadd.f32 %v1477, 1.0
        %v1512 = vadd.f32 %v1479, 1.0
        %v1513 = vadd.f32 %v1481, 1.0
        %v1514 = vrcp.pop %v1482
        %v1515 = vmul.f32 1.0, %v1514
        %v1516 = vrcp.pop %v1483
        %v1517 = vmul.f32 1.0, %v1516
        %v1518 = vrcp.pop %v1484
        %v1519 = vmul.f32 1.0, %v1518
        %v1520 = vrcp.pop %v1485
        %v1521 = vmul.f32 1.0, %v1520
        %v1522 = vrcp.pop %v1486
        %v1523 = vmul.f32 1.0, %v1522
        %v1524 = vrcp.pop %v1487
        %v1525 = vmul.f32 1.0, %v1524
        %v1526 = vrcp.pop %v1488
        %v1527 = vmul.f32 1.0, %v1526
        %v1528 = vrcp.pop %v1489
        %v1529 = vmul.f32 1.0, %v1528
        %v1530 = vrcp.pop %v1490
        %v1531 = vmul.f32 1.0, %v1530
        %v1532 = vrcp.pop %v1491
        %v1533 = vmul.f32 1.0, %v1532
        %v1534 = vrcp.pop %v1492
        %v1535 = vmul.f32 1.0, %v1534
        %v1536 = vrcp.pop %v1493
        %v1537 = vmul.f32 1.0, %v1536
        %v1538 = vrcp.pop %v1494
        %v1539 = vmul.f32 1.0, %v1538
        %v1540 = vrcp.pop %v1495
        %v1541 = vmul.f32 1.0, %v1540
        %v1542 = vrcp.pop %v1496
        %v1543 = vmul.f32 1.0, %v1542
        %v1544 = vrcp.pop %v1497
        %v1545 = vmul.f32 1.0, %v1544
        %v1546 = vrcp.pop %v1498
        %v1547 = vmul.f32 1.0, %v1546
        %v1548 = vrcp.pop %v1499
        %v1549 = vmul.f32 1.0, %v1548
        %v1550 = vrcp.pop %v1500
        %v1551 = vmul.f32 1.0, %v1550
        %v1552 = vrcp.pop %v1501
        %v1553 = vmul.f32 1.0, %v1552
        %v1554 = vrcp.pop %v1502
        %v1555 = vmul.f32 1.0, %v1554
        %v1556 = vrcp.pop %v1503
        %v1557 = vmul.f32 1.0, %v1556
        %v1558 = vrcp.pop %v1504
        %v1559 = vmul.f32 1.0, %v1558
        %v1560 = vrcp.pop %v1505
        %v1561 = vmul.f32 1.0, %v1560
        %v1562 = vrcp.pop %v1506
        %v1563 = vmul.f32 1.0, %v1562
        %v1564 = vrcp.pop %v1507
        %v1565 = vmul.f32 1.0, %v1564
        %v1566 = vrcp.pop %v1508
        %v1567 = vmul.f32 1.0, %v1566
        %v1568 = vrcp.pop %v1509
        %v1569 = vmul.f32 1.0, %v1568
        %v1570 = vrcp.pop %v1510
        %v1571 = vmul.f32 1.0, %v1570
        %v1572 = vrcp.pop %v1511
        %v1573 = vmul.f32 1.0, %v1572
        %v1574 = vrcp.pop %v1512
        %v1575 = vmul.f32 1.0, %v1574
        %v1576 = vrcp.pop %v1513
        %v1577 = vmul.f32 1.0, %v1576
        %v1578 = vmul.f32 %v1354, %v1515
        %v1579 = vmul.f32 %v1355, %v1517
        %v1580 = vmul.f32 %v1356, %v1519
        %v1581 = vmul.f32 %v1357, %v1521
        %v1582 = vmul.f32 %v1358, %v1523
        %v1583 = vmul.f32 %v1359, %v1525
        %v1584 = vmul.f32 %v1360, %v1527
        %v1585 = vmul.f32 %v1361, %v1529
        %v1586 = vmul.f32 %v1362, %v1531
        %v1587 = vmul.f32 %v1363, %v1533
        %v1588 = vmul.f32 %v1364, %v1535
        %v1589 = vmul.f32 %v1365, %v1537
        %v1590 = vmul.f32 %v1366, %v1539
        %v1591 = vmul.f32 %v1367, %v1541
        %v1592 = vmul.f32 %v1368, %v1543
        %v1593 = vmul.f32 %v1369, %v1545
        %v1594 = vmul.f32 %v1370, %v1547
        %v1595 = vmul.f32 %v1371, %v1549
        %v1596 = vmul.f32 %v1372, %v1551
        %v1597 = vmul.f32 %v1373, %v1553
        %v1598 = vmul.f32 %v1374, %v1555
        %v1599 = vmul.f32 %v1375, %v1557
        %v1600 = vmul.f32 %v1376, %v1559
        %v1601 = vmul.f32 %v1377, %v1561
        %v1602 = vmul.f32 %v1378, %v1563
        %v1603 = vmul.f32 %v1379, %v1565
        %v1604 = vmul.f32 %v1380, %v1567
        %v1605 = vmul.f32 %v1381, %v1569
        %v1606 = vmul.f32 %v1382, %v1571
        %v1607 = vmul.f32 %v1383, %v1573
        %v1608 = vmul.f32 %v1384, %v1575
        %v1609 = vmul.f32 %v1385, %v1577
        %vm1610 = vcmask 785408
        %1611 = vst.msk [vmem:[#allocation2] sm:$0xff] %vm1610, 0.0
        %1612 = vst.msk [vmem:[#allocation2 + $0x8] sm:$0xff] %vm1610, 0.0
        %vm1613 = vcmask 778240
        %1614 = vst.msk [vmem:[#allocation2 + $0x10] sm:$0x1] %vm1613, 0.0
        %1615 = vst.msk [vmem:[#allocation2 + $0x10f] sm:$0xff] %vm1610, 0.0
        %1616 = vst.msk [vmem:[#allocation2 + $0x117] sm:$0xff] %vm1610, 0.0
        %1617 = vst.msk [vmem:[#allocation2 + $0x11f] sm:$0x1] %vm1613, 0.0
        %v1618 = vsel %vm918, 1, 0
        %v1619 = vsel %vm919, 1, 0
        %v1620 = vsel %vm920, 1, 0
        %v1621 = vsel %vm921, 1, 0
        %v1622 = vsel %vm922, 1, 0
        %v1623 = vsel %vm923, 1, 0
        %v1624 = vsel %vm924, 1, 0
        %v1625 = vsel %vm925, 1, 0
        %v1626 = vsel %vm926, 1, 0
        %v1627 = vsel %vm927, 1, 0
        %v1628 = vsel %vm928, 1, 0
        %v1629 = vsel %vm929, 1, 0
        %v1630 = vsel %vm930, 1, 0
        %v1631 = vsel %vm931, 1, 0
        %v1632 = vsel %vm932, 1, 0
        %v1633 = vsel %vm933, 1, 0
        %v1634 = vsel %vm934, 1, 0
        %v1635 = vsel %vm935, 1, 0
        %v1636 = vsel %vm936, 1, 0
        %v1637 = vsel %vm937, 1, 0
        %v1638 = vsel %vm938, 1, 0
        %v1639 = vsel %vm939, 1, 0
        %v1640 = vsel %vm940, 1, 0
        %v1641 = vsel %vm941, 1, 0
        %v1642 = vsel %vm942, 1, 0
        %v1643 = vsel %vm943, 1, 0
        %v1644 = vsel %vm944, 1, 0
        %v1645 = vsel %vm945, 1, 0
        %v1646 = vsel %vm946, 1, 0
        %v1647 = vsel %vm947, 1, 0
        %v1648 = vsel %vm948, 1, 0
        %v1649 = vsel %vm949, 1, 0
        %vm1650 = vcmp.eq.s32.totalorder %v1618, 1
        %vm1651 = vcmp.eq.s32.totalorder %v1619, 1
        %vm1652 = vcmp.eq.s32.totalorder %v1620, 1
        %vm1653 = vcmp.eq.s32.totalorder %v1621, 1
        %vm1654 = vcmp.eq.s32.totalorder %v1622, 1
        %vm1655 = vcmp.eq.s32.totalorder %v1623, 1
        %vm1656 = vcmp.eq.s32.totalorder %v1624, 1
        %vm1657 = vcmp.eq.s32.totalorder %v1625, 1
        %vm1658 = vcmp.eq.s32.totalorder %v1626, 1
        %vm1659 = vcmp.eq.s32.totalorder %v1627, 1
        %vm1660 = vcmp.eq.s32.totalorder %v1628, 1
        %vm1661 = vcmp.eq.s32.totalorder %v1629, 1
        %vm1662 = vcmp.eq.s32.totalorder %v1630, 1
        %vm1663 = vcmp.eq.s32.totalorder %v1631, 1
        %vm1664 = vcmp.eq.s32.totalorder %v1632, 1
        %vm1665 = vcmp.eq.s32.totalorder %v1633, 1
        %vm1666 = vcmp.eq.s32.totalorder %v1634, 1
        %vm1667 = vcmp.eq.s32.totalorder %v1635, 1
        %vm1668 = vcmp.eq.s32.totalorder %v1636, 1
        %vm1669 = vcmp.eq.s32.totalorder %v1637, 1
        %vm1670 = vcmp.eq.s32.totalorder %v1638, 1
        %vm1671 = vcmp.eq.s32.totalorder %v1639, 1
        %vm1672 = vcmp.eq.s32.totalorder %v1640, 1
        %vm1673 = vcmp.eq.s32.totalorder %v1641, 1
        %vm1674 = vcmp.eq.s32.totalorder %v1642, 1
        %vm1675 = vcmp.eq.s32.totalorder %v1643, 1
        %vm1676 = vcmp.eq.s32.totalorder %v1644, 1
        %vm1677 = vcmp.eq.s32.totalorder %v1645, 1
        %vm1678 = vcmp.eq.s32.totalorder %v1646, 1
        %vm1679 = vcmp.eq.s32.totalorder %v1647, 1
        %vm1680 = vcmp.eq.s32.totalorder %v1648, 1
        %vm1681 = vcmp.eq.s32.totalorder %v1649, 1
        %v1682 = vsel %vm1650, %v1578, 0.0
        %v1683 = vsel %vm1651, %v1579, 0.0
        %v1684 = vsel %vm1652, %v1580, 0.0
        %v1685 = vsel %vm1653, %v1581, 0.0
        %v1686 = vsel %vm1654, %v1582, 0.0
        %v1687 = vsel %vm1655, %v1583, 0.0
        %v1688 = vsel %vm1656, %v1584, 0.0
        %v1689 = vsel %vm1657, %v1585, 0.0
        %v1690 = vsel %vm1658, %v1586, 0.0
        %v1691 = vsel %vm1659, %v1587, 0.0
        %v1692 = vsel %vm1660, %v1588, 0.0
        %v1693 = vsel %vm1661, %v1589, 0.0
        %v1694 = vsel %vm1662, %v1590, 0.0
        %v1695 = vsel %vm1663, %v1591, 0.0
        %v1696 = vsel %vm1664, %v1592, 0.0
        %v1697 = vsel %vm1665, %v1593, 0.0
        %v1698 = vsel %vm1666, %v1594, 0.0
        %v1699 = vsel %vm1667, %v1595, 0.0
        %v1700 = vsel %vm1668, %v1596, 0.0
        %v1701 = vsel %vm1669, %v1597, 0.0
        %v1702 = vsel %vm1670, %v1598, 0.0
        %v1703 = vsel %vm1671, %v1599, 0.0
        %v1704 = vsel %vm1672, %v1600, 0.0
        %v1705 = vsel %vm1673, %v1601, 0.0
        %v1706 = vsel %vm1674, %v1602, 0.0
        %v1707 = vsel %vm1675, %v1603, 0.0
        %v1708 = vsel %vm1676, %v1604, 0.0
        %v1709 = vsel %vm1677, %v1605, 0.0
        %v1710 = vsel %vm1678, %v1606, 0.0
        %v1711 = vsel %vm1679, %v1607, 0.0
        %v1712 = vsel %vm1680, %v1608, 0.0
        %v1713 = vsel %vm1681, %v1609, 0.0
        %v1714 = vsel %vm950, 1, 0
        %v1715 = vsel %vm951, 1, 0
        %v1716 = vsel %vm952, 1, 0
        %v1717 = vsel %vm953, 1, 0
        %v1718 = vsel %vm954, 1, 0
        %v1719 = vsel %vm955, 1, 0
        %v1720 = vsel %vm956, 1, 0
        %v1721 = vsel %vm957, 1, 0
        %v1722 = vsel %vm958, 1, 0
        %v1723 = vsel %vm959, 1, 0
        %v1724 = vsel %vm960, 1, 0
        %v1725 = vsel %vm961, 1, 0
        %v1726 = vsel %vm962, 1, 0
        %v1727 = vsel %vm963, 1, 0
        %v1728 = vsel %vm964, 1, 0
        %v1729 = vsel %vm965, 1, 0
        %v1730 = vsel %vm966, 1, 0
        %v1731 = vsel %vm967, 1, 0
        %v1732 = vsel %vm968, 1, 0
        %v1733 = vsel %vm969, 1, 0
        %v1734 = vsel %vm970, 1, 0
        %v1735 = vsel %vm971, 1, 0
        %v1736 = vsel %vm972, 1, 0
        %v1737 = vsel %vm973, 1, 0
        %v1738 = vsel %vm974, 1, 0
        %v1739 = vsel %vm975, 1, 0
        %v1740 = vsel %vm976, 1, 0
        %v1741 = vsel %vm977, 1, 0
        %v1742 = vsel %vm978, 1, 0
        %v1743 = vsel %vm979, 1, 0
        %v1744 = vsel %vm980, 1, 0
        %v1745 = vsel %vm981, 1, 0
        %vm1746 = vcmp.eq.s32.totalorder %v1714, 1
        %vm1747 = vcmp.eq.s32.totalorder %v1715, 1
        %vm1748 = vcmp.eq.s32.totalorder %v1716, 1
        %vm1749 = vcmp.eq.s32.totalorder %v1717, 1
        %vm1750 = vcmp.eq.s32.totalorder %v1718, 1
        %vm1751 = vcmp.eq.s32.totalorder %v1719, 1
        %vm1752 = vcmp.eq.s32.totalorder %v1720, 1
        %vm1753 = vcmp.eq.s32.totalorder %v1721, 1
        %vm1754 = vcmp.eq.s32.totalorder %v1722, 1
        %vm1755 = vcmp.eq.s32.totalorder %v1723, 1
        %vm1756 = vcmp.eq.s32.totalorder %v1724, 1
        %vm1757 = vcmp.eq.s32.totalorder %v1725, 1
        %vm1758 = vcmp.eq.s32.totalorder %v1726, 1
        %vm1759 = vcmp.eq.s32.totalorder %v1727, 1
        %vm1760 = vcmp.eq.s32.totalorder %v1728, 1
        %vm1761 = vcmp.eq.s32.totalorder %v1729, 1
        %vm1762 = vcmp.eq.s32.totalorder %v1730, 1
        %vm1763 = vcmp.eq.s32.totalorder %v1731, 1
        %vm1764 = vcmp.eq.s32.totalorder %v1732, 1
        %vm1765 = vcmp.eq.s32.totalorder %v1733, 1
        %vm1766 = vcmp.eq.s32.totalorder %v1734, 1
        %vm1767 = vcmp.eq.s32.totalorder %v1735, 1
        %vm1768 = vcmp.eq.s32.totalorder %v1736, 1
        %vm1769 = vcmp.eq.s32.totalorder %v1737, 1
        %vm1770 = vcmp.eq.s32.totalorder %v1738, 1
        %vm1771 = vcmp.eq.s32.totalorder %v1739, 1
        %vm1772 = vcmp.eq.s32.totalorder %v1740, 1
        %vm1773 = vcmp.eq.s32.totalorder %v1741, 1
        %vm1774 = vcmp.eq.s32.totalorder %v1742, 1
        %vm1775 = vcmp.eq.s32.totalorder %v1743, 1
        %vm1776 = vcmp.eq.s32.totalorder %v1744, 1
        %vm1777 = vcmp.eq.s32.totalorder %v1745, 1
        %v1778 = vsel %vm1746, %v1578, 0.0
        %v1779 = vsel %vm1747, %v1579, 0.0
        %v1780 = vsel %vm1748, %v1580, 0.0
        %v1781 = vsel %vm1749, %v1581, 0.0
        %v1782 = vsel %vm1750, %v1582, 0.0
        %v1783 = vsel %vm1751, %v1583, 0.0
        %v1784 = vsel %vm1752, %v1584, 0.0
        %v1785 = vsel %vm1753, %v1585, 0.0
        %v1786 = vsel %vm1754, %v1586, 0.0
        %v1787 = vsel %vm1755, %v1587, 0.0
        %v1788 = vsel %vm1756, %v1588, 0.0
        %v1789 = vsel %vm1757, %v1589, 0.0
        %v1790 = vsel %vm1758, %v1590, 0.0
        %v1791 = vsel %vm1759, %v1591, 0.0
        %v1792 = vsel %vm1760, %v1592, 0.0
        %v1793 = vsel %vm1761, %v1593, 0.0
        %v1794 = vsel %vm1762, %v1594, 0.0
        %v1795 = vsel %vm1763, %v1595, 0.0
        %v1796 = vsel %vm1764, %v1596, 0.0
        %v1797 = vsel %vm1765, %v1597, 0.0
        %v1798 = vsel %vm1766, %v1598, 0.0
        %v1799 = vsel %vm1767, %v1599, 0.0
        %v1800 = vsel %vm1768, %v1600, 0.0
        %v1801 = vsel %vm1769, %v1601, 0.0
        %v1802 = vsel %vm1770, %v1602, 0.0
        %v1803 = vsel %vm1771, %v1603, 0.0
        %v1804 = vsel %vm1772, %v1604, 0.0
        %v1805 = vsel %vm1773, %v1605, 0.0
        %v1806 = vsel %vm1774, %v1606, 0.0
        %v1807 = vsel %vm1775, %v1607, 0.0
        %v1808 = vsel %vm1776, %v1608, 0.0
        %v1809 = vsel %vm1777, %v1609, 0.0
        %1842 = vrot.lane.b32.xlu0 %v1578, 32
        %v1843 = vpop.permute.xlu0 %1842
        %1844 = vrot.lane.b32.xlu0 %v1579, 32
        %v1845 = vpop.permute.xlu0 %1844
        %1846 = vrot.lane.b32.xlu0 %v1580, 32
        %v1847 = vpop.permute.xlu0 %1846
        %1848 = vrot.lane.b32.xlu0 %v1581, 32
        %v1849 = vpop.permute.xlu0 %1848
        %1850 = vrot.lane.b32.xlu0 %v1582, 32
        %v1851 = vpop.permute.xlu0 %1850
        %1852 = vrot.lane.b32.xlu0 %v1583, 32
        %v1853 = vpop.permute.xlu0 %1852
        %1854 = vrot.lane.b32.xlu0 %v1584, 32
        %v1855 = vpop.permute.xlu0 %1854
        %1856 = vrot.lane.b32.xlu0 %v1585, 32
        %v1857 = vpop.permute.xlu0 %1856
        %1858 = vrot.lane.b32.xlu0 %v1586, 32
        %v1859 = vpop.permute.xlu0 %1858
        %1860 = vrot.lane.b32.xlu0 %v1587, 32
        %v1861 = vpop.permute.xlu0 %1860
        %1862 = vrot.lane.b32.xlu0 %v1588, 32
        %v1863 = vpop.permute.xlu0 %1862
        %1864 = vrot.lane.b32.xlu0 %v1589, 32
        %v1865 = vpop.permute.xlu0 %1864
        %1866 = vrot.lane.b32.xlu0 %v1590, 32
        %v1867 = vpop.permute.xlu0 %1866
        %1868 = vrot.lane.b32.xlu0 %v1591, 32
        %v1869 = vpop.permute.xlu0 %1868
        %1870 = vrot.lane.b32.xlu0 %v1592, 32
        %v1871 = vpop.permute.xlu0 %1870
        %1872 = vrot.lane.b32.xlu0 %v1593, 32
        %v1873 = vpop.permute.xlu0 %1872
        %1874 = vrot.lane.b32.xlu0 %v1594, 32
        %v1875 = vpop.permute.xlu0 %1874
        %1876 = vrot.lane.b32.xlu0 %v1595, 32
        %v1877 = vpop.permute.xlu0 %1876
        %1878 = vrot.lane.b32.xlu0 %v1596, 32
        %v1879 = vpop.permute.xlu0 %1878
        %1880 = vrot.lane.b32.xlu0 %v1597, 32
        %v1881 = vpop.permute.xlu0 %1880
        %1882 = vrot.lane.b32.xlu0 %v1598, 32
        %v1883 = vpop.permute.xlu0 %1882
        %1884 = vrot.lane.b32.xlu0 %v1599, 32
        %v1885 = vpop.permute.xlu0 %1884
        %1886 = vrot.lane.b32.xlu0 %v1600, 32
        %v1887 = vpop.permute.xlu0 %1886
        %1888 = vrot.lane.b32.xlu0 %v1601, 32
        %v1889 = vpop.permute.xlu0 %1888
        %1890 = vrot.lane.b32.xlu0 %v1602, 32
        %v1891 = vpop.permute.xlu0 %1890
        %1892 = vrot.lane.b32.xlu0 %v1603, 32
        %v1893 = vpop.permute.xlu0 %1892
        %1894 = vrot.lane.b32.xlu0 %v1604, 32
        %v1895 = vpop.permute.xlu0 %1894
        %1896 = vrot.lane.b32.xlu0 %v1605, 32
        %v1897 = vpop.permute.xlu0 %1896
        %1898 = vrot.lane.b32.xlu0 %v1606, 32
        %v1899 = vpop.permute.xlu0 %1898
        %1900 = vrot.lane.b32.xlu0 %v1607, 32
        %v1901 = vpop.permute.xlu0 %1900
        %1902 = vrot.lane.b32.xlu0 %v1608, 32
        %v1903 = vpop.permute.xlu0 %1902
        %1904 = vrot.lane.b32.xlu0 %v1609, 32
        %v1905 = vpop.permute.xlu0 %1904
        %vm1938 = vcmask 523520
        %1939 = vst.msk [vmem:[#allocation2 + $0x10] sm:$0xff] %vm1938, %v1843
        %1940 = vst.msk [vmem:[#allocation2 + $0x18] sm:$0xff] %vm1938, %v1845
        %1941 = vst.msk [vmem:[#allocation2 + $0x20] sm:$0xff] %vm1938, %v1847
        %1942 = vst.msk [vmem:[#allocation2 + $0x28] sm:$0xff] %vm1938, %v1849
        %1943 = vst.msk [vmem:[#allocation2 + $0x30] sm:$0xff] %vm1938, %v1851
        %1944 = vst.msk [vmem:[#allocation2 + $0x38] sm:$0xff] %vm1938, %v1853
        %1945 = vst.msk [vmem:[#allocation2 + $0x40] sm:$0xff] %vm1938, %v1855
        %1946 = vst.msk [vmem:[#allocation2 + $0x48] sm:$0xff] %vm1938, %v1857
        %1947 = vst.msk [vmem:[#allocation2 + $0x50] sm:$0xff] %vm1938, %v1859
        %1948 = vst.msk [vmem:[#allocation2 + $0x58] sm:$0xff] %vm1938, %v1861
        %1949 = vst.msk [vmem:[#allocation2 + $0x60] sm:$0xff] %vm1938, %v1863
        %1950 = vst.msk [vmem:[#allocation2 + $0x68] sm:$0xff] %vm1938, %v1865
        %1951 = vst.msk [vmem:[#allocation2 + $0x70] sm:$0xff] %vm1938, %v1867
        %1952 = vst.msk [vmem:[#allocation2 + $0x78] sm:$0xff] %vm1938, %v1869
        %1953 = vst.msk [vmem:[#allocation2 + $0x80] sm:$0xff] %vm1938, %v1871
        %1954 = vst.msk [vmem:[#allocation2 + $0x88] sm:$0xff] %vm1938, %v1873
        %1955 = vst.msk [vmem:[#allocation2 + $0x90] sm:$0xff] %vm1938, %v1875
        %1956 = vst.msk [vmem:[#allocation2 + $0x98] sm:$0xff] %vm1938, %v1877
        %1957 = vst.msk [vmem:[#allocation2 + $0xa0] sm:$0xff] %vm1938, %v1879
        %1958 = vst.msk [vmem:[#allocation2 + $0xa8] sm:$0xff] %vm1938, %v1881
        %1959 = vst.msk [vmem:[#allocation2 + $0xb0] sm:$0xff] %vm1938, %v1883
        %1960 = vst.msk [vmem:[#allocation2 + $0xb8] sm:$0xff] %vm1938, %v1885
        %1961 = vst.msk [vmem:[#allocation2 + $0xc0] sm:$0xff] %vm1938, %v1887
        %1962 = vst.msk [vmem:[#allocation2 + $0xc8] sm:$0xff] %vm1938, %v1889
        %1963 = vst.msk [vmem:[#allocation2 + $0xd0] sm:$0xff] %vm1938, %v1891
        %1964 = vst.msk [vmem:[#allocation2 + $0xd8] sm:$0xff] %vm1938, %v1893
        %1965 = vst.msk [vmem:[#allocation2 + $0xe0] sm:$0xff] %vm1938, %v1895
        %1966 = vst.msk [vmem:[#allocation2 + $0xe8] sm:$0xff] %vm1938, %v1897
        %1967 = vst.msk [vmem:[#allocation2 + $0xf0] sm:$0xff] %vm1938, %v1899
        %1968 = vst.msk [vmem:[#allocation2 + $0xf8] sm:$0xff] %vm1938, %v1901
        %1969 = vst.msk [vmem:[#allocation2 + $0x100] sm:$0xff] %vm1938, %v1903
        %1970 = vst.msk [vmem:[#allocation2 + $0x108] sm:$0xff] %vm1938, %v1905
        %1971 = vst.msk [vmem:[#allocation2 + $0x11] sm:$0xff] %vm982, %v1682
        %1972 = vst.msk [vmem:[#allocation2 + $0x19] sm:$0xff] %vm982, %v1683
        %1973 = vst.msk [vmem:[#allocation2 + $0x21] sm:$0xff] %vm982, %v1684
        %1974 = vst.msk [vmem:[#allocation2 + $0x29] sm:$0xff] %vm982, %v1685
        %1975 = vst.msk [vmem:[#allocation2 + $0x31] sm:$0xff] %vm982, %v1686
        %1976 = vst.msk [vmem:[#allocation2 + $0x39] sm:$0xff] %vm982, %v1687
        %1977 = vst.msk [vmem:[#allocation2 + $0x41] sm:$0xff] %vm982, %v1688
        %1978 = vst.msk [vmem:[#allocation2 + $0x49] sm:$0xff] %vm982, %v1689
        %1979 = vst.msk [vmem:[#allocation2 + $0x51] sm:$0xff] %vm982, %v1690
        %1980 = vst.msk [vmem:[#allocation2 + $0x59] sm:$0xff] %vm982, %v1691
        %1981 = vst.msk [vmem:[#allocation2 + $0x61] sm:$0xff] %vm982, %v1692
        %1982 = vst.msk [vmem:[#allocation2 + $0x69] sm:$0xff] %vm982, %v1693
        %1983 = vst.msk [vmem:[#allocation2 + $0x71] sm:$0xff] %vm982, %v1694
        %1984 = vst.msk [vmem:[#allocation2 + $0x79] sm:$0xff] %vm982, %v1695
        %1985 = vst.msk [vmem:[#allocation2 + $0x81] sm:$0xff] %vm982, %v1696
        %1986 = vst.msk [vmem:[#allocation2 + $0x89] sm:$0xff] %vm982, %v1697
        %1987 = vst.msk [vmem:[#allocation2 + $0x91] sm:$0xff] %vm982, %v1698
        %1988 = vst.msk [vmem:[#allocation2 + $0x99] sm:$0xff] %vm982, %v1699
        %1989 = vst.msk [vmem:[#allocation2 + $0xa1] sm:$0xff] %vm982, %v1700
        %1990 = vst.msk [vmem:[#allocation2 + $0xa9] sm:$0xff] %vm982, %v1701
        %1991 = vst.msk [vmem:[#allocation2 + $0xb1] sm:$0xff] %vm982, %v1702
        %1992 = vst.msk [vmem:[#allocation2 + $0xb9] sm:$0xff] %vm982, %v1703
        %1993 = vst.msk [vmem:[#allocation2 + $0xc1] sm:$0xff] %vm982, %v1704
        %1994 = vst.msk [vmem:[#allocation2 + $0xc9] sm:$0xff] %vm982, %v1705
        %1995 = vst.msk [vmem:[#allocation2 + $0xd1] sm:$0xff] %vm982, %v1706
        %1996 = vst.msk [vmem:[#allocation2 + $0xd9] sm:$0xff] %vm982, %v1707
        %1997 = vst.msk [vmem:[#allocation2 + $0xe1] sm:$0xff] %vm982, %v1708
        %1998 = vst.msk [vmem:[#allocation2 + $0xe9] sm:$0xff] %vm982, %v1709
        %1999 = vst.msk [vmem:[#allocation2 + $0xf1] sm:$0xff] %vm982, %v1710
        %2000 = vst.msk [vmem:[#allocation2 + $0xf9] sm:$0xff] %vm982, %v1711
        %2001 = vst.msk [vmem:[#allocation2 + $0x101] sm:$0xff] %vm982, %v1712
        %2002 = vst.msk [vmem:[#allocation2 + $0x109] sm:$0xff] %vm982, %v1713
        %2035 = vrot.lane.b32.xlu0 %v1778, 64
        %v2036 = vpop.permute.xlu0 %2035
        %2037 = vrot.lane.b32.xlu0 %v1779, 64
        %v2038 = vpop.permute.xlu0 %2037
        %2039 = vrot.lane.b32.xlu0 %v1780, 64
        %v2040 = vpop.permute.xlu0 %2039
        %2041 = vrot.lane.b32.xlu0 %v1781, 64
        %v2042 = vpop.permute.xlu0 %2041
        %2043 = vrot.lane.b32.xlu0 %v1782, 64
        %v2044 = vpop.permute.xlu0 %2043
        %2045 = vrot.lane.b32.xlu0 %v1783, 64
        %v2046 = vpop.permute.xlu0 %2045
        %2047 = vrot.lane.b32.xlu0 %v1784, 64
        %v2048 = vpop.permute.xlu0 %2047
        %2049 = vrot.lane.b32.xlu0 %v1785, 64
        %v2050 = vpop.permute.xlu0 %2049
        %2051 = vrot.lane.b32.xlu0 %v1786, 64
        %v2052 = vpop.permute.xlu0 %2051
        %2053 = vrot.lane.b32.xlu0 %v1787, 64
        %v2054 = vpop.permute.xlu0 %2053
        %2055 = vrot.lane.b32.xlu0 %v1788, 64
        %v2056 = vpop.permute.xlu0 %2055
        %2057 = vrot.lane.b32.xlu0 %v1789, 64
        %v2058 = vpop.permute.xlu0 %2057
        %2059 = vrot.lane.b32.xlu0 %v1790, 64
        %v2060 = vpop.permute.xlu0 %2059
        %2061 = vrot.lane.b32.xlu0 %v1791, 64
        %v2062 = vpop.permute.xlu0 %2061
        %2063 = vrot.lane.b32.xlu0 %v1792, 64
        %v2064 = vpop.permute.xlu0 %2063
        %2065 = vrot.lane.b32.xlu0 %v1793, 64
        %v2066 = vpop.permute.xlu0 %2065
        %2067 = vrot.lane.b32.xlu0 %v1794, 64
        %v2068 = vpop.permute.xlu0 %2067
        %2069 = vrot.lane.b32.xlu0 %v1795, 64
        %v2070 = vpop.permute.xlu0 %2069
        %2071 = vrot.lane.b32.xlu0 %v1796, 64
        %v2072 = vpop.permute.xlu0 %2071
        %2073 = vrot.lane.b32.xlu0 %v1797, 64
        %v2074 = vpop.permute.xlu0 %2073
        %2075 = vrot.lane.b32.xlu0 %v1798, 64
        %v2076 = vpop.permute.xlu0 %2075
        %2077 = vrot.lane.b32.xlu0 %v1799, 64
        %v2078 = vpop.permute.xlu0 %2077
        %2079 = vrot.lane.b32.xlu0 %v1800, 64
        %v2080 = vpop.permute.xlu0 %2079
        %2081 = vrot.lane.b32.xlu0 %v1801, 64
        %v2082 = vpop.permute.xlu0 %2081
        %2083 = vrot.lane.b32.xlu0 %v1802, 64
        %v2084 = vpop.permute.xlu0 %2083
        %2085 = vrot.lane.b32.xlu0 %v1803, 64
        %v2086 = vpop.permute.xlu0 %2085
        %2087 = vrot.lane.b32.xlu0 %v1804, 64
        %v2088 = vpop.permute.xlu0 %2087
        %2089 = vrot.lane.b32.xlu0 %v1805, 64
        %v2090 = vpop.permute.xlu0 %2089
        %2091 = vrot.lane.b32.xlu0 %v1806, 64
        %v2092 = vpop.permute.xlu0 %2091
        %2093 = vrot.lane.b32.xlu0 %v1807, 64
        %v2094 = vpop.permute.xlu0 %2093
        %2095 = vrot.lane.b32.xlu0 %v1808, 64
        %v2096 = vpop.permute.xlu0 %2095
        %2097 = vrot.lane.b32.xlu0 %v1809, 64
        %v2098 = vpop.permute.xlu0 %2097
        %vm2131 = vcmask 785920
        %2132 = vst.msk [vmem:[#allocation2 + $0xf] sm:$0xff] %vm2131, %v2036
        %2133 = vst.msk [vmem:[#allocation2 + $0x17] sm:$0xff] %vm2131, %v2038
        %2134 = vst.msk [vmem:[#allocation2 + $0x1f] sm:$0xff] %vm2131, %v2040
        %2135 = vst.msk [vmem:[#allocation2 + $0x27] sm:$0xff] %vm2131, %v2042
        %2136 = vst.msk [vmem:[#allocation2 + $0x2f] sm:$0xff] %vm2131, %v2044
        %2137 = vst.msk [vmem:[#allocation2 + $0x37] sm:$0xff] %vm2131, %v2046
        %2138 = vst.msk [vmem:[#allocation2 + $0x3f] sm:$0xff] %vm2131, %v2048
        %2139 = vst.msk [vmem:[#allocation2 + $0x47] sm:$0xff] %vm2131, %v2050
        %2140 = vst.msk [vmem:[#allocation2 + $0x4f] sm:$0xff] %vm2131, %v2052
        %2141 = vst.msk [vmem:[#allocation2 + $0x57] sm:$0xff] %vm2131, %v2054
        %2142 = vst.msk [vmem:[#allocation2 + $0x5f] sm:$0xff] %vm2131, %v2056
        %2143 = vst.msk [vmem:[#allocation2 + $0x67] sm:$0xff] %vm2131, %v2058
        %2144 = vst.msk [vmem:[#allocation2 + $0x6f] sm:$0xff] %vm2131, %v2060
        %2145 = vst.msk [vmem:[#allocation2 + $0x77] sm:$0xff] %vm2131, %v2062
        %2146 = vst.msk [vmem:[#allocation2 + $0x7f] sm:$0xff] %vm2131, %v2064
        %2147 = vst.msk [vmem:[#allocation2 + $0x87] sm:$0xff] %vm2131, %v2066
        %2148 = vst.msk [vmem:[#allocation2 + $0x8f] sm:$0xff] %vm2131, %v2068
        %2149 = vst.msk [vmem:[#allocation2 + $0x97] sm:$0xff] %vm2131, %v2070
        %2150 = vst.msk [vmem:[#allocation2 + $0x9f] sm:$0xff] %vm2131, %v2072
        %2151 = vst.msk [vmem:[#allocation2 + $0xa7] sm:$0xff] %vm2131, %v2074
        %2152 = vst.msk [vmem:[#allocation2 + $0xaf] sm:$0xff] %vm2131, %v2076
        %2153 = vst.msk [vmem:[#allocation2 + $0xb7] sm:$0xff] %vm2131, %v2078
        %2154 = vst.msk [vmem:[#allocation2 + $0xbf] sm:$0xff] %vm2131, %v2080
        %2155 = vst.msk [vmem:[#allocation2 + $0xc7] sm:$0xff] %vm2131, %v2082
        %2156 = vst.msk [vmem:[#allocation2 + $0xcf] sm:$0xff] %vm2131, %v2084
        %2157 = vst.msk [vmem:[#allocation2 + $0xd7] sm:$0xff] %vm2131, %v2086
        %2158 = vst.msk [vmem:[#allocation2 + $0xdf] sm:$0xff] %vm2131, %v2088
        %2159 = vst.msk [vmem:[#allocation2 + $0xe7] sm:$0xff] %vm2131, %v2090
        %2160 = vst.msk [vmem:[#allocation2 + $0xef] sm:$0xff] %vm2131, %v2092
        %2161 = vst.msk [vmem:[#allocation2 + $0xf7] sm:$0xff] %vm2131, %v2094
        %2162 = vst.msk [vmem:[#allocation2 + $0xff] sm:$0xff] %vm2131, %v2096
        %2163 = vst.msk [vmem:[#allocation2 + $0x107] sm:$0xff] %vm2131, %v2098
        %v2164 = vld [vmem:[#allocation2] sm:$0xff]
        %v2165 = vld [vmem:[#allocation2 + $0x8] sm:$0xff]
        %v2166 = vld [vmem:[#allocation2 + $0x10] sm:$0xff]
        %v2167 = vld [vmem:[#allocation2 + $0x18] sm:$0xff]
        %v2168 = vld [vmem:[#allocation2 + $0x20] sm:$0xff]
        %v2169 = vld [vmem:[#allocation2 + $0x28] sm:$0xff]
        %v2170 = vld [vmem:[#allocation2 + $0x30] sm:$0xff]
        %v2171 = vld [vmem:[#allocation2 + $0x38] sm:$0xff]
        %v2172 = vld [vmem:[#allocation2 + $0x40] sm:$0xff]
        %v2173 = vld [vmem:[#allocation2 + $0x48] sm:$0xff]
        %v2174 = vld [vmem:[#allocation2 + $0x50] sm:$0xff]
        %v2175 = vld [vmem:[#allocation2 + $0x58] sm:$0xff]
        %v2176 = vld [vmem:[#allocation2 + $0x60] sm:$0xff]
        %v2177 = vld [vmem:[#allocation2 + $0x68] sm:$0xff]
        %v2178 = vld [vmem:[#allocation2 + $0x70] sm:$0xff]
        %v2179 = vld [vmem:[#allocation2 + $0x78] sm:$0xff]
        %v2180 = vld [vmem:[#allocation2 + $0x80] sm:$0xff]
        %v2181 = vld [vmem:[#allocation2 + $0x88] sm:$0xff]
        %v2182 = vld [vmem:[#allocation2 + $0x90] sm:$0xff]
        %v2183 = vld [vmem:[#allocation2 + $0x98] sm:$0xff]
        %v2184 = vld [vmem:[#allocation2 + $0xa0] sm:$0xff]
        %v2185 = vld [vmem:[#allocation2 + $0xa8] sm:$0xff]
        %v2186 = vld [vmem:[#allocation2 + $0xb0] sm:$0xff]
        %v2187 = vld [vmem:[#allocation2 + $0xb8] sm:$0xff]
        %v2188 = vld [vmem:[#allocation2 + $0xc0] sm:$0xff]
        %v2189 = vld [vmem:[#allocation2 + $0xc8] sm:$0xff]
        %v2190 = vld [vmem:[#allocation2 + $0xd0] sm:$0xff]
        %v2191 = vld [vmem:[#allocation2 + $0xd8] sm:$0xff]
        %v2192 = vld [vmem:[#allocation2 + $0xe0] sm:$0xff]
        %v2193 = vld [vmem:[#allocation2 + $0xe8] sm:$0xff]
        %v2194 = vld [vmem:[#allocation2 + $0xf0] sm:$0xff]
        %v2195 = vld [vmem:[#allocation2 + $0xf8] sm:$0xff]
        %v2196 = vld [vmem:[#allocation4] sm:$0xff]
        %v2197 = vld [vmem:[#allocation4 + $0x8] sm:$0xff]
        %v2198 = vld [vmem:[#allocation4 + $0x10] sm:$0xff]
        %v2199 = vld [vmem:[#allocation4 + $0x18] sm:$0xff]
        %v2200 = vld [vmem:[#allocation4 + $0x20] sm:$0xff]
        %v2201 = vld [vmem:[#allocation4 + $0x28] sm:$0xff]
        %v2202 = vld [vmem:[#allocation4 + $0x30] sm:$0xff]
        %v2203 = vld [vmem:[#allocation4 + $0x38] sm:$0xff]
        %v2204 = vld [vmem:[#allocation4 + $0x40] sm:$0xff]
        %v2205 = vld [vmem:[#allocation4 + $0x48] sm:$0xff]
        %v2206 = vld [vmem:[#allocation4 + $0x50] sm:$0xff]
        %v2207 = vld [vmem:[#allocation4 + $0x58] sm:$0xff]
        %v2208 = vld [vmem:[#allocation2 + $0x100] sm:$0xff]
        %v2209 = vld [vmem:[#allocation2 + $0x108] sm:$0xff]
        %s2210 = scalar_lea.vmem [#allocation4], 96
        %v2211 = vld [vmem:[%s2210] sm:$0xff]
        %v2212 = vld [vmem:[%s2210 + $0x8] sm:$0xff]
        %v2213 = vld [vmem:[%s2210 + $0x10] sm:$0xff]
        %v2214 = vld [vmem:[%s2210 + $0x18] sm:$0xff]
        %v2215 = vld [vmem:[%s2210 + $0x20] sm:$0xff]
        %v2216 = vld [vmem:[%s2210 + $0x28] sm:$0xff]
        %v2217 = vld [vmem:[%s2210 + $0x30] sm:$0xff]
        %v2218 = vld [vmem:[%s2210 + $0x38] sm:$0xff]
        %v2219 = vld [vmem:[%s2210 + $0x40] sm:$0xff]
        %v2220 = vld [vmem:[%s2210 + $0x48] sm:$0xff]
        %v2221 = vld [vmem:[%s2210 + $0x50] sm:$0xff]
        %v2222 = vld [vmem:[%s2210 + $0x58] sm:$0xff]
        %v2224 = vsel %vm1610, %v2166, 0
        %v2227 = vsel %vm1610, %v2167, 0
        %v2230 = vsel %vm1610, %v2168, 0
        %v2233 = vsel %vm1610, %v2169, 0
        %v2236 = vsel %vm1610, %v2170, 0
        %v2239 = vsel %vm1610, %v2171, 0
        %v2242 = vsel %vm1610, %v2172, 0
        %v2245 = vsel %vm1610, %v2173, 0
        %v2248 = vsel %vm1610, %v2174, 0
        %v2251 = vsel %vm1610, %v2175, 0
        %v2254 = vsel %vm1610, %v2176, 0
        %v2257 = vsel %vm1610, %v2177, 0
        %v2260 = vsel %vm1610, %v2178, 0
        %v2263 = vsel %vm1610, %v2179, 0
        %v2266 = vsel %vm1610, %v2180, 0
        %v2269 = vsel %vm1610, %v2181, 0
        %v2272 = vsel %vm1610, %v2182, 0
        %v2275 = vsel %vm1610, %v2183, 0
        %v2278 = vsel %vm1610, %v2184, 0
        %v2281 = vsel %vm1610, %v2185, 0
        %v2284 = vsel %vm1610, %v2186, 0
        %v2287 = vsel %vm1610, %v2187, 0
        %v2290 = vsel %vm1610, %v2188, 0
        %v2293 = vsel %vm1610, %v2189, 0
        %v2296 = vsel %vm1610, %v2190, 0
        %v2299 = vsel %vm1610, %v2191, 0
        %v2302 = vsel %vm1610, %v2192, 0
        %v2305 = vsel %vm1610, %v2193, 0
        %v2308 = vsel %vm1610, %v2194, 0
        %v2311 = vsel %vm1610, %v2195, 0
        %v2314 = vsel %vm1610, %v2208, 0
        %v2317 = vsel %vm1610, %v2209, 0
        %2319 = vmatprep.subr.mxu0 0.0
        %2320 = vmatpush1.msra.mxu0 %v2211
        %2321 = vmatprep.subr.mxu0 0.0
        %2322 = vmatpush1.msra.mxu0 %v2212
        %2323 = vmatprep.subr.mxu0 0.0
        %2324 = vmatpush1.msra.mxu0 %v2213
        %2325 = vmatprep.subr.mxu0 0.0
        %2326 = vmatpush1.msra.mxu0 %v2214
        %2327 = vmatprep.subr.mxu0 0.0
        %2328 = vmatpush1.msra.mxu0 %v2215
        %2329 = vmatprep.subr.mxu0 0.0
        %2330 = vmatpush1.msra.mxu0 %v2216
        %2331 = vmatprep.subr.mxu0 0.0
        %2332 = vmatpush1.msra.mxu0 %v2217
        %2333 = vmatprep.subr.mxu0 0.0
        %2334 = vmatpush1.msra.mxu0 %v2218
        %2335 = vmatprep.subr.mxu0 0.0
        %2336 = vmatpush1.msra.mxu0 %v2219
        %2337 = vmatprep.subr.mxu0 0.0
        %2338 = vmatpush1.msra.mxu0 %v2220
        %2339 = vmatprep.subr.mxu0 0.0
        %2340 = vmatpush1.msra.mxu0 %v2221
        %2341 = vmatprep.subr.mxu0 0.0
        %2342 = vmatpush1.msra.mxu0 %v2222
        %2343 = vmatprep.subr.mxu0 0.0
        %2344 = vmatpush1.msra.mxu0 0.0
        %2345 = vmatprep.subr.mxu0 0.0
        %2346 = vmatpush1.msra.mxu0 0.0
        %2347 = vmatprep.subr.mxu0 0.0
        %2348 = vmatpush1.msra.mxu0 0.0
        %2349 = vmatprep.subr.mxu0 0.0
        %2350 = vmatpush1.msra.mxu0 0.0
        %2351 = vmatprep.subr.mxu0 0.0
        %2352 = vmatpush1.msra.mxu0 0.0
        %2353 = vmatprep.subr.mxu0 0.0
        %2354 = vmatpush1.msra.mxu0 0.0
        %2355 = vmatprep.subr.mxu0 0.0
        %2356 = vmatpush1.msra.mxu0 0.0
        %2357 = vmatprep.subr.mxu0 0.0
        %2358 = vmatpush1.msra.mxu0 0.0
        %2359 = vmatprep.subr.mxu0 0.0
        %2360 = vmatpush1.msra.mxu0 0.0
        %2361 = vmatprep.subr.mxu0 0.0
        %2362 = vmatpush1.msra.mxu0 0.0
        %2363 = vmatprep.subr.mxu0 0.0
        %2364 = vmatpush1.msra.mxu0 0.0
        %2365 = vmatprep.subr.mxu0 0.0
        %2366 = vmatpush1.msra.mxu0 0.0
        %2367 = vmatprep.subr.mxu0 0.0
        %2368 = vmatpush1.msra.mxu0 0.0
        %2369 = vmatprep.subr.mxu0 0.0
        %2370 = vmatpush1.msra.mxu0 0.0
        %2371 = vmatprep.subr.mxu0 0.0
        %2372 = vmatpush1.msra.mxu0 0.0
        %2373 = vmatprep.subr.mxu0 0.0
        %2374 = vmatpush1.msra.mxu0 0.0
        %2375 = vmatprep.subr.mxu0 0.0
        %2376 = vmatpush1.msra.mxu0 0.0
        %2377 = vmatprep.subr.mxu0 0.0
        %2378 = vmatpush1.msra.mxu0 0.0
        %2379 = vmatprep.subr.mxu0 0.0
        %2380 = vmatpush1.msra.mxu0 0.0
        %2381 = vmatprep.subr.mxu0 0.0
        %2382 = vmatpush1.msra.mxu0 0.0
        %2383 = vmatprep.mubr.f32.mxu0 0.0
        %2384 = vmatmul.mubr.f32.gmra.mrb[0].mxu0 %v2224
        %v2385 = vpop.f32.mrb[0].mxu0
        %v2386 = vadd.f32 0.0, %v2385
        %v2387 = vpop.f32.mrb[0].mxu0
        %2388 = vmatprep.mubr.f32.mxu0 0.0
        %2389 = vmatmul.mubr.f32.gmra.mrb[0].mxu0 %v2227
        %v2390 = vpop.f32.mrb[0].mxu0
        %v2391 = vadd.f32 0.0, %v2390
        %v2392 = vpop.f32.mrb[0].mxu0
        %2393 = vmatprep.mubr.f32.mxu0 0.0
        %2394 = vmatmul.mubr.f32.gmra.mrb[0].mxu0 %v2230
        %v2395 = vpop.f32.mrb[0].mxu0
        %v2396 = vadd.f32 0.0, %v2395
        %v2397 = vpop.f32.mrb[0].mxu0
        %2398 = vmatprep.mubr.f32.mxu0 0.0
        %2399 = vmatmul.mubr.f32.gmra.mrb[0].mxu0 %v2233
        %v2400 = vpop.f32.mrb[0].mxu0
        %v2401 = vadd.f32 0.0, %v2400
        %v2402 = vpop.f32.mrb[0].mxu0
        %2403 = vmatprep.mubr.f32.mxu0 0.0
        %2404 = vmatmul.mubr.f32.gmra.mrb[0].mxu0 %v2236
        %v2405 = vpop.f32.mrb[0].mxu0
        %v2406 = vadd.f32 0.0, %v2405
        %v2407 = vpop.f32.mrb[0].mxu0
        %2408 = vmatprep.mubr.f32.mxu0 0.0
        %2409 = vmatmul.mubr.f32.gmra.mrb[0].mxu0 %v2239
        %v2410 = vpop.f32.mrb[0].mxu0
        %v2411 = vadd.f32 0.0, %v2410
        %v2412 = vpop.f32.mrb[0].mxu0
        %2413 = vmatprep.mubr.f32.mxu0 0.0
        %2414 = vmatmul.mubr.f32.gmra.mrb[0].mxu0 %v2242
        %v2415 = vpop.f32.mrb[0].mxu0
        %v2416 = vadd.f32 0.0, %v2415
        %v2417 = vpop.f32.mrb[0].mxu0
        %2418 = vmatprep.mubr.f32.mxu0 0.0
        %2419 = vmatmul.mubr.f32.gmra.mrb[0].mxu0 %v2245
        %v2420 = vpop.f32.mrb[0].mxu0
        %v2421 = vadd.f32 0.0, %v2420
        %v2422 = vpop.f32.mrb[0].mxu0
        %2423 = vmatprep.mubr.f32.mxu0 0.0
        %2424 = vmatmul.mubr.f32.gmra.mrb[0].mxu0 %v2248
        %v2425 = vpop.f32.mrb[0].mxu0
        %v2426 = vadd.f32 0.0, %v2425
        %v2427 = vpop.f32.mrb[0].mxu0
        %2428 = vmatprep.mubr.f32.mxu0 0.0
        %2429 = vmatmul.mubr.f32.gmra.mrb[0].mxu0 %v2251
        %v2430 = vpop.f32.mrb[0].mxu0
        %v2431 = vadd.f32 0.0, %v2430
        %v2432 = vpop.f32.mrb[0].mxu0
        %2433 = vmatprep.mubr.f32.mxu0 0.0
        %2434 = vmatmul.mubr.f32.gmra.mrb[0].mxu0 %v2254
        %v2435 = vpop.f32.mrb[0].mxu0
        %v2436 = vadd.f32 0.0, %v2435
        %v2437 = vpop.f32.mrb[0].mxu0
        %2438 = vmatprep.mubr.f32.mxu0 0.0
        %2439 = vmatmul.mubr.f32.gmra.mrb[0].mxu0 %v2257
        %v2440 = vpop.f32.mrb[0].mxu0
        %v2441 = vadd.f32 0.0, %v2440
        %v2442 = vpop.f32.mrb[0].mxu0
        %2443 = vmatprep.mubr.f32.mxu0 0.0
        %2444 = vmatmul.mubr.f32.gmra.mrb[0].mxu0 %v2260
        %v2445 = vpop.f32.mrb[0].mxu0
        %v2446 = vadd.f32 0.0, %v2445
        %v2447 = vpop.f32.mrb[0].mxu0
        %2448 = vmatprep.mubr.f32.mxu0 0.0
        %2449 = vmatmul.mubr.f32.gmra.mrb[0].mxu0 %v2263
        %v2450 = vpop.f32.mrb[0].mxu0
        %v2451 = vadd.f32 0.0, %v2450
        %v2452 = vpop.f32.mrb[0].mxu0
        %2453 = vmatprep.mubr.f32.mxu0 0.0
        %2454 = vmatmul.mubr.f32.gmra.mrb[0].mxu0 %v2266
        %v2455 = vpop.f32.mrb[0].mxu0
        %v2456 = vadd.f32 0.0, %v2455
        %v2457 = vpop.f32.mrb[0].mxu0
        %2458 = vmatprep.mubr.f32.mxu0 0.0
        %2459 = vmatmul.mubr.f32.gmra.mrb[0].mxu0 %v2269
        %v2460 = vpop.f32.mrb[0].mxu0
        %v2461 = vadd.f32 0.0, %v2460
        %v2462 = vpop.f32.mrb[0].mxu0
        %2463 = vmatprep.mubr.f32.mxu0 0.0
        %2464 = vmatmul.mubr.f32.gmra.mrb[0].mxu0 %v2272
        %v2465 = vpop.f32.mrb[0].mxu0
        %v2466 = vadd.f32 0.0, %v2465
        %v2467 = vpop.f32.mrb[0].mxu0
        %2468 = vmatprep.mubr.f32.mxu0 0.0
        %2469 = vmatmul.mubr.f32.gmra.mrb[0].mxu0 %v2275
        %v2470 = vpop.f32.mrb[0].mxu0
        %v2471 = vadd.f32 0.0, %v2470
        %v2472 = vpop.f32.mrb[0].mxu0
        %2473 = vmatprep.mubr.f32.mxu0 0.0
        %2474 = vmatmul.mubr.f32.gmra.mrb[0].mxu0 %v2278
        %v2475 = vpop.f32.mrb[0].mxu0
        %v2476 = vadd.f32 0.0, %v2475
        %v2477 = vpop.f32.mrb[0].mxu0
        %2478 = vmatprep.mubr.f32.mxu0 0.0
        %2479 = vmatmul.mubr.f32.gmra.mrb[0].mxu0 %v2281
        %v2480 = vpop.f32.mrb[0].mxu0
        %v2481 = vadd.f32 0.0, %v2480
        %v2482 = vpop.f32.mrb[0].mxu0
        %2483 = vmatprep.mubr.f32.mxu0 0.0
        %2484 = vmatmul.mubr.f32.gmra.mrb[0].mxu0 %v2284
        %v2485 = vpop.f32.mrb[0].mxu0
        %v2486 = vadd.f32 0.0, %v2485
        %v2487 = vpop.f32.mrb[0].mxu0
        %2488 = vmatprep.mubr.f32.mxu0 0.0
        %2489 = vmatmul.mubr.f32.gmra.mrb[0].mxu0 %v2287
        %v2490 = vpop.f32.mrb[0].mxu0
        %v2491 = vadd.f32 0.0, %v2490
        %v2492 = vpop.f32.mrb[0].mxu0
        %2493 = vmatprep.mubr.f32.mxu0 0.0
        %2494 = vmatmul.mubr.f32.gmra.mrb[0].mxu0 %v2290
        %v2495 = vpop.f32.mrb[0].mxu0
        %v2496 = vadd.f32 0.0, %v2495
        %v2497 = vpop.f32.mrb[0].mxu0
        %2498 = vmatprep.mubr.f32.mxu0 0.0
        %2499 = vmatmul.mubr.f32.gmra.mrb[0].mxu0 %v2293
        %v2500 = vpop.f32.mrb[0].mxu0
        %v2501 = vadd.f32 0.0, %v2500
        %v2502 = vpop.f32.mrb[0].mxu0
        %2503 = vmatprep.mubr.f32.mxu0 0.0
        %2504 = vmatmul.mubr.f32.gmra.mrb[0].mxu0 %v2296
        %v2505 = vpop.f32.mrb[0].mxu0
        %v2506 = vadd.f32 0.0, %v2505
        %v2507 = vpop.f32.mrb[0].mxu0
        %2508 = vmatprep.mubr.f32.mxu0 0.0
        %2509 = vmatmul.mubr.f32.gmra.mrb[0].mxu0 %v2299
        %v2510 = vpop.f32.mrb[0].mxu0
        %v2511 = vadd.f32 0.0, %v2510
        %v2512 = vpop.f32.mrb[0].mxu0
        %2513 = vmatprep.mubr.f32.mxu0 0.0
        %2514 = vmatmul.mubr.f32.gmra.mrb[0].mxu0 %v2302
        %v2515 = vpop.f32.mrb[0].mxu0
        %v2516 = vadd.f32 0.0, %v2515
        %v2517 = vpop.f32.mrb[0].mxu0
        %2518 = vmatprep.mubr.f32.mxu0 0.0
        %2519 = vmatmul.mubr.f32.gmra.mrb[0].mxu0 %v2305
        %v2520 = vpop.f32.mrb[0].mxu0
        %v2521 = vadd.f32 0.0, %v2520
        %v2522 = vpop.f32.mrb[0].mxu0
        %2523 = vmatprep.mubr.f32.mxu0 0.0
        %2524 = vmatmul.mubr.f32.gmra.mrb[0].mxu0 %v2308
        %v2525 = vpop.f32.mrb[0].mxu0
        %v2526 = vadd.f32 0.0, %v2525
        %v2527 = vpop.f32.mrb[0].mxu0
        %2528 = vmatprep.mubr.f32.mxu0 0.0
        %2529 = vmatmul.mubr.f32.gmra.mrb[0].mxu0 %v2311
        %v2530 = vpop.f32.mrb[0].mxu0
        %v2531 = vadd.f32 0.0, %v2530
        %v2532 = vpop.f32.mrb[0].mxu0
        %2533 = vmatprep.mubr.f32.mxu0 0.0
        %2534 = vmatmul.mubr.f32.gmra.mrb[0].mxu0 %v2314
        %v2535 = vpop.f32.mrb[0].mxu0
        %v2536 = vadd.f32 0.0, %v2535
        %v2537 = vpop.f32.mrb[0].mxu0
        %2538 = vmatprep.mubr.f32.mxu0 0.0
        %2539 = vmatmul.mubr.f32.gmra.mrb[0].mxu0 %v2317
        %v2540 = vpop.f32.mrb[0].mxu0
        %v2541 = vadd.f32 0.0, %v2540
        %v2542 = vpop.f32.mrb[0].mxu0
        %2543 = vdwg.mxu0
        %v2545 = vsel %vm1610, %v2164, 0
        %v2548 = vsel %vm1610, %v2165, 0
        %2550 = vmatprep.subr.mxu0 0.0
        %2551 = vmatpush1.msra.mxu0 %v2196
        %2552 = vmatprep.subr.mxu0 0.0
        %2553 = vmatpush1.msra.mxu0 %v2197
        %2554 = vmatprep.subr.mxu0 0.0
        %2555 = vmatpush1.msra.mxu0 %v2198
        %2556 = vmatprep.subr.mxu0 0.0
        %2557 = vmatpush1.msra.mxu0 %v2199
        %2558 = vmatprep.subr.mxu0 0.0
        %2559 = vmatpush1.msra.mxu0 %v2200
        %2560 = vmatprep.subr.mxu0 0.0
        %2561 = vmatpush1.msra.mxu0 %v2201
        %2562 = vmatprep.subr.mxu0 0.0
        %2563 = vmatpush1.msra.mxu0 %v2202
        %2564 = vmatprep.subr.mxu0 0.0
        %2565 = vmatpush1.msra.mxu0 %v2203
        %2566 = vmatprep.subr.mxu0 0.0
        %2567 = vmatpush1.msra.mxu0 %v2204
        %2568 = vmatprep.subr.mxu0 0.0
        %2569 = vmatpush1.msra.mxu0 %v2205
        %2570 = vmatprep.subr.mxu0 0.0
        %2571 = vmatpush1.msra.mxu0 %v2206
        %2572 = vmatprep.subr.mxu0 0.0
        %2573 = vmatpush1.msra.mxu0 %v2207
        %2574 = vmatprep.subr.mxu0 0.0
        %2575 = vmatpush1.msra.mxu0 0.0
        %2576 = vmatprep.subr.mxu0 0.0
        %2577 = vmatpush1.msra.mxu0 0.0
        %2578 = vmatprep.subr.mxu0 0.0
        %2579 = vmatpush1.msra.mxu0 0.0
        %2580 = vmatprep.subr.mxu0 0.0
        %2581 = vmatpush1.msra.mxu0 0.0
        %2582 = vmatprep.subr.mxu0 0.0
        %2583 = vmatpush1.msra.mxu0 0.0
        %2584 = vmatprep.subr.mxu0 0.0
        %2585 = vmatpush1.msra.mxu0 0.0
        %2586 = vmatprep.subr.mxu0 0.0
        %2587 = vmatpush1.msra.mxu0 0.0
        %2588 = vmatprep.subr.mxu0 0.0
        %2589 = vmatpush1.msra.mxu0 0.0
        %2590 = vmatprep.subr.mxu0 0.0
        %2591 = vmatpush1.msra.mxu0 0.0
        %2592 = vmatprep.subr.mxu0 0.0
        %2593 = vmatpush1.msra.mxu0 0.0
        %2594 = vmatprep.subr.mxu0 0.0
        %2595 = vmatpush1.msra.mxu0 0.0
        %2596 = vmatprep.subr.mxu0 0.0
        %2597 = vmatpush1.msra.mxu0 0.0
        %2598 = vmatprep.subr.mxu0 0.0
        %2599 = vmatpush1.msra.mxu0 0.0
        %2600 = vmatprep.subr.mxu0 0.0
        %2601 = vmatpush1.msra.mxu0 0.0
        %2602 = vmatprep.subr.mxu0 0.0
        %2603 = vmatpush1.msra.mxu0 0.0
        %2604 = vmatprep.subr.mxu0 0.0
        %2605 = vmatpush1.msra.mxu0 0.0
        %2606 = vmatprep.subr.mxu0 0.0
        %2607 = vmatpush1.msra.mxu0 0.0
        %2608 = vmatprep.subr.mxu0 0.0
        %2609 = vmatpush1.msra.mxu0 0.0
        %2610 = vmatprep.subr.mxu0 0.0
        %2611 = vmatpush1.msra.mxu0 0.0
        %2612 = vmatprep.subr.mxu0 0.0
        %2613 = vmatpush1.msra.mxu0 0.0
        %2614 = vmatprep.mubr.f32.mxu0 0.0
        %2615 = vmatmul.mubr.f32.gmra.mrb[0].mxu0 %v2545
        %v2616 = vpop.f32.mrb[0].mxu0
        %v2617 = vadd.f32 %v2386, %v2616
        %v2618 = vpop.f32.mrb[0].mxu0
        %2619 = vmatprep.mubr.f32.mxu0 0.0
        %2620 = vmatmul.mubr.f32.gmra.mrb[0].mxu0 %v2548
        %v2621 = vpop.f32.mrb[0].mxu0
        %v2622 = vadd.f32 %v2391, %v2621
        %v2623 = vpop.f32.mrb[0].mxu0
        %2624 = vmatprep.mubr.f32.mxu0 0.0
        %2625 = vmatmul.mubr.f32.gmra.mrb[0].mxu0 %v2224
        %v2626 = vpop.f32.mrb[0].mxu0
        %v2627 = vadd.f32 %v2396, %v2626
        %v2628 = vpop.f32.mrb[0].mxu0
        %2629 = vmatprep.mubr.f32.mxu0 0.0
        %2630 = vmatmul.mubr.f32.gmra.mrb[0].mxu0 %v2227
        %v2631 = vpop.f32.mrb[0].mxu0
        %v2632 = vadd.f32 %v2401, %v2631
        %v2633 = vpop.f32.mrb[0].mxu0
        %2634 = vmatprep.mubr.f32.mxu0 0.0
        %2635 = vmatmul.mubr.f32.gmra.mrb[0].mxu0 %v2230
        %v2636 = vpop.f32.mrb[0].mxu0
        %v2637 = vadd.f32 %v2406, %v2636
        %v2638 = vpop.f32.mrb[0].mxu0
        %2639 = vmatprep.mubr.f32.mxu0 0.0
        %2640 = vmatmul.mubr.f32.gmra.mrb[0].mxu0 %v2233
        %v2641 = vpop.f32.mrb[0].mxu0
        %v2642 = vadd.f32 %v2411, %v2641
        %v2643 = vpop.f32.mrb[0].mxu0
        %2644 = vmatprep.mubr.f32.mxu0 0.0
        %2645 = vmatmul.mubr.f32.gmra.mrb[0].mxu0 %v2236
        %v2646 = vpop.f32.mrb[0].mxu0
        %v2647 = vadd.f32 %v2416, %v2646
        %v2648 = vpop.f32.mrb[0].mxu0
        %2649 = vmatprep.mubr.f32.mxu0 0.0
        %2650 = vmatmul.mubr.f32.gmra.mrb[0].mxu0 %v2239
        %v2651 = vpop.f32.mrb[0].mxu0
        %v2652 = vadd.f32 %v2421, %v2651
        %v2653 = vpop.f32.mrb[0].mxu0
        %2654 = vmatprep.mubr.f32.mxu0 0.0
        %2655 = vmatmul.mubr.f32.gmra.mrb[0].mxu0 %v2242
        %v2656 = vpop.f32.mrb[0].mxu0
        %v2657 = vadd.f32 %v2426, %v2656
        %v2658 = vpop.f32.mrb[0].mxu0
        %2659 = vmatprep.mubr.f32.mxu0 0.0
        %2660 = vmatmul.mubr.f32.gmra.mrb[0].mxu0 %v2245
        %v2661 = vpop.f32.mrb[0].mxu0
        %v2662 = vadd.f32 %v2431, %v2661
        %v2663 = vpop.f32.mrb[0].mxu0
        %2664 = vmatprep.mubr.f32.mxu0 0.0
        %2665 = vmatmul.mubr.f32.gmra.mrb[0].mxu0 %v2248
        %v2666 = vpop.f32.mrb[0].mxu0
        %v2667 = vadd.f32 %v2436, %v2666
        %v2668 = vpop.f32.mrb[0].mxu0
        %2669 = vmatprep.mubr.f32.mxu0 0.0
        %2670 = vmatmul.mubr.f32.gmra.mrb[0].mxu0 %v2251
        %v2671 = vpop.f32.mrb[0].mxu0
        %v2672 = vadd.f32 %v2441, %v2671
        %v2673 = vpop.f32.mrb[0].mxu0
        %2674 = vmatprep.mubr.f32.mxu0 0.0
        %2675 = vmatmul.mubr.f32.gmra.mrb[0].mxu0 %v2254
        %v2676 = vpop.f32.mrb[0].mxu0
        %v2677 = vadd.f32 %v2446, %v2676
        %v2678 = vpop.f32.mrb[0].mxu0
        %2679 = vmatprep.mubr.f32.mxu0 0.0
        %2680 = vmatmul.mubr.f32.gmra.mrb[0].mxu0 %v2257
        %v2681 = vpop.f32.mrb[0].mxu0
        %v2682 = vadd.f32 %v2451, %v2681
        %v2683 = vpop.f32.mrb[0].mxu0
        %2684 = vmatprep.mubr.f32.mxu0 0.0
        %2685 = vmatmul.mubr.f32.gmra.mrb[0].mxu0 %v2260
        %v2686 = vpop.f32.mrb[0].mxu0
        %v2687 = vadd.f32 %v2456, %v2686
        %v2688 = vpop.f32.mrb[0].mxu0
        %2689 = vmatprep.mubr.f32.mxu0 0.0
        %2690 = vmatmul.mubr.f32.gmra.mrb[0].mxu0 %v2263
        %v2691 = vpop.f32.mrb[0].mxu0
        %v2692 = vadd.f32 %v2461, %v2691
        %v2693 = vpop.f32.mrb[0].mxu0
        %2694 = vmatprep.mubr.f32.mxu0 0.0
        %2695 = vmatmul.mubr.f32.gmra.mrb[0].mxu0 %v2266
        %v2696 = vpop.f32.mrb[0].mxu0
        %v2697 = vadd.f32 %v2466, %v2696
        %v2698 = vpop.f32.mrb[0].mxu0
        %2699 = vmatprep.mubr.f32.mxu0 0.0
        %2700 = vmatmul.mubr.f32.gmra.mrb[0].mxu0 %v2269
        %v2701 = vpop.f32.mrb[0].mxu0
        %v2702 = vadd.f32 %v2471, %v2701
        %v2703 = vpop.f32.mrb[0].mxu0
        %2704 = vmatprep.mubr.f32.mxu0 0.0
        %2705 = vmatmul.mubr.f32.gmra.mrb[0].mxu0 %v2272
        %v2706 = vpop.f32.mrb[0].mxu0
        %v2707 = vadd.f32 %v2476, %v2706
        %v2708 = vpop.f32.mrb[0].mxu0
        %2709 = vmatprep.mubr.f32.mxu0 0.0
        %2710 = vmatmul.mubr.f32.gmra.mrb[0].mxu0 %v2275
        %v2711 = vpop.f32.mrb[0].mxu0
        %v2712 = vadd.f32 %v2481, %v2711
        %v2713 = vpop.f32.mrb[0].mxu0
        %2714 = vmatprep.mubr.f32.mxu0 0.0
        %2715 = vmatmul.mubr.f32.gmra.mrb[0].mxu0 %v2278
        %v2716 = vpop.f32.mrb[0].mxu0
        %v2717 = vadd.f32 %v2486, %v2716
        %v2718 = vpop.f32.mrb[0].mxu0
        %2719 = vmatprep.mubr.f32.mxu0 0.0
        %2720 = vmatmul.mubr.f32.gmra.mrb[0].mxu0 %v2281
        %v2721 = vpop.f32.mrb[0].mxu0
        %v2722 = vadd.f32 %v2491, %v2721
        %v2723 = vpop.f32.mrb[0].mxu0
        %2724 = vmatprep.mubr.f32.mxu0 0.0
        %2725 = vmatmul.mubr.f32.gmra.mrb[0].mxu0 %v2284
        %v2726 = vpop.f32.mrb[0].mxu0
        %v2727 = vadd.f32 %v2496, %v2726
        %v2728 = vpop.f32.mrb[0].mxu0
        %2729 = vmatprep.mubr.f32.mxu0 0.0
        %2730 = vmatmul.mubr.f32.gmra.mrb[0].mxu0 %v2287
        %v2731 = vpop.f32.mrb[0].mxu0
        %v2732 = vadd.f32 %v2501, %v2731
        %v2733 = vpop.f32.mrb[0].mxu0
        %2734 = vmatprep.mubr.f32.mxu0 0.0
        %2735 = vmatmul.mubr.f32.gmra.mrb[0].mxu0 %v2290
        %v2736 = vpop.f32.mrb[0].mxu0
        %v2737 = vadd.f32 %v2506, %v2736
        %v2738 = vpop.f32.mrb[0].mxu0
        %2739 = vmatprep.mubr.f32.mxu0 0.0
        %2740 = vmatmul.mubr.f32.gmra.mrb[0].mxu0 %v2293
        %v2741 = vpop.f32.mrb[0].mxu0
        %v2742 = vadd.f32 %v2511, %v2741
        %v2743 = vpop.f32.mrb[0].mxu0
        %2744 = vmatprep.mubr.f32.mxu0 0.0
        %2745 = vmatmul.mubr.f32.gmra.mrb[0].mxu0 %v2296
        %v2746 = vpop.f32.mrb[0].mxu0
        %v2747 = vadd.f32 %v2516, %v2746
        %v2748 = vpop.f32.mrb[0].mxu0
        %2749 = vmatprep.mubr.f32.mxu0 0.0
        %2750 = vmatmul.mubr.f32.gmra.mrb[0].mxu0 %v2299
        %v2751 = vpop.f32.mrb[0].mxu0
        %v2752 = vadd.f32 %v2521, %v2751
        %v2753 = vpop.f32.mrb[0].mxu0
        %2754 = vmatprep.mubr.f32.mxu0 0.0
        %2755 = vmatmul.mubr.f32.gmra.mrb[0].mxu0 %v2302
        %v2756 = vpop.f32.mrb[0].mxu0
        %v2757 = vadd.f32 %v2526, %v2756
        %v2758 = vpop.f32.mrb[0].mxu0
        %2759 = vmatprep.mubr.f32.mxu0 0.0
        %2760 = vmatmul.mubr.f32.gmra.mrb[0].mxu0 %v2305
        %v2761 = vpop.f32.mrb[0].mxu0
        %v2762 = vadd.f32 %v2531, %v2761
        %v2763 = vpop.f32.mrb[0].mxu0
        %2764 = vmatprep.mubr.f32.mxu0 0.0
        %2765 = vmatmul.mubr.f32.gmra.mrb[0].mxu0 %v2308
        %v2766 = vpop.f32.mrb[0].mxu0
        %v2767 = vadd.f32 %v2536, %v2766
        %v2768 = vpop.f32.mrb[0].mxu0
        %2769 = vmatprep.mubr.f32.mxu0 0.0
        %2770 = vmatmul.mubr.f32.gmra.mrb[0].mxu0 %v2311
        %v2771 = vpop.f32.mrb[0].mxu0
        %v2772 = vadd.f32 %v2541, %v2771
        %v2773 = vpop.f32.mrb[0].mxu0
        %2774 = vdwg.mxu0
        %v2775 = vld [vmem:[#allocation2 + $0x20] sm:$0xff]
        %v2776 = vld [vmem:[#allocation2 + $0x28] sm:$0xff]
        %v2777 = vld [vmem:[#allocation2 + $0x30] sm:$0xff]
        %v2778 = vld [vmem:[#allocation2 + $0x38] sm:$0xff]
        %v2779 = vld [vmem:[#allocation2 + $0x40] sm:$0xff]
        %v2780 = vld [vmem:[#allocation2 + $0x48] sm:$0xff]
        %v2781 = vld [vmem:[#allocation2 + $0x50] sm:$0xff]
        %v2782 = vld [vmem:[#allocation2 + $0x58] sm:$0xff]
        %v2783 = vld [vmem:[#allocation2 + $0x60] sm:$0xff]
        %v2784 = vld [vmem:[#allocation2 + $0x68] sm:$0xff]
        %v2785 = vld [vmem:[#allocation2 + $0x70] sm:$0xff]
        %v2786 = vld [vmem:[#allocation2 + $0x78] sm:$0xff]
        %v2787 = vld [vmem:[#allocation2 + $0x80] sm:$0xff]
        %v2788 = vld [vmem:[#allocation2 + $0x88] sm:$0xff]
        %v2789 = vld [vmem:[#allocation2 + $0x90] sm:$0xff]
        %v2790 = vld [vmem:[#allocation2 + $0x98] sm:$0xff]
        %v2791 = vld [vmem:[#allocation2 + $0xa0] sm:$0xff]
        %v2792 = vld [vmem:[#allocation2 + $0xa8] sm:$0xff]
        %v2793 = vld [vmem:[#allocation2 + $0xb0] sm:$0xff]
        %v2794 = vld [vmem:[#allocation2 + $0xb8] sm:$0xff]
        %v2795 = vld [vmem:[#allocation2 + $0xc0] sm:$0xff]
        %v2796 = vld [vmem:[#allocation2 + $0xc8] sm:$0xff]
        %v2797 = vld [vmem:[#allocation2 + $0xd0] sm:$0xff]
        %v2798 = vld [vmem:[#allocation2 + $0xd8] sm:$0xff]
        %v2799 = vld [vmem:[#allocation2 + $0xe0] sm:$0xff]
        %v2800 = vld [vmem:[#allocation2 + $0xe8] sm:$0xff]
        %v2801 = vld [vmem:[#allocation2 + $0xf0] sm:$0xff]
        %v2802 = vld [vmem:[#allocation2 + $0xf8] sm:$0xff]
        %v2803 = vld [vmem:[#allocation2 + $0x100] sm:$0xff]
        %v2804 = vld [vmem:[#allocation2 + $0x108] sm:$0xff]
        %v2805 = vld [vmem:[#allocation2 + $0x110] sm:$0xff]
        %v2806 = vld [vmem:[#allocation2 + $0x118] sm:$0xff]
        %s2807 = scalar_lea.vmem [#allocation4], 192
        %v2808 = vld [vmem:[%s2807] sm:$0xff]
        %v2809 = vld [vmem:[%s2807 + $0x8] sm:$0xff]
        %v2810 = vld [vmem:[%s2807 + $0x10] sm:$0xff]
        %v2811 = vld [vmem:[%s2807 + $0x18] sm:$0xff]
        %v2812 = vld [vmem:[%s2807 + $0x20] sm:$0xff]
        %v2813 = vld [vmem:[%s2807 + $0x28] sm:$0xff]
        %v2814 = vld [vmem:[%s2807 + $0x30] sm:$0xff]
        %v2815 = vld [vmem:[%s2807 + $0x38] sm:$0xff]
        %v2816 = vld [vmem:[%s2807 + $0x40] sm:$0xff]
        %v2817 = vld [vmem:[%s2807 + $0x48] sm:$0xff]
        %v2818 = vld [vmem:[%s2807 + $0x50] sm:$0xff]
        %v2819 = vld [vmem:[%s2807 + $0x58] sm:$0xff]
        %v2821 = vsel %vm1610, %v2775, 0
        %v2824 = vsel %vm1610, %v2776, 0
        %v2827 = vsel %vm1610, %v2777, 0
        %v2830 = vsel %vm1610, %v2778, 0
        %v2833 = vsel %vm1610, %v2779, 0
        %v2836 = vsel %vm1610, %v2780, 0
        %v2839 = vsel %vm1610, %v2781, 0
        %v2842 = vsel %vm1610, %v2782, 0
        %v2845 = vsel %vm1610, %v2783, 0
        %v2848 = vsel %vm1610, %v2784, 0
        %v2851 = vsel %vm1610, %v2785, 0
        %v2854 = vsel %vm1610, %v2786, 0
        %v2857 = vsel %vm1610, %v2787, 0
        %v2860 = vsel %vm1610, %v2788, 0
        %v2863 = vsel %vm1610, %v2789, 0
        %v2866 = vsel %vm1610, %v2790, 0
        %v2869 = vsel %vm1610, %v2791, 0
        %v2872 = vsel %vm1610, %v2792, 0
        %v2875 = vsel %vm1610, %v2793, 0
        %v2878 = vsel %vm1610, %v2794, 0
        %v2881 = vsel %vm1610, %v2795, 0
        %v2884 = vsel %vm1610, %v2796, 0
        %v2887 = vsel %vm1610, %v2797, 0
        %v2890 = vsel %vm1610, %v2798, 0
        %v2893 = vsel %vm1610, %v2799, 0
        %v2896 = vsel %vm1610, %v2800, 0
        %v2899 = vsel %vm1610, %v2801, 0
        %v2902 = vsel %vm1610, %v2802, 0
        %v2905 = vsel %vm1610, %v2803, 0
        %v2908 = vsel %vm1610, %v2804, 0
        %v2911 = vsel %vm1610, %v2805, 0
        %v2914 = vsel %vm1610, %v2806, 0
        %2916 = vmatprep.subr.mxu0 0.0
        %2917 = vmatpush1.msra.mxu0 %v2808
        %2918 = vmatprep.subr.mxu0 0.0
        %2919 = vmatpush1.msra.mxu0 %v2809
        %2920 = vmatprep.subr.mxu0 0.0
        %2921 = vmatpush1.msra.mxu0 %v2810
        %2922 = vmatprep.subr.mxu0 0.0
        %2923 = vmatpush1.msra.mxu0 %v2811
        %2924 = vmatprep.subr.mxu0 0.0
        %2925 = vmatpush1.msra.mxu0 %v2812
        %2926 = vmatprep.subr.mxu0 0.0
        %2927 = vmatpush1.msra.mxu0 %v2813
        %2928 = vmatprep.subr.mxu0 0.0
        %2929 = vmatpush1.msra.mxu0 %v2814
        %2930 = vmatprep.subr.mxu0 0.0
        %2931 = vmatpush1.msra.mxu0 %v2815
        %2932 = vmatprep.subr.mxu0 0.0
        %2933 = vmatpush1.msra.mxu0 %v2816
        %2934 = vmatprep.subr.mxu0 0.0
        %2935 = vmatpush1.msra.mxu0 %v2817
        %2936 = vmatprep.subr.mxu0 0.0
        %2937 = vmatpush1.msra.mxu0 %v2818
        %2938 = vmatprep.subr.mxu0 0.0
        %2939 = vmatpush1.msra.mxu0 %v2819
        %2940 = vmatprep.subr.mxu0 0.0
        %2941 = vmatpush1.msra.mxu0 0.0
        %2942 = vmatprep.subr.mxu0 0.0
        %2943 = vmatpush1.msra.mxu0 0.0
        %2944 = vmatprep.subr.mxu0 0.0
        %2945 = vmatpush1.msra.mxu0 0.0
        %2946 = vmatprep.subr.mxu0 0.0
        %2947 = vmatpush1.msra.mxu0 0.0
        %2948 = vmatprep.subr.mxu0 0.0
        %2949 = vmatpush1.msra.mxu0 0.0
        %2950 = vmatprep.subr.mxu0 0.0
        %2951 = vmatpush1.msra.mxu0 0.0
        %2952 = vmatprep.subr.mxu0 0.0
        %2953 = vmatpush1.msra.mxu0 0.0
        %2954 = vmatprep.subr.mxu0 0.0
        %2955 = vmatpush1.msra.mxu0 0.0
        %2956 = vmatprep.subr.mxu0 0.0
        %2957 = vmatpush1.msra.mxu0 0.0
        %2958 = vmatprep.subr.mxu0 0.0
        %2959 = vmatpush1.msra.mxu0 0.0
        %2960 = vmatprep.subr.mxu0 0.0
        %2961 = vmatpush1.msra.mxu0 0.0
        %2962 = vmatprep.subr.mxu0 0.0
        %2963 = vmatpush1.msra.mxu0 0.0
        %2964 = vmatprep.subr.mxu0 0.0
        %2965 = vmatpush1.msra.mxu0 0.0
        %2966 = vmatprep.subr.mxu0 0.0
        %2967 = vmatpush1.msra.mxu0 0.0
        %2968 = vmatprep.subr.mxu0 0.0
        %2969 = vmatpush1.msra.mxu0 0.0
        %2970 = vmatprep.subr.mxu0 0.0
        %2971 = vmatpush1.msra.mxu0 0.0
        %2972 = vmatprep.subr.mxu0 0.0
        %2973 = vmatpush1.msra.mxu0 0.0
        %2974 = vmatprep.subr.mxu0 0.0
        %2975 = vmatpush1.msra.mxu0 0.0
        %2976 = vmatprep.subr.mxu0 0.0
        %2977 = vmatpush1.msra.mxu0 0.0
        %2978 = vmatprep.subr.mxu0 0.0
        %2979 = vmatpush1.msra.mxu0 0.0
        %2980 = vmatprep.mubr.f32.mxu0 0.0
        %2981 = vmatmul.mubr.f32.gmra.mrb[0].mxu0 %v2821
        %v2982 = vpop.f32.mrb[0].mxu0
        %v2983 = vadd.f32 0.0, %v2982
        %v2984 = vpop.f32.mrb[0].mxu0
        %2985 = vmatprep.mubr.f32.mxu0 0.0
        %2986 = vmatmul.mubr.f32.gmra.mrb[0].mxu0 %v2824
        %v2987 = vpop.f32.mrb[0].mxu0
        %v2988 = vadd.f32 0.0, %v2987
        %v2989 = vpop.f32.mrb[0].mxu0
        %2990 = vmatprep.mubr.f32.mxu0 0.0
        %2991 = vmatmul.mubr.f32.gmra.mrb[0].mxu0 %v2827
        %v2992 = vpop.f32.mrb[0].mxu0
        %v2993 = vadd.f32 0.0, %v2992
        %v2994 = vpop.f32.mrb[0].mxu0
        %2995 = vmatprep.mubr.f32.mxu0 0.0
        %2996 = vmatmul.mubr.f32.gmra.mrb[0].mxu0 %v2830
        %v2997 = vpop.f32.mrb[0].mxu0
        %v2998 = vadd.f32 0.0, %v2997
        %v2999 = vpop.f32.mrb[0].mxu0
        %3000 = vmatprep.mubr.f32.mxu0 0.0
        %3001 = vmatmul.mubr.f32.gmra.mrb[0].mxu0 %v2833
        %v3002 = vpop.f32.mrb[0].mxu0
        %v3003 = vadd.f32 0.0, %v3002
        %v3004 = vpop.f32.mrb[0].mxu0
        %3005 = vmatprep.mubr.f32.mxu0 0.0
        %3006 = vmatmul.mubr.f32.gmra.mrb[0].mxu0 %v2836
        %v3007 = vpop.f32.mrb[0].mxu0
        %v3008 = vadd.f32 0.0, %v3007
        %v3009 = vpop.f32.mrb[0].mxu0
        %3010 = vmatprep.mubr.f32.mxu0 0.0
        %3011 = vmatmul.mubr.f32.gmra.mrb[0].mxu0 %v2839
        %v3012 = vpop.f32.mrb[0].mxu0
        %v3013 = vadd.f32 0.0, %v3012
        %v3014 = vpop.f32.mrb[0].mxu0
        %3015 = vmatprep.mubr.f32.mxu0 0.0
        %3016 = vmatmul.mubr.f32.gmra.mrb[0].mxu0 %v2842
        %v3017 = vpop.f32.mrb[0].mxu0
        %v3018 = vadd.f32 0.0, %v3017
        %v3019 = vpop.f32.mrb[0].mxu0
        %3020 = vmatprep.mubr.f32.mxu0 0.0
        %3021 = vmatmul.mubr.f32.gmra.mrb[0].mxu0 %v2845
        %v3022 = vpop.f32.mrb[0].mxu0
        %v3023 = vadd.f32 0.0, %v3022
        %v3024 = vpop.f32.mrb[0].mxu0
        %3025 = vmatprep.mubr.f32.mxu0 0.0
        %3026 = vmatmul.mubr.f32.gmra.mrb[0].mxu0 %v2848
        %v3027 = vpop.f32.mrb[0].mxu0
        %v3028 = vadd.f32 0.0, %v3027
        %v3029 = vpop.f32.mrb[0].mxu0
        %3030 = vmatprep.mubr.f32.mxu0 0.0
        %3031 = vmatmul.mubr.f32.gmra.mrb[0].mxu0 %v2851
        %v3032 = vpop.f32.mrb[0].mxu0
        %v3033 = vadd.f32 0.0, %v3032
        %v3034 = vpop.f32.mrb[0].mxu0
        %3035 = vmatprep.mubr.f32.mxu0 0.0
        %3036 = vmatmul.mubr.f32.gmra.mrb[0].mxu0 %v2854
        %v3037 = vpop.f32.mrb[0].mxu0
        %v3038 = vadd.f32 0.0, %v3037
        %v3039 = vpop.f32.mrb[0].mxu0
        %3040 = vmatprep.mubr.f32.mxu0 0.0
        %3041 = vmatmul.mubr.f32.gmra.mrb[0].mxu0 %v2857
        %v3042 = vpop.f32.mrb[0].mxu0
        %v3043 = vadd.f32 0.0, %v3042
        %v3044 = vpop.f32.mrb[0].mxu0
        %3045 = vmatprep.mubr.f32.mxu0 0.0
        %3046 = vmatmul.mubr.f32.gmra.mrb[0].mxu0 %v2860
        %v3047 = vpop.f32.mrb[0].mxu0
        %v3048 = vadd.f32 0.0, %v3047
        %v3049 = vpop.f32.mrb[0].mxu0
        %3050 = vmatprep.mubr.f32.mxu0 0.0
        %3051 = vmatmul.mubr.f32.gmra.mrb[0].mxu0 %v2863
        %v3052 = vpop.f32.mrb[0].mxu0
        %v3053 = vadd.f32 0.0, %v3052
        %v3054 = vpop.f32.mrb[0].mxu0
        %3055 = vmatprep.mubr.f32.mxu0 0.0
        %3056 = vmatmul.mubr.f32.gmra.mrb[0].mxu0 %v2866
        %v3057 = vpop.f32.mrb[0].mxu0
        %v3058 = vadd.f32 0.0, %v3057
        %v3059 = vpop.f32.mrb[0].mxu0
        %3060 = vmatprep.mubr.f32.mxu0 0.0
        %3061 = vmatmul.mubr.f32.gmra.mrb[0].mxu0 %v2869
        %v3062 = vpop.f32.mrb[0].mxu0
        %v3063 = vadd.f32 0.0, %v3062
        %v3064 = vpop.f32.mrb[0].mxu0
        %3065 = vmatprep.mubr.f32.mxu0 0.0
        %3066 = vmatmul.mubr.f32.gmra.mrb[0].mxu0 %v2872
        %v3067 = vpop.f32.mrb[0].mxu0
        %v3068 = vadd.f32 0.0, %v3067
        %v3069 = vpop.f32.mrb[0].mxu0
        %3070 = vmatprep.mubr.f32.mxu0 0.0
        %3071 = vmatmul.mubr.f32.gmra.mrb[0].mxu0 %v2875
        %v3072 = vpop.f32.mrb[0].mxu0
        %v3073 = vadd.f32 0.0, %v3072
        %v3074 = vpop.f32.mrb[0].mxu0
        %3075 = vmatprep.mubr.f32.mxu0 0.0
        %3076 = vmatmul.mubr.f32.gmra.mrb[0].mxu0 %v2878
        %v3077 = vpop.f32.mrb[0].mxu0
        %v3078 = vadd.f32 0.0, %v3077
        %v3079 = vpop.f32.mrb[0].mxu0
        %3080 = vmatprep.mubr.f32.mxu0 0.0
        %3081 = vmatmul.mubr.f32.gmra.mrb[0].mxu0 %v2881
        %v3082 = vpop.f32.mrb[0].mxu0
        %v3083 = vadd.f32 0.0, %v3082
        %v3084 = vpop.f32.mrb[0].mxu0
        %3085 = vmatprep.mubr.f32.mxu0 0.0
        %3086 = vmatmul.mubr.f32.gmra.mrb[0].mxu0 %v2884
        %v3087 = vpop.f32.mrb[0].mxu0
        %v3088 = vadd.f32 0.0, %v3087
        %v3089 = vpop.f32.mrb[0].mxu0
        %3090 = vmatprep.mubr.f32.mxu0 0.0
        %3091 = vmatmul.mubr.f32.gmra.mrb[0].mxu0 %v2887
        %v3092 = vpop.f32.mrb[0].mxu0
        %v3093 = vadd.f32 0.0, %v3092
        %v3094 = vpop.f32.mrb[0].mxu0
        %3095 = vmatprep.mubr.f32.mxu0 0.0
        %3096 = vmatmul.mubr.f32.gmra.mrb[0].mxu0 %v2890
        %v3097 = vpop.f32.mrb[0].mxu0
        %v3098 = vadd.f32 0.0, %v3097
        %v3099 = vpop.f32.mrb[0].mxu0
        %3100 = vmatprep.mubr.f32.mxu0 0.0
        %3101 = vmatmul.mubr.f32.gmra.mrb[0].mxu0 %v2893
        %v3102 = vpop.f32.mrb[0].mxu0
        %v3103 = vadd.f32 0.0, %v3102
        %v3104 = vpop.f32.mrb[0].mxu0
        %3105 = vmatprep.mubr.f32.mxu0 0.0
        %3106 = vmatmul.mubr.f32.gmra.mrb[0].mxu0 %v2896
        %v3107 = vpop.f32.mrb[0].mxu0
        %v3108 = vadd.f32 0.0, %v3107
        %v3109 = vpop.f32.mrb[0].mxu0
        %3110 = vmatprep.mubr.f32.mxu0 0.0
        %3111 = vmatmul.mubr.f32.gmra.mrb[0].mxu0 %v2899
        %v3112 = vpop.f32.mrb[0].mxu0
        %v3113 = vadd.f32 0.0, %v3112
        %v3114 = vpop.f32.mrb[0].mxu0
        %3115 = vmatprep.mubr.f32.mxu0 0.0
        %3116 = vmatmul.mubr.f32.gmra.mrb[0].mxu0 %v2902
        %v3117 = vpop.f32.mrb[0].mxu0
        %v3118 = vadd.f32 0.0, %v3117
        %v3119 = vpop.f32.mrb[0].mxu0
        %3120 = vmatprep.mubr.f32.mxu0 0.0
        %3121 = vmatmul.mubr.f32.gmra.mrb[0].mxu0 %v2905
        %v3122 = vpop.f32.mrb[0].mxu0
        %v3123 = vadd.f32 0.0, %v3122
        %v3124 = vpop.f32.mrb[0].mxu0
        %3125 = vmatprep.mubr.f32.mxu0 0.0
        %3126 = vmatmul.mubr.f32.gmra.mrb[0].mxu0 %v2908
        %v3127 = vpop.f32.mrb[0].mxu0
        %v3128 = vadd.f32 0.0, %v3127
        %v3129 = vpop.f32.mrb[0].mxu0
        %3130 = vmatprep.mubr.f32.mxu0 0.0
        %3131 = vmatmul.mubr.f32.gmra.mrb[0].mxu0 %v2911
        %v3132 = vpop.f32.mrb[0].mxu0
        %v3133 = vadd.f32 0.0, %v3132
        %v3134 = vpop.f32.mrb[0].mxu0
        %3135 = vmatprep.mubr.f32.mxu0 0.0
        %3136 = vmatmul.mubr.f32.gmra.mrb[0].mxu0 %v2914
        %v3137 = vpop.f32.mrb[0].mxu0
        %v3138 = vadd.f32 0.0, %v3137
        %v3139 = vpop.f32.mrb[0].mxu0
        %3140 = vdwg.mxu0
        %v3141 = vadd.f32 %v2617, %v2983
        %v3142 = vadd.f32 %v2622, %v2988
        %v3143 = vadd.f32 %v2627, %v2993
        %v3144 = vadd.f32 %v2632, %v2998
        %v3145 = vadd.f32 %v2637, %v3003
        %v3146 = vadd.f32 %v2642, %v3008
        %v3147 = vadd.f32 %v2647, %v3013
        %v3148 = vadd.f32 %v2652, %v3018
        %v3149 = vadd.f32 %v2657, %v3023
        %v3150 = vadd.f32 %v2662, %v3028
        %v3151 = vadd.f32 %v2667, %v3033
        %v3152 = vadd.f32 %v2672, %v3038
        %v3153 = vadd.f32 %v2677, %v3043
        %v3154 = vadd.f32 %v2682, %v3048
        %v3155 = vadd.f32 %v2687, %v3053
        %v3156 = vadd.f32 %v2692, %v3058
        %v3157 = vadd.f32 %v2697, %v3063
        %v3158 = vadd.f32 %v2702, %v3068
        %v3159 = vadd.f32 %v2707, %v3073
        %v3160 = vadd.f32 %v2712, %v3078
        %v3161 = vadd.f32 %v2717, %v3083
        %v3162 = vadd.f32 %v2722, %v3088
        %v3163 = vadd.f32 %v2727, %v3093
        %v3164 = vadd.f32 %v2732, %v3098
        %v3165 = vadd.f32 %v2737, %v3103
        %v3166 = vadd.f32 %v2742, %v3108
        %v3167 = vadd.f32 %v2747, %v3113
        %v3168 = vadd.f32 %v2752, %v3118
        %v3169 = vadd.f32 %v2757, %v3123
        %v3170 = vadd.f32 %v2762, %v3128
        %v3171 = vadd.f32 %v2767, %v3133
        %v3172 = vadd.f32 %v2772, %v3138
        %v3173 = vld [vmem:[%s5] sm:$0x1]
        %vm3174 = vcmask 523264
        %v3175 = vsel %vm3174, %v3141, 0.0
        %v3176 = vsel %vm3174, %v3142, 0.0
        %v3177 = vadd.f32 %v3175, %v3176
        %v3178 = vsel %vm3174, %v3143, 0.0
        %v3179 = vadd.f32 %v3177, %v3178
        %v3180 = vsel %vm3174, %v3144, 0.0
        %v3181 = vadd.f32 %v3179, %v3180
        %v3182 = vsel %vm3174, %v3145, 0.0
        %v3183 = vadd.f32 %v3181, %v3182
        %v3184 = vsel %vm3174, %v3146, 0.0
        %v3185 = vadd.f32 %v3183, %v3184
        %v3186 = vsel %vm3174, %v3147, 0.0
        %v3187 = vadd.f32 %v3185, %v3186
        %v3188 = vsel %vm3174, %v3148, 0.0
        %v3189 = vadd.f32 %v3187, %v3188
        %v3190 = vsel %vm3174, %v3149, 0.0
        %v3191 = vadd.f32 %v3189, %v3190
        %v3192 = vsel %vm3174, %v3150, 0.0
        %v3193 = vadd.f32 %v3191, %v3192
        %v3194 = vsel %vm3174, %v3151, 0.0
        %v3195 = vadd.f32 %v3193, %v3194
        %v3196 = vsel %vm3174, %v3152, 0.0
        %v3197 = vadd.f32 %v3195, %v3196
        %v3198 = vsel %vm3174, %v3153, 0.0
        %v3199 = vadd.f32 %v3197, %v3198
        %v3200 = vsel %vm3174, %v3154, 0.0
        %v3201 = vadd.f32 %v3199, %v3200
        %v3202 = vsel %vm3174, %v3155, 0.0
        %v3203 = vadd.f32 %v3201, %v3202
        %v3204 = vsel %vm3174, %v3156, 0.0
        %v3205 = vadd.f32 %v3203, %v3204
        %v3206 = vsel %vm3174, %v3157, 0.0
        %v3207 = vadd.f32 %v3205, %v3206
        %v3208 = vsel %vm3174, %v3158, 0.0
        %v3209 = vadd.f32 %v3207, %v3208
        %v3210 = vsel %vm3174, %v3159, 0.0
        %v3211 = vadd.f32 %v3209, %v3210
        %v3212 = vsel %vm3174, %v3160, 0.0
        %v3213 = vadd.f32 %v3211, %v3212
        %v3214 = vsel %vm3174, %v3161, 0.0
        %v3215 = vadd.f32 %v3213, %v3214
        %v3216 = vsel %vm3174, %v3162, 0.0
        %v3217 = vadd.f32 %v3215, %v3216
        %v3218 = vsel %vm3174, %v3163, 0.0
        %v3219 = vadd.f32 %v3217, %v3218
        %v3220 = vsel %vm3174, %v3164, 0.0
        %v3221 = vadd.f32 %v3219, %v3220
        %v3222 = vsel %vm3174, %v3165, 0.0
        %v3223 = vadd.f32 %v3221, %v3222
        %v3224 = vsel %vm3174, %v3166, 0.0
        %v3225 = vadd.f32 %v3223, %v3224
        %v3226 = vsel %vm3174, %v3167, 0.0
        %v3227 = vadd.f32 %v3225, %v3226
        %v3228 = vsel %vm3174, %v3168, 0.0
        %v3229 = vadd.f32 %v3227, %v3228
        %v3230 = vsel %vm3174, %v3169, 0.0
        %v3231 = vadd.f32 %v3229, %v3230
        %v3232 = vsel %vm3174, %v3170, 0.0
        %v3233 = vadd.f32 %v3231, %v3232
        %v3234 = vsel %vm3174, %v3171, 0.0
        %v3235 = vadd.f32 %v3233, %v3234
        %v3236 = vsel %vm3174, %v3172, 0.0
        %v3237 = vadd.f32 %v3235, %v3236
        %v3238 = vrot.slane %v3237, 4
        %v3239 = vadd.f32 %v3237, %v3238
        %v3240 = vrot.slane %v3239, 2
        %v3241 = vadd.f32 %v3239, %v3240
        %v3242 = vrot.slane %v3241, 1
        %v3243 = vadd.f32 %v3241, %v3242
        %v3244 = vmul.f32 %v3141, %v3141
        %v3245 = vmul.f32 %v3142, %v3142
        %v3246 = vmul.f32 %v3143, %v3143
        %v3247 = vmul.f32 %v3144, %v3144
        %v3248 = vmul.f32 %v3145, %v3145
        %v3249 = vmul.f32 %v3146, %v3146
        %v3250 = vmul.f32 %v3147, %v3147
        %v3251 = vmul.f32 %v3148, %v3148
        %v3252 = vmul.f32 %v3149, %v3149
        %v3253 = vmul.f32 %v3150, %v3150
        %v3254 = vmul.f32 %v3151, %v3151
        %v3255 = vmul.f32 %v3152, %v3152
        %v3256 = vmul.f32 %v3153, %v3153
        %v3257 = vmul.f32 %v3154, %v3154
        %v3258 = vmul.f32 %v3155, %v3155
        %v3259 = vmul.f32 %v3156, %v3156
        %v3260 = vmul.f32 %v3157, %v3157
        %v3261 = vmul.f32 %v3158, %v3158
        %v3262 = vmul.f32 %v3159, %v3159
        %v3263 = vmul.f32 %v3160, %v3160
        %v3264 = vmul.f32 %v3161, %v3161
        %v3265 = vmul.f32 %v3162, %v3162
        %v3266 = vmul.f32 %v3163, %v3163
        %v3267 = vmul.f32 %v3164, %v3164
        %v3268 = vmul.f32 %v3165, %v3165
        %v3269 = vmul.f32 %v3166, %v3166
        %v3270 = vmul.f32 %v3167, %v3167
        %v3271 = vmul.f32 %v3168, %v3168
        %v3272 = vmul.f32 %v3169, %v3169
        %v3273 = vmul.f32 %v3170, %v3170
        %v3274 = vmul.f32 %v3171, %v3171
        %v3275 = vmul.f32 %v3172, %v3172
        %v3276 = vsel %vm3174, %v3244, 0.0
        %v3277 = vsel %vm3174, %v3245, 0.0
        %v3278 = vadd.f32 %v3276, %v3277
        %v3279 = vsel %vm3174, %v3246, 0.0
        %v3280 = vadd.f32 %v3278, %v3279
        %v3281 = vsel %vm3174, %v3247, 0.0
        %v3282 = vadd.f32 %v3280, %v3281
        %v3283 = vsel %vm3174, %v3248, 0.0
        %v3284 = vadd.f32 %v3282, %v3283
        %v3285 = vsel %vm3174, %v3249, 0.0
        %v3286 = vadd.f32 %v3284, %v3285
        %v3287 = vsel %vm3174, %v3250, 0.0
        %v3288 = vadd.f32 %v3286, %v3287
        %v3289 = vsel %vm3174, %v3251, 0.0
        %v3290 = vadd.f32 %v3288, %v3289
        %v3291 = vsel %vm3174, %v3252, 0.0
        %v3292 = vadd.f32 %v3290, %v3291
        %v3293 = vsel %vm3174, %v3253, 0.0
        %v3294 = vadd.f32 %v3292, %v3293
        %v3295 = vsel %vm3174, %v3254, 0.0
        %v3296 = vadd.f32 %v3294, %v3295
        %v3297 = vsel %vm3174, %v3255, 0.0
        %v3298 = vadd.f32 %v3296, %v3297
        %v3299 = vsel %vm3174, %v3256, 0.0
        %v3300 = vadd.f32 %v3298, %v3299
        %v3301 = vsel %vm3174, %v3257, 0.0
        %v3302 = vadd.f32 %v3300, %v3301
        %v3303 = vsel %vm3174, %v3258, 0.0
        %v3304 = vadd.f32 %v3302, %v3303
        %v3305 = vsel %vm3174, %v3259, 0.0
        %v3306 = vadd.f32 %v3304, %v3305
        %v3307 = vsel %vm3174, %v3260, 0.0
        %v3308 = vadd.f32 %v3306, %v3307
        %v3309 = vsel %vm3174, %v3261, 0.0
        %v3310 = vadd.f32 %v3308, %v3309
        %v3311 = vsel %vm3174, %v3262, 0.0
        %v3312 = vadd.f32 %v3310, %v3311
        %v3313 = vsel %vm3174, %v3263, 0.0
        %v3314 = vadd.f32 %v3312, %v3313
        %v3315 = vsel %vm3174, %v3264, 0.0
        %v3316 = vadd.f32 %v3314, %v3315
        %v3317 = vsel %vm3174, %v3265, 0.0
        %v3318 = vadd.f32 %v3316, %v3317
        %v3319 = vsel %vm3174, %v3266, 0.0
        %v3320 = vadd.f32 %v3318, %v3319
        %v3321 = vsel %vm3174, %v3267, 0.0
        %v3322 = vadd.f32 %v3320, %v3321
        %v3323 = vsel %vm3174, %v3268, 0.0
        %v3324 = vadd.f32 %v3322, %v3323
        %v3325 = vsel %vm3174, %v3269, 0.0
        %v3326 = vadd.f32 %v3324, %v3325
        %v3327 = vsel %vm3174, %v3270, 0.0
        %v3328 = vadd.f32 %v3326, %v3327
        %v3329 = vsel %vm3174, %v3271, 0.0
        %v3330 = vadd.f32 %v3328, %v3329
        %v3331 = vsel %vm3174, %v3272, 0.0
        %v3332 = vadd.f32 %v3330, %v3331
        %v3333 = vsel %vm3174, %v3273, 0.0
        %v3334 = vadd.f32 %v3332, %v3333
        %v3335 = vsel %vm3174, %v3274, 0.0
        %v3336 = vadd.f32 %v3334, %v3335
        %v3337 = vsel %vm3174, %v3275, 0.0
        %v3338 = vadd.f32 %v3336, %v3337
        %v3339 = vrot.slane %v3338, 4
        %v3340 = vadd.f32 %v3338, %v3339
        %v3341 = vrot.slane %v3340, 2
        %v3342 = vadd.f32 %v3340, %v3341
        %v3343 = vrot.slane %v3342, 1
        %v3344 = vadd.f32 %v3342, %v3343
        %v3345 = vmul.f32 %v3173, 256.0
        %v3346 = vadd.f32 %v3243, %v3345
        %v3347 = vmul.f32 %v3173, 2.0
        %v3348 = vmul.f32 %v3347, %v3243
        %v3349 = vadd.f32 %v3344, %v3348
        %v3350 = vmul.f32 %v3345, %v3173
        %v3351 = vadd.f32 %v3349, %v3350
        %v3352 = vld [vmem:[%s6] sm:$0xff]
        %v3353 = vld [vmem:[%s6 + $0x8] sm:$0xff]
        %v3354 = vld [vmem:[%s6 + $0x10] sm:$0xff]
        %v3355 = vld [vmem:[%s6 + $0x18] sm:$0xff]
        %v3356 = vld [vmem:[%s6 + $0x20] sm:$0xff]
        %v3357 = vld [vmem:[%s6 + $0x28] sm:$0xff]
        %v3358 = vld [vmem:[%s6 + $0x30] sm:$0xff]
        %v3359 = vld [vmem:[%s6 + $0x38] sm:$0xff]
        %v3361 = vsel %vm3174, %v3346, 0
        %3363 = vmatprep.subr.mxu0 0.0
        %3364 = vmatpush1.msra.mxu0 %v3352
        %3365 = vmatprep.subr.mxu0 0.0
        %3366 = vmatpush1.msra.mxu0 %v3353
        %3367 = vmatprep.subr.mxu0 0.0
        %3368 = vmatpush1.msra.mxu0 %v3354
        %3369 = vmatprep.subr.mxu0 0.0
        %3370 = vmatpush1.msra.mxu0 %v3355
        %3371 = vmatprep.subr.mxu0 0.0
        %3372 = vmatpush1.msra.mxu0 %v3356
        %3373 = vmatprep.subr.mxu0 0.0
        %3374 = vmatpush1.msra.mxu0 %v3357
        %3375 = vmatprep.subr.mxu0 0.0
        %3376 = vmatpush1.msra.mxu0 %v3358
        %3377 = vmatprep.subr.mxu0 0.0
        %3378 = vmatpush1.msra.mxu0 %v3359
        %3379 = vmatprep.subr.mxu0 0.0
        %3380 = vmatpush1.msra.mxu0 0.0
        %3381 = vmatprep.subr.mxu0 0.0
        %3382 = vmatpush1.msra.mxu0 0.0
        %3383 = vmatprep.subr.mxu0 0.0
        %3384 = vmatpush1.msra.mxu0 0.0
        %3385 = vmatprep.subr.mxu0 0.0
        %3386 = vmatpush1.msra.mxu0 0.0
        %3387 = vmatprep.subr.mxu0 0.0
        %3388 = vmatpush1.msra.mxu0 0.0
        %3389 = vmatprep.subr.mxu0 0.0
        %3390 = vmatpush1.msra.mxu0 0.0
        %3391 = vmatprep.subr.mxu0 0.0
        %3392 = vmatpush1.msra.mxu0 0.0
        %3393 = vmatprep.subr.mxu0 0.0
        %3394 = vmatpush1.msra.mxu0 0.0
        %3395 = vmatprep.subr.mxu0 0.0
        %3396 = vmatpush1.msra.mxu0 0.0
        %3397 = vmatprep.subr.mxu0 0.0
        %3398 = vmatpush1.msra.mxu0 0.0
        %3399 = vmatprep.subr.mxu0 0.0
        %3400 = vmatpush1.msra.mxu0 0.0
        %3401 = vmatprep.subr.mxu0 0.0
        %3402 = vmatpush1.msra.mxu0 0.0
        %3403 = vmatprep.subr.mxu0 0.0
        %3404 = vmatpush1.msra.mxu0 0.0
        %3405 = vmatprep.subr.mxu0 0.0
        %3406 = vmatpush1.msra.mxu0 0.0
        %3407 = vmatprep.subr.mxu0 0.0
        %3408 = vmatpush1.msra.mxu0 0.0
        %3409 = vmatprep.subr.mxu0 0.0
        %3410 = vmatpush1.msra.mxu0 0.0
        %3411 = vmatprep.subr.mxu0 0.0
        %3412 = vmatpush1.msra.mxu0 0.0
        %3413 = vmatprep.subr.mxu0 0.0
        %3414 = vmatpush1.msra.mxu0 0.0
        %3415 = vmatprep.subr.mxu0 0.0
        %3416 = vmatpush1.msra.mxu0 0.0
        %3417 = vmatprep.subr.mxu0 0.0
        %3418 = vmatpush1.msra.mxu0 0.0
        %3419 = vmatprep.subr.mxu0 0.0
        %3420 = vmatpush1.msra.mxu0 0.0
        %3421 = vmatprep.subr.mxu0 0.0
        %3422 = vmatpush1.msra.mxu0 0.0
        %3423 = vmatprep.subr.mxu0 0.0
        %3424 = vmatpush1.msra.mxu0 0.0
        %3425 = vmatprep.subr.mxu0 0.0
        %3426 = vmatpush1.msra.mxu0 0.0
        %3427 = vmatprep.mubr.f32.mxu0 0.0
        %3428 = vmatmul.mubr.f32.gmra.mrb[0].mxu0 %v3361
        %v3429 = vpop.f32.mrb[0].mxu0
        %v3430 = vadd.f32 0.0, %v3429
        %v3431 = vpop.f32.mrb[0].mxu0
        %3432 = vdwg.mxu0
        %v3434 = vsel %vm3174, %v3351, 0
        %3436 = vmatprep.subr.mxu0 0.0
        %3437 = vmatpush1.msra.mxu0 %v3352
        %3438 = vmatprep.subr.mxu0 0.0
        %3439 = vmatpush1.msra.mxu0 %v3353
        %3440 = vmatprep.subr.mxu0 0.0
        %3441 = vmatpush1.msra.mxu0 %v3354
        %3442 = vmatprep.subr.mxu0 0.0
        %3443 = vmatpush1.msra.mxu0 %v3355
        %3444 = vmatprep.subr.mxu0 0.0
        %3445 = vmatpush1.msra.mxu0 %v3356
        %3446 = vmatprep.subr.mxu0 0.0
        %3447 = vmatpush1.msra.mxu0 %v3357
        %3448 = vmatprep.subr.mxu0 0.0
        %3449 = vmatpush1.msra.mxu0 %v3358
        %3450 = vmatprep.subr.mxu0 0.0
        %3451 = vmatpush1.msra.mxu0 %v3359
        %3452 = vmatprep.subr.mxu0 0.0
        %3453 = vmatpush1.msra.mxu0 0.0
        %3454 = vmatprep.subr.mxu0 0.0
        %3455 = vmatpush1.msra.mxu0 0.0
        %3456 = vmatprep.subr.mxu0 0.0
        %3457 = vmatpush1.msra.mxu0 0.0
        %3458 = vmatprep.subr.mxu0 0.0
        %3459 = vmatpush1.msra.mxu0 0.0
        %3460 = vmatprep.subr.mxu0 0.0
        %3461 = vmatpush1.msra.mxu0 0.0
        %3462 = vmatprep.subr.mxu0 0.0
        %3463 = vmatpush1.msra.mxu0 0.0
        %3464 = vmatprep.subr.mxu0 0.0
        %3465 = vmatpush1.msra.mxu0 0.0
        %3466 = vmatprep.subr.mxu0 0.0
        %3467 = vmatpush1.msra.mxu0 0.0
        %3468 = vmatprep.subr.mxu0 0.0
        %3469 = vmatpush1.msra.mxu0 0.0
        %3470 = vmatprep.subr.mxu0 0.0
        %3471 = vmatpush1.msra.mxu0 0.0
        %3472 = vmatprep.subr.mxu0 0.0
        %3473 = vmatpush1.msra.mxu0 0.0
        %3474 = vmatprep.subr.mxu0 0.0
        %3475 = vmatpush1.msra.mxu0 0.0
        %3476 = vmatprep.subr.mxu0 0.0
        %3477 = vmatpush1.msra.mxu0 0.0
        %3478 = vmatprep.subr.mxu0 0.0
        %3479 = vmatpush1.msra.mxu0 0.0
        %3480 = vmatprep.subr.mxu0 0.0
        %3481 = vmatpush1.msra.mxu0 0.0
        %3482 = vmatprep.subr.mxu0 0.0
        %3483 = vmatpush1.msra.mxu0 0.0
        %3484 = vmatprep.subr.mxu0 0.0
        %3485 = vmatpush1.msra.mxu0 0.0
        %3486 = vmatprep.subr.mxu0 0.0
        %3487 = vmatpush1.msra.mxu0 0.0
        %3488 = vmatprep.subr.mxu0 0.0
        %3489 = vmatpush1.msra.mxu0 0.0
        %3490 = vmatprep.subr.mxu0 0.0
        %3491 = vmatpush1.msra.mxu0 0.0
        %3492 = vmatprep.subr.mxu0 0.0
        %3493 = vmatpush1.msra.mxu0 0.0
        %3494 = vmatprep.subr.mxu0 0.0
        %3495 = vmatpush1.msra.mxu0 0.0
        %3496 = vmatprep.subr.mxu0 0.0
        %3497 = vmatpush1.msra.mxu0 0.0
        %3498 = vmatprep.subr.mxu0 0.0
        %3499 = vmatpush1.msra.mxu0 0.0
        %3500 = vmatprep.mubr.f32.mxu0 0.0
        %3501 = vmatmul.mubr.f32.gmra.mrb[0].mxu0 %v3434
        %v3502 = vpop.f32.mrb[0].mxu0
        %v3503 = vadd.f32 0.0, %v3502
        %v3504 = vpop.f32.mrb[0].mxu0
        %3505 = vdwg.mxu0
        %v3506 = vmul.f32 %v3430, %v3430
        %v3507 = vsub.f32 %v3503, %v3506
        %v3508 = vadd.f32 %v3507, 1e-05
        %v3509 = vrsqrt.pop %v3508
        %v3510 = vld [vmem:[%s7] sm:$0x1]
        %v3511 = vmul.f32 %v3509, %v3510
        %v3512 = vld [vmem:[%s8] sm:$0x1]
        %v3513 = vsub.f32 %v3173, %v3430
        %v3514 = vmul.f32 %v3513, %v3511
        %v3515 = vadd.f32 %v3512, %v3514
        %v3516 = vlaneseq
        %v3517 = vshrl.u32 %v3516, 7
        %v3518 = vsub.s32 0, %v3517
        %v3519 = vrot.slane %v3511, %v3518
        %v3520 = vmul.f32 %v3141, %v3519
        %v3521 = vmul.f32 %v3142, %v3519
        %v3522 = vmul.f32 %v3143, %v3519
        %v3523 = vmul.f32 %v3144, %v3519
        %v3524 = vmul.f32 %v3145, %v3519
        %v3525 = vmul.f32 %v3146, %v3519
        %v3526 = vmul.f32 %v3147, %v3519
        %v3527 = vmul.f32 %v3148, %v3519
        %v3528 = vmul.f32 %v3149, %v3519
        %v3529 = vmul.f32 %v3150, %v3519
        %v3530 = vmul.f32 %v3151, %v3519
        %v3531 = vmul.f32 %v3152, %v3519
        %v3532 = vmul.f32 %v3153, %v3519
        %v3533 = vmul.f32 %v3154, %v3519
        %v3534 = vmul.f32 %v3155, %v3519
        %v3535 = vmul.f32 %v3156, %v3519
        %v3536 = vmul.f32 %v3157, %v3519
        %v3537 = vmul.f32 %v3158, %v3519
        %v3538 = vmul.f32 %v3159, %v3519
        %v3539 = vmul.f32 %v3160, %v3519
        %v3540 = vmul.f32 %v3161, %v3519
        %v3541 = vmul.f32 %v3162, %v3519
        %v3542 = vmul.f32 %v3163, %v3519
        %v3543 = vmul.f32 %v3164, %v3519
        %v3544 = vmul.f32 %v3165, %v3519
        %v3545 = vmul.f32 %v3166, %v3519
        %v3546 = vmul.f32 %v3167, %v3519
        %v3547 = vmul.f32 %v3168, %v3519
        %v3548 = vmul.f32 %v3169, %v3519
        %v3549 = vmul.f32 %v3170, %v3519
        %v3550 = vmul.f32 %v3171, %v3519
        %v3551 = vmul.f32 %v3172, %v3519
        %v3553 = vlaneseq
        %v3554 = vshrl.u32 %v3553, 7
        %v3555 = vsub.s32 0, %v3554
        %v3556 = vrot.slane %v3515, %v3555
        %v3558 = vadd.f32 %v3520, %v3556
        %v3559 = vadd.f32 %v3521, %v3556
        %v3560 = vadd.f32 %v3522, %v3556
        %v3561 = vadd.f32 %v3523, %v3556
        %v3562 = vadd.f32 %v3524, %v3556
        %v3563 = vadd.f32 %v3525, %v3556
        %v3564 = vadd.f32 %v3526, %v3556
        %v3565 = vadd.f32 %v3527, %v3556
        %v3566 = vadd.f32 %v3528, %v3556
        %v3567 = vadd.f32 %v3529, %v3556
        %v3568 = vadd.f32 %v3530, %v3556
        %v3569 = vadd.f32 %v3531, %v3556
        %v3570 = vadd.f32 %v3532, %v3556
        %v3571 = vadd.f32 %v3533, %v3556
        %v3572 = vadd.f32 %v3534, %v3556
        %v3573 = vadd.f32 %v3535, %v3556
        %v3574 = vadd.f32 %v3536, %v3556
        %v3575 = vadd.f32 %v3537, %v3556
        %v3576 = vadd.f32 %v3538, %v3556
        %v3577 = vadd.f32 %v3539, %v3556
        %v3578 = vadd.f32 %v3540, %v3556
        %v3579 = vadd.f32 %v3541, %v3556
        %v3580 = vadd.f32 %v3542, %v3556
        %v3581 = vadd.f32 %v3543, %v3556
        %v3582 = vadd.f32 %v3544, %v3556
        %v3583 = vadd.f32 %v3545, %v3556
        %v3584 = vadd.f32 %v3546, %v3556
        %v3585 = vadd.f32 %v3547, %v3556
        %v3586 = vadd.f32 %v3548, %v3556
        %v3587 = vadd.f32 %v3549, %v3556
        %v3588 = vadd.f32 %v3550, %v3556
        %v3589 = vadd.f32 %v3551, %v3556
        %v3590 = vxor.u32 %v3558, 2147483648
        %v3591 = vxor.u32 %v3559, 2147483648
        %v3592 = vxor.u32 %v3560, 2147483648
        %v3593 = vxor.u32 %v3561, 2147483648
        %v3594 = vxor.u32 %v3562, 2147483648
        %v3595 = vxor.u32 %v3563, 2147483648
        %v3596 = vxor.u32 %v3564, 2147483648
        %v3597 = vxor.u32 %v3565, 2147483648
        %v3598 = vxor.u32 %v3566, 2147483648
        %v3599 = vxor.u32 %v3567, 2147483648
        %v3600 = vxor.u32 %v3568, 2147483648
        %v3601 = vxor.u32 %v3569, 2147483648
        %v3602 = vxor.u32 %v3570, 2147483648
        %v3603 = vxor.u32 %v3571, 2147483648
        %v3604 = vxor.u32 %v3572, 2147483648
        %v3605 = vxor.u32 %v3573, 2147483648
        %v3606 = vxor.u32 %v3574, 2147483648
        %v3607 = vxor.u32 %v3575, 2147483648
        %v3608 = vxor.u32 %v3576, 2147483648
        %v3609 = vxor.u32 %v3577, 2147483648
        %v3610 = vxor.u32 %v3578, 2147483648
        %v3611 = vxor.u32 %v3579, 2147483648
        %v3612 = vxor.u32 %v3580, 2147483648
        %v3613 = vxor.u32 %v3581, 2147483648
        %v3614 = vxor.u32 %v3582, 2147483648
        %v3615 = vxor.u32 %v3583, 2147483648
        %v3616 = vxor.u32 %v3584, 2147483648
        %v3617 = vxor.u32 %v3585, 2147483648
        %v3618 = vxor.u32 %v3586, 2147483648
        %v3619 = vxor.u32 %v3587, 2147483648
        %v3620 = vxor.u32 %v3588, 2147483648
        %v3621 = vxor.u32 %v3589, 2147483648
        %v3622 = vmul.f32 %v3590, 1.442695
        %v3623 = vpow.pop %v3622
        %v3624 = vmul.f32 %v3591, 1.442695
        %v3625 = vpow.pop %v3624
        %v3626 = vmul.f32 %v3592, 1.442695
        %v3627 = vpow.pop %v3626
        %v3628 = vmul.f32 %v3593, 1.442695
        %v3629 = vpow.pop %v3628
        %v3630 = vmul.f32 %v3594, 1.442695
        %v3631 = vpow.pop %v3630
        %v3632 = vmul.f32 %v3595, 1.442695
        %v3633 = vpow.pop %v3632
        %v3634 = vmul.f32 %v3596, 1.442695
        %v3635 = vpow.pop %v3634
        %v3636 = vmul.f32 %v3597, 1.442695
        %v3637 = vpow.pop %v3636
        %v3638 = vmul.f32 %v3598, 1.442695
        %v3639 = vpow.pop %v3638
        %v3640 = vmul.f32 %v3599, 1.442695
        %v3641 = vpow.pop %v3640
        %v3642 = vmul.f32 %v3600, 1.442695
        %v3643 = vpow.pop %v3642
        %v3644 = vmul.f32 %v3601, 1.442695
        %v3645 = vpow.pop %v3644
        %v3646 = vmul.f32 %v3602, 1.442695
        %v3647 = vpow.pop %v3646
        %v3648 = vmul.f32 %v3603, 1.442695
        %v3649 = vpow.pop %v3648
        %v3650 = vmul.f32 %v3604, 1.442695
        %v3651 = vpow.pop %v3650
        %v3652 = vmul.f32 %v3605, 1.442695
        %v3653 = vpow.pop %v3652
        %v3654 = vmul.f32 %v3606, 1.442695
        %v3655 = vpow.pop %v3654
        %v3656 = vmul.f32 %v3607, 1.442695
        %v3657 = vpow.pop %v3656
        %v3658 = vmul.f32 %v3608, 1.442695
        %v3659 = vpow.pop %v3658
        %v3660 = vmul.f32 %v3609, 1.442695
        %v3661 = vpow.pop %v3660
        %v3662 = vmul.f32 %v3610, 1.442695
        %v3663 = vpow.pop %v3662
        %v3664 = vmul.f32 %v3611, 1.442695
        %v3665 = vpow.pop %v3664
        %v3666 = vmul.f32 %v3612, 1.442695
        %v3667 = vpow.pop %v3666
        %v3668 = vmul.f32 %v3613, 1.442695
        %v3669 = vpow.pop %v3668
        %v3670 = vmul.f32 %v3614, 1.442695
        %v3671 = vpow.pop %v3670
        %v3672 = vmul.f32 %v3615, 1.442695
        %v3673 = vpow.pop %v3672
        %v3674 = vmul.f32 %v3616, 1.442695
        %v3675 = vpow.pop %v3674
        %v3676 = vmul.f32 %v3617, 1.442695
        %v3677 = vpow.pop %v3676
        %v3678 = vmul.f32 %v3618, 1.442695
        %v3679 = vpow.pop %v3678
        %v3680 = vmul.f32 %v3619, 1.442695
        %v3681 = vpow.pop %v3680
        %v3682 = vmul.f32 %v3620, 1.442695
        %v3683 = vpow.pop %v3682
        %v3684 = vmul.f32 %v3621, 1.442695
        %v3685 = vpow.pop %v3684
        %v3686 = vadd.f32 %v3623, 1.0
        %v3687 = vadd.f32 %v3625, 1.0
        %v3688 = vadd.f32 %v3627, 1.0
        %v3689 = vadd.f32 %v3629, 1.0
        %v3690 = vadd.f32 %v3631, 1.0
        %v3691 = vadd.f32 %v3633, 1.0
        %v3692 = vadd.f32 %v3635, 1.0
        %v3693 = vadd.f32 %v3637, 1.0
        %v3694 = vadd.f32 %v3639, 1.0
        %v3695 = vadd.f32 %v3641, 1.0
        %v3696 = vadd.f32 %v3643, 1.0
        %v3697 = vadd.f32 %v3645, 1.0
        %v3698 = vadd.f32 %v3647, 1.0
        %v3699 = vadd.f32 %v3649, 1.0
        %v3700 = vadd.f32 %v3651, 1.0
        %v3701 = vadd.f32 %v3653, 1.0
        %v3702 = vadd.f32 %v3655, 1.0
        %v3703 = vadd.f32 %v3657, 1.0
        %v3704 = vadd.f32 %v3659, 1.0
        %v3705 = vadd.f32 %v3661, 1.0
        %v3706 = vadd.f32 %v3663, 1.0
        %v3707 = vadd.f32 %v3665, 1.0
        %v3708 = vadd.f32 %v3667, 1.0
        %v3709 = vadd.f32 %v3669, 1.0
        %v3710 = vadd.f32 %v3671, 1.0
        %v3711 = vadd.f32 %v3673, 1.0
        %v3712 = vadd.f32 %v3675, 1.0
        %v3713 = vadd.f32 %v3677, 1.0
        %v3714 = vadd.f32 %v3679, 1.0
        %v3715 = vadd.f32 %v3681, 1.0
        %v3716 = vadd.f32 %v3683, 1.0
        %v3717 = vadd.f32 %v3685, 1.0
        %v3718 = vrcp.pop %v3686
        %v3719 = vmul.f32 1.0, %v3718
        %v3720 = vrcp.pop %v3687
        %v3721 = vmul.f32 1.0, %v3720
        %v3722 = vrcp.pop %v3688
        %v3723 = vmul.f32 1.0, %v3722
        %v3724 = vrcp.pop %v3689
        %v3725 = vmul.f32 1.0, %v3724
        %v3726 = vrcp.pop %v3690
        %v3727 = vmul.f32 1.0, %v3726
        %v3728 = vrcp.pop %v3691
        %v3729 = vmul.f32 1.0, %v3728
        %v3730 = vrcp.pop %v3692
        %v3731 = vmul.f32 1.0, %v3730
        %v3732 = vrcp.pop %v3693
        %v3733 = vmul.f32 1.0, %v3732
        %v3734 = vrcp.pop %v3694
        %v3735 = vmul.f32 1.0, %v3734
        %v3736 = vrcp.pop %v3695
        %v3737 = vmul.f32 1.0, %v3736
        %v3738 = vrcp.pop %v3696
        %v3739 = vmul.f32 1.0, %v3738
        %v3740 = vrcp.pop %v3697
        %v3741 = vmul.f32 1.0, %v3740
        %v3742 = vrcp.pop %v3698
        %v3743 = vmul.f32 1.0, %v3742
        %v3744 = vrcp.pop %v3699
        %v3745 = vmul.f32 1.0, %v3744
        %v3746 = vrcp.pop %v3700
        %v3747 = vmul.f32 1.0, %v3746
        %v3748 = vrcp.pop %v3701
        %v3749 = vmul.f32 1.0, %v3748
        %v3750 = vrcp.pop %v3702
        %v3751 = vmul.f32 1.0, %v3750
        %v3752 = vrcp.pop %v3703
        %v3753 = vmul.f32 1.0, %v3752
        %v3754 = vrcp.pop %v3704
        %v3755 = vmul.f32 1.0, %v3754
        %v3756 = vrcp.pop %v3705
        %v3757 = vmul.f32 1.0, %v3756
        %v3758 = vrcp.pop %v3706
        %v3759 = vmul.f32 1.0, %v3758
        %v3760 = vrcp.pop %v3707
        %v3761 = vmul.f32 1.0, %v3760
        %v3762 = vrcp.pop %v3708
        %v3763 = vmul.f32 1.0, %v3762
        %v3764 = vrcp.pop %v3709
        %v3765 = vmul.f32 1.0, %v3764
        %v3766 = vrcp.pop %v3710
        %v3767 = vmul.f32 1.0, %v3766
        %v3768 = vrcp.pop %v3711
        %v3769 = vmul.f32 1.0, %v3768
        %v3770 = vrcp.pop %v3712
        %v3771 = vmul.f32 1.0, %v3770
        %v3772 = vrcp.pop %v3713
        %v3773 = vmul.f32 1.0, %v3772
        %v3774 = vrcp.pop %v3714
        %v3775 = vmul.f32 1.0, %v3774
        %v3776 = vrcp.pop %v3715
        %v3777 = vmul.f32 1.0, %v3776
        %v3778 = vrcp.pop %v3716
        %v3779 = vmul.f32 1.0, %v3778
        %v3780 = vrcp.pop %v3717
        %v3781 = vmul.f32 1.0, %v3780
        %v3782 = vmul.f32 %v3558, %v3719
        %v3783 = vmul.f32 %v3559, %v3721
        %v3784 = vmul.f32 %v3560, %v3723
        %v3785 = vmul.f32 %v3561, %v3725
        %v3786 = vmul.f32 %v3562, %v3727
        %v3787 = vmul.f32 %v3563, %v3729
        %v3788 = vmul.f32 %v3564, %v3731
        %v3789 = vmul.f32 %v3565, %v3733
        %v3790 = vmul.f32 %v3566, %v3735
        %v3791 = vmul.f32 %v3567, %v3737
        %v3792 = vmul.f32 %v3568, %v3739
        %v3793 = vmul.f32 %v3569, %v3741
        %v3794 = vmul.f32 %v3570, %v3743
        %v3795 = vmul.f32 %v3571, %v3745
        %v3796 = vmul.f32 %v3572, %v3747
        %v3797 = vmul.f32 %v3573, %v3749
        %v3798 = vmul.f32 %v3574, %v3751
        %v3799 = vmul.f32 %v3575, %v3753
        %v3800 = vmul.f32 %v3576, %v3755
        %v3801 = vmul.f32 %v3577, %v3757
        %v3802 = vmul.f32 %v3578, %v3759
        %v3803 = vmul.f32 %v3579, %v3761
        %v3804 = vmul.f32 %v3580, %v3763
        %v3805 = vmul.f32 %v3581, %v3765
        %v3806 = vmul.f32 %v3582, %v3767
        %v3807 = vmul.f32 %v3583, %v3769
        %v3808 = vmul.f32 %v3584, %v3771
        %v3809 = vmul.f32 %v3585, %v3773
        %v3810 = vmul.f32 %v3586, %v3775
        %v3811 = vmul.f32 %v3587, %v3777
        %v3812 = vmul.f32 %v3588, %v3779
        %v3813 = vmul.f32 %v3589, %v3781
        %3814 = vst [vmem:[#allocation3] sm:$0xff] 0.0
        %3815 = vst.msk [vmem:[#allocation3 + $0x8] sm:$0xff] %vm3174, 0.0
        %3816 = vst [vmem:[#allocation3 + $0x10] sm:$0xff] 0.0
        %3817 = vst.msk [vmem:[#allocation3 + $0x18] sm:$0xff] %vm3174, 0.0
        %3818 = vst [vmem:[#allocation3 + $0x20] sm:$0x1] 0.0
        %vm3819 = vcmask 516096
        %3820 = vst.msk [vmem:[#allocation3 + $0x28] sm:$0x1] %vm3819, 0.0
        %3821 = vst [vmem:[#allocation3 + $0x210] sm:$0x80] 0.0
        %vm3822 = vcmask 523271
        %3823 = vst.msk [vmem:[#allocation3 + $0x218] sm:$0x80] %vm3822, 0.0
        %3824 = vst [vmem:[#allocation3 + $0x220] sm:$0xff] 0.0
        %3825 = vst.msk [vmem:[#allocation3 + $0x228] sm:$0xff] %vm3174, 0.0
        %3826 = vst [vmem:[#allocation3 + $0x230] sm:$0xff] 0.0
        %3827 = vst.msk [vmem:[#allocation3 + $0x238] sm:$0xff] %vm3174, 0.0
        %v3828 = vsel %vm1650, %v3782, 0.0
        %v3829 = vsel %vm1651, %v3783, 0.0
        %v3830 = vsel %vm1652, %v3784, 0.0
        %v3831 = vsel %vm1653, %v3785, 0.0
        %v3832 = vsel %vm1654, %v3786, 0.0
        %v3833 = vsel %vm1655, %v3787, 0.0
        %v3834 = vsel %vm1656, %v3788, 0.0
        %v3835 = vsel %vm1657, %v3789, 0.0
        %v3836 = vsel %vm1658, %v3790, 0.0
        %v3837 = vsel %vm1659, %v3791, 0.0
        %v3838 = vsel %vm1660, %v3792, 0.0
        %v3839 = vsel %vm1661, %v3793, 0.0
        %v3840 = vsel %vm1662, %v3794, 0.0
        %v3841 = vsel %vm1663, %v3795, 0.0
        %v3842 = vsel %vm1664, %v3796, 0.0
        %v3843 = vsel %vm1665, %v3797, 0.0
        %v3844 = vsel %vm1666, %v3798, 0.0
        %v3845 = vsel %vm1667, %v3799, 0.0
        %v3846 = vsel %vm1668, %v3800, 0.0
        %v3847 = vsel %vm1669, %v3801, 0.0
        %v3848 = vsel %vm1670, %v3802, 0.0
        %v3849 = vsel %vm1671, %v3803, 0.0
        %v3850 = vsel %vm1672, %v3804, 0.0
        %v3851 = vsel %vm1673, %v3805, 0.0
        %v3852 = vsel %vm1674, %v3806, 0.0
        %v3853 = vsel %vm1675, %v3807, 0.0
        %v3854 = vsel %vm1676, %v3808, 0.0
        %v3855 = vsel %vm1677, %v3809, 0.0
        %v3856 = vsel %vm1678, %v3810, 0.0
        %v3857 = vsel %vm1679, %v3811, 0.0
        %v3858 = vsel %vm1680, %v3812, 0.0
        %v3859 = vsel %vm1681, %v3813, 0.0
        %v3860 = vsel %vm1746, %v3782, 0.0
        %v3861 = vsel %vm1747, %v3783, 0.0
        %v3862 = vsel %vm1748, %v3784, 0.0
        %v3863 = vsel %vm1749, %v3785, 0.0
        %v3864 = vsel %vm1750, %v3786, 0.0
        %v3865 = vsel %vm1751, %v3787, 0.0
        %v3866 = vsel %vm1752, %v3788, 0.0
        %v3867 = vsel %vm1753, %v3789, 0.0
        %v3868 = vsel %vm1754, %v3790, 0.0
        %v3869 = vsel %vm1755, %v3791, 0.0
        %v3870 = vsel %vm1756, %v3792, 0.0
        %v3871 = vsel %vm1757, %v3793, 0.0
        %v3872 = vsel %vm1758, %v3794, 0.0
        %v3873 = vsel %vm1759, %v3795, 0.0
        %v3874 = vsel %vm1760, %v3796, 0.0
        %v3875 = vsel %vm1761, %v3797, 0.0
        %v3876 = vsel %vm1762, %v3798, 0.0
        %v3877 = vsel %vm1763, %v3799, 0.0
        %v3878 = vsel %vm1764, %v3800, 0.0
        %v3879 = vsel %vm1765, %v3801, 0.0
        %v3880 = vsel %vm1766, %v3802, 0.0
        %v3881 = vsel %vm1767, %v3803, 0.0
        %v3882 = vsel %vm1768, %v3804, 0.0
        %v3883 = vsel %vm1769, %v3805, 0.0
        %v3884 = vsel %vm1770, %v3806, 0.0
        %v3885 = vsel %vm1771, %v3807, 0.0
        %v3886 = vsel %vm1772, %v3808, 0.0
        %v3887 = vsel %vm1773, %v3809, 0.0
        %v3888 = vsel %vm1774, %v3810, 0.0
        %v3889 = vsel %vm1775, %v3811, 0.0
        %v3890 = vsel %vm1776, %v3812, 0.0
        %v3891 = vsel %vm1777, %v3813, 0.0
        %3924 = vrot.lane.b32.xlu0 %v3782, 64
        %v3925 = vpop.permute.xlu0 %3924
        %3926 = vrot.lane.b32.xlu0 %v3783, 64
        %v3927 = vpop.permute.xlu0 %3926
        %3928 = vrot.lane.b32.xlu0 %v3784, 64
        %v3929 = vpop.permute.xlu0 %3928
        %3930 = vrot.lane.b32.xlu0 %v3785, 64
        %v3931 = vpop.permute.xlu0 %3930
        %3932 = vrot.lane.b32.xlu0 %v3786, 64
        %v3933 = vpop.permute.xlu0 %3932
        %3934 = vrot.lane.b32.xlu0 %v3787, 64
        %v3935 = vpop.permute.xlu0 %3934
        %3936 = vrot.lane.b32.xlu0 %v3788, 64
        %v3937 = vpop.permute.xlu0 %3936
        %3938 = vrot.lane.b32.xlu0 %v3789, 64
        %v3939 = vpop.permute.xlu0 %3938
        %3940 = vrot.lane.b32.xlu0 %v3790, 64
        %v3941 = vpop.permute.xlu0 %3940
        %3942 = vrot.lane.b32.xlu0 %v3791, 64
        %v3943 = vpop.permute.xlu0 %3942
        %3944 = vrot.lane.b32.xlu0 %v3792, 64
        %v3945 = vpop.permute.xlu0 %3944
        %3946 = vrot.lane.b32.xlu0 %v3793, 64
        %v3947 = vpop.permute.xlu0 %3946
        %3948 = vrot.lane.b32.xlu0 %v3794, 64
        %v3949 = vpop.permute.xlu0 %3948
        %3950 = vrot.lane.b32.xlu0 %v3795, 64
        %v3951 = vpop.permute.xlu0 %3950
        %3952 = vrot.lane.b32.xlu0 %v3796, 64
        %v3953 = vpop.permute.xlu0 %3952
        %3954 = vrot.lane.b32.xlu0 %v3797, 64
        %v3955 = vpop.permute.xlu0 %3954
        %3956 = vrot.lane.b32.xlu0 %v3798, 64
        %v3957 = vpop.permute.xlu0 %3956
        %3958 = vrot.lane.b32.xlu0 %v3799, 64
        %v3959 = vpop.permute.xlu0 %3958
        %3960 = vrot.lane.b32.xlu0 %v3800, 64
        %v3961 = vpop.permute.xlu0 %3960
        %3962 = vrot.lane.b32.xlu0 %v3801, 64
        %v3963 = vpop.permute.xlu0 %3962
        %3964 = vrot.lane.b32.xlu0 %v3802, 64
        %v3965 = vpop.permute.xlu0 %3964
        %3966 = vrot.lane.b32.xlu0 %v3803, 64
        %v3967 = vpop.permute.xlu0 %3966
        %3968 = vrot.lane.b32.xlu0 %v3804, 64
        %v3969 = vpop.permute.xlu0 %3968
        %3970 = vrot.lane.b32.xlu0 %v3805, 64
        %v3971 = vpop.permute.xlu0 %3970
        %3972 = vrot.lane.b32.xlu0 %v3806, 64
        %v3973 = vpop.permute.xlu0 %3972
        %3974 = vrot.lane.b32.xlu0 %v3807, 64
        %v3975 = vpop.permute.xlu0 %3974
        %3976 = vrot.lane.b32.xlu0 %v3808, 64
        %v3977 = vpop.permute.xlu0 %3976
        %3978 = vrot.lane.b32.xlu0 %v3809, 64
        %v3979 = vpop.permute.xlu0 %3978
        %3980 = vrot.lane.b32.xlu0 %v3810, 64
        %v3981 = vpop.permute.xlu0 %3980
        %3982 = vrot.lane.b32.xlu0 %v3811, 64
        %v3983 = vpop.permute.xlu0 %3982
        %3984 = vrot.lane.b32.xlu0 %v3812, 64
        %v3985 = vpop.permute.xlu0 %3984
        %3986 = vrot.lane.b32.xlu0 %v3813, 64
        %v3987 = vpop.permute.xlu0 %3986
        %vm4020 = vcmask 1048064
        %4021 = vst.msk [vmem:[#allocation3 + $0x20] sm:$0xff] %vm4020, %v3925
        %4022 = vst.msk [vmem:[#allocation3 + $0x30] sm:$0xff] %vm4020, %v3927
        %4023 = vst.msk [vmem:[#allocation3 + $0x40] sm:$0xff] %vm4020, %v3929
        %4024 = vst.msk [vmem:[#allocation3 + $0x50] sm:$0xff] %vm4020, %v3931
        %4025 = vst.msk [vmem:[#allocation3 + $0x60] sm:$0xff] %vm4020, %v3933
        %4026 = vst.msk [vmem:[#allocation3 + $0x70] sm:$0xff] %vm4020, %v3935
        %4027 = vst.msk [vmem:[#allocation3 + $0x80] sm:$0xff] %vm4020, %v3937
        %4028 = vst.msk [vmem:[#allocation3 + $0x90] sm:$0xff] %vm4020, %v3939
        %4029 = vst.msk [vmem:[#allocation3 + $0xa0] sm:$0xff] %vm4020, %v3941
        %4030 = vst.msk [vmem:[#allocation3 + $0xb0] sm:$0xff] %vm4020, %v3943
        %4031 = vst.msk [vmem:[#allocation3 + $0xc0] sm:$0xff] %vm4020, %v3945
        %4032 = vst.msk [vmem:[#allocation3 + $0xd0] sm:$0xff] %vm4020, %v3947
        %4033 = vst.msk [vmem:[#allocation3 + $0xe0] sm:$0xff] %vm4020, %v3949
        %4034 = vst.msk [vmem:[#allocation3 + $0xf0] sm:$0xff] %vm4020, %v3951
        %4035 = vst.msk [vmem:[#allocation3 + $0x100] sm:$0xff] %vm4020, %v3953
        %4036 = vst.msk [vmem:[#allocation3 + $0x110] sm:$0xff] %vm4020, %v3955
        %4037 = vst.msk [vmem:[#allocation3 + $0x120] sm:$0xff] %vm4020, %v3957
        %4038 = vst.msk [vmem:[#allocation3 + $0x130] sm:$0xff] %vm4020, %v3959
        %4039 = vst.msk [vmem:[#allocation3 + $0x140] sm:$0xff] %vm4020, %v3961
        %4040 = vst.msk [vmem:[#allocation3 + $0x150] sm:$0xff] %vm4020, %v3963
        %4041 = vst.msk [vmem:[#allocation3 + $0x160] sm:$0xff] %vm4020, %v3965
        %4042 = vst.msk [vmem:[#allocation3 + $0x170] sm:$0xff] %vm4020, %v3967
        %4043 = vst.msk [vmem:[#allocation3 + $0x180] sm:$0xff] %vm4020, %v3969
        %4044 = vst.msk [vmem:[#allocation3 + $0x190] sm:$0xff] %vm4020, %v3971
        %4045 = vst.msk [vmem:[#allocation3 + $0x1a0] sm:$0xff] %vm4020, %v3973
        %4046 = vst.msk [vmem:[#allocation3 + $0x1b0] sm:$0xff] %vm4020, %v3975
        %4047 = vst.msk [vmem:[#allocation3 + $0x1c0] sm:$0xff] %vm4020, %v3977
        %4048 = vst.msk [vmem:[#allocation3 + $0x1d0] sm:$0xff] %vm4020, %v3979
        %4049 = vst.msk [vmem:[#allocation3 + $0x1e0] sm:$0xff] %vm4020, %v3981
        %4050 = vst.msk [vmem:[#allocation3 + $0x1f0] sm:$0xff] %vm4020, %v3983
        %4051 = vst.msk [vmem:[#allocation3 + $0x200] sm:$0xff] %vm4020, %v3985
        %4052 = vst.msk [vmem:[#allocation3 + $0x210] sm:$0xff] %vm4020, %v3987
        %vm4085 = vcmask 1040384
        %v4086 = vrot.slane %v3828, 7
        %v4087 = vrot.slane %v3829, 7
        %v4088 = vsel %vm4085, %v4086, %v4087
        %v4089 = vrot.slane %v3830, 7
        %v4090 = vsel %vm4085, %v4087, %v4089
        %v4091 = vrot.slane %v3831, 7
        %v4092 = vsel %vm4085, %v4089, %v4091
        %v4093 = vrot.slane %v3832, 7
        %v4094 = vsel %vm4085, %v4091, %v4093
        %v4095 = vrot.slane %v3833, 7
        %v4096 = vsel %vm4085, %v4093, %v4095
        %v4097 = vrot.slane %v3834, 7
        %v4098 = vsel %vm4085, %v4095, %v4097
        %v4099 = vrot.slane %v3835, 7
        %v4100 = vsel %vm4085, %v4097, %v4099
        %v4101 = vrot.slane %v3836, 7
        %v4102 = vsel %vm4085, %v4099, %v4101
        %v4103 = vrot.slane %v3837, 7
        %v4104 = vsel %vm4085, %v4101, %v4103
        %v4105 = vrot.slane %v3838, 7
        %v4106 = vsel %vm4085, %v4103, %v4105
        %v4107 = vrot.slane %v3839, 7
        %v4108 = vsel %vm4085, %v4105, %v4107
        %v4109 = vrot.slane %v3840, 7
        %v4110 = vsel %vm4085, %v4107, %v4109
        %v4111 = vrot.slane %v3841, 7
        %v4112 = vsel %vm4085, %v4109, %v4111
        %v4113 = vrot.slane %v3842, 7
        %v4114 = vsel %vm4085, %v4111, %v4113
        %v4115 = vrot.slane %v3843, 7
        %v4116 = vsel %vm4085, %v4113, %v4115
        %v4117 = vrot.slane %v3844, 7
        %v4118 = vsel %vm4085, %v4115, %v4117
        %v4119 = vrot.slane %v3845, 7
        %v4120 = vsel %vm4085, %v4117, %v4119
        %v4121 = vrot.slane %v3846, 7
        %v4122 = vsel %vm4085, %v4119, %v4121
        %v4123 = vrot.slane %v3847, 7
        %v4124 = vsel %vm4085, %v4121, %v4123
        %v4125 = vrot.slane %v3848, 7
        %v4126 = vsel %vm4085, %v4123, %v4125
        %v4127 = vrot.slane %v3849, 7
        %v4128 = vsel %vm4085, %v4125, %v4127
        %v4129 = vrot.slane %v3850, 7
        %v4130 = vsel %vm4085, %v4127, %v4129
        %v4131 = vrot.slane %v3851, 7
        %v4132 = vsel %vm4085, %v4129, %v4131
        %v4133 = vrot.slane %v3852, 7
        %v4134 = vsel %vm4085, %v4131, %v4133
        %v4135 = vrot.slane %v3853, 7
        %v4136 = vsel %vm4085, %v4133, %v4135
        %v4137 = vrot.slane %v3854, 7
        %v4138 = vsel %vm4085, %v4135, %v4137
        %v4139 = vrot.slane %v3855, 7
        %v4140 = vsel %vm4085, %v4137, %v4139
        %v4141 = vrot.slane %v3856, 7
        %v4142 = vsel %vm4085, %v4139, %v4141
        %v4143 = vrot.slane %v3857, 7
        %v4144 = vsel %vm4085, %v4141, %v4143
        %v4145 = vrot.slane %v3858, 7
        %v4146 = vsel %vm4085, %v4143, %v4145
        %v4147 = vrot.slane %v3859, 7
        %v4148 = vsel %vm4085, %v4145, %v4147
        %vm4182 = vcmask 523265
        %4183 = vst.msk [vmem:[#allocation3 + $0x20] sm:$0xfe] %vm4182, %v4086
        %4184 = vst.msk [vmem:[#allocation3 + $0x30] sm:$0xff] %vm3174, %v4088
        %4185 = vst.msk [vmem:[#allocation3 + $0x40] sm:$0xff] %vm3174, %v4090
        %4186 = vst.msk [vmem:[#allocation3 + $0x50] sm:$0xff] %vm3174, %v4092
        %4187 = vst.msk [vmem:[#allocation3 + $0x60] sm:$0xff] %vm3174, %v4094
        %4188 = vst.msk [vmem:[#allocation3 + $0x70] sm:$0xff] %vm3174, %v4096
        %4189 = vst.msk [vmem:[#allocation3 + $0x80] sm:$0xff] %vm3174, %v4098
        %4190 = vst.msk [vmem:[#allocation3 + $0x90] sm:$0xff] %vm3174, %v4100
        %4191 = vst.msk [vmem:[#allocation3 + $0xa0] sm:$0xff] %vm3174, %v4102
        %4192 = vst.msk [vmem:[#allocation3 + $0xb0] sm:$0xff] %vm3174, %v4104
        %4193 = vst.msk [vmem:[#allocation3 + $0xc0] sm:$0xff] %vm3174, %v4106
        %4194 = vst.msk [vmem:[#allocation3 + $0xd0] sm:$0xff] %vm3174, %v4108
        %4195 = vst.msk [vmem:[#allocation3 + $0xe0] sm:$0xff] %vm3174, %v4110
        %4196 = vst.msk [vmem:[#allocation3 + $0xf0] sm:$0xff] %vm3174, %v4112
        %4197 = vst.msk [vmem:[#allocation3 + $0x100] sm:$0xff] %vm3174, %v4114
        %4198 = vst.msk [vmem:[#allocation3 + $0x110] sm:$0xff] %vm3174, %v4116
        %4199 = vst.msk [vmem:[#allocation3 + $0x120] sm:$0xff] %vm3174, %v4118
        %4200 = vst.msk [vmem:[#allocation3 + $0x130] sm:$0xff] %vm3174, %v4120
        %4201 = vst.msk [vmem:[#allocation3 + $0x140] sm:$0xff] %vm3174, %v4122
        %4202 = vst.msk [vmem:[#allocation3 + $0x150] sm:$0xff] %vm3174, %v4124
        %4203 = vst.msk [vmem:[#allocation3 + $0x160] sm:$0xff] %vm3174, %v4126
        %4204 = vst.msk [vmem:[#allocation3 + $0x170] sm:$0xff] %vm3174, %v4128
        %4205 = vst.msk [vmem:[#allocation3 + $0x180] sm:$0xff] %vm3174, %v4130
        %4206 = vst.msk [vmem:[#allocation3 + $0x190] sm:$0xff] %vm3174, %v4132
        %4207 = vst.msk [vmem:[#allocation3 + $0x1a0] sm:$0xff] %vm3174, %v4134
        %4208 = vst.msk [vmem:[#allocation3 + $0x1b0] sm:$0xff] %vm3174, %v4136
        %4209 = vst.msk [vmem:[#allocation3 + $0x1c0] sm:$0xff] %vm3174, %v4138
        %4210 = vst.msk [vmem:[#allocation3 + $0x1d0] sm:$0xff] %vm3174, %v4140
        %4211 = vst.msk [vmem:[#allocation3 + $0x1e0] sm:$0xff] %vm3174, %v4142
        %4212 = vst.msk [vmem:[#allocation3 + $0x1f0] sm:$0xff] %vm3174, %v4144
        %4213 = vst.msk [vmem:[#allocation3 + $0x200] sm:$0xff] %vm3174, %v4146
        %4214 = vst.msk [vmem:[#allocation3 + $0x210] sm:$0xff] %vm3174, %v4148
        %4215 = vst.msk [vmem:[#allocation3 + $0x220] sm:$0x1] %vm3819, %v4147
        %vm4248 = vcmask 1046528
        %v4249 = vrot.slane %v3860, 1
        %v4250 = vrot.slane %v3861, 1
        %v4251 = vsel %vm4248, %v4249, %v4250
        %v4252 = vrot.slane %v3862, 1
        %v4253 = vsel %vm4248, %v4250, %v4252
        %v4254 = vrot.slane %v3863, 1
        %v4255 = vsel %vm4248, %v4252, %v4254
        %v4256 = vrot.slane %v3864, 1
        %v4257 = vsel %vm4248, %v4254, %v4256
        %v4258 = vrot.slane %v3865, 1
        %v4259 = vsel %vm4248, %v4256, %v4258
        %v4260 = vrot.slane %v3866, 1
        %v4261 = vsel %vm4248, %v4258, %v4260
        %v4262 = vrot.slane %v3867, 1
        %v4263 = vsel %vm4248, %v4260, %v4262
        %v4264 = vrot.slane %v3868, 1
        %v4265 = vsel %vm4248, %v4262, %v4264
        %v4266 = vrot.slane %v3869, 1
        %v4267 = vsel %vm4248, %v4264, %v4266
        %v4268 = vrot.slane %v3870, 1
        %v4269 = vsel %vm4248, %v4266, %v4268
        %v4270 = vrot.slane %v3871, 1
        %v4271 = vsel %vm4248, %v4268, %v4270
        %v4272 = vrot.slane %v3872, 1
        %v4273 = vsel %vm4248, %v4270, %v4272
        %v4274 = vrot.slane %v3873, 1
        %v4275 = vsel %vm4248, %v4272, %v4274
        %v4276 = vrot.slane %v3874, 1
        %v4277 = vsel %vm4248, %v4274, %v4276
        %v4278 = vrot.slane %v3875, 1
        %v4279 = vsel %vm4248, %v4276, %v4278
        %v4280 = vrot.slane %v3876, 1
        %v4281 = vsel %vm4248, %v4278, %v4280
        %v4282 = vrot.slane %v3877, 1
        %v4283 = vsel %vm4248, %v4280, %v4282
        %v4284 = vrot.slane %v3878, 1
        %v4285 = vsel %vm4248, %v4282, %v4284
        %v4286 = vrot.slane %v3879, 1
        %v4287 = vsel %vm4248, %v4284, %v4286
        %v4288 = vrot.slane %v3880, 1
        %v4289 = vsel %vm4248, %v4286, %v4288
        %v4290 = vrot.slane %v3881, 1
        %v4291 = vsel %vm4248, %v4288, %v4290
        %v4292 = vrot.slane %v3882, 1
        %v4293 = vsel %vm4248, %v4290, %v4292
        %v4294 = vrot.slane %v3883, 1
        %v4295 = vsel %vm4248, %v4292, %v4294
        %v4296 = vrot.slane %v3884, 1
        %v4297 = vsel %vm4248, %v4294, %v4296
        %v4298 = vrot.slane %v3885, 1
        %v4299 = vsel %vm4248, %v4296, %v4298
        %v4300 = vrot.slane %v3886, 1
        %v4301 = vsel %vm4248, %v4298, %v4300
        %v4302 = vrot.slane %v3887, 1
        %v4303 = vsel %vm4248, %v4300, %v4302
        %v4304 = vrot.slane %v3888, 1
        %v4305 = vsel %vm4248, %v4302, %v4304
        %v4306 = vrot.slane %v3889, 1
        %v4307 = vsel %vm4248, %v4304, %v4306
        %v4308 = vrot.slane %v3890, 1
        %v4309 = vsel %vm4248, %v4306, %v4308
        %v4310 = vrot.slane %v3891, 1
        %v4311 = vsel %vm4248, %v4308, %v4310
        %4345 = vst.msk [vmem:[#allocation3 + $0x18] sm:$0x80] %vm3822, %v4249
        %4346 = vst.msk [vmem:[#allocation3 + $0x28] sm:$0xff] %vm3174, %v4251
        %4347 = vst.msk [vmem:[#allocation3 + $0x38] sm:$0xff] %vm3174, %v4253
        %4348 = vst.msk [vmem:[#allocation3 + $0x48] sm:$0xff] %vm3174, %v4255
        %4349 = vst.msk [vmem:[#allocation3 + $0x58] sm:$0xff] %vm3174, %v4257
        %4350 = vst.msk [vmem:[#allocation3 + $0x68] sm:$0xff] %vm3174, %v4259
        %4351 = vst.msk [vmem:[#allocation3 + $0x78] sm:$0xff] %vm3174, %v4261
        %4352 = vst.msk [vmem:[#allocation3 + $0x88] sm:$0xff] %vm3174, %v4263
        %4353 = vst.msk [vmem:[#allocation3 + $0x98] sm:$0xff] %vm3174, %v4265
        %4354 = vst.msk [vmem:[#allocation3 + $0xa8] sm:$0xff] %vm3174, %v4267
        %4355 = vst.msk [vmem:[#allocation3 + $0xb8] sm:$0xff] %vm3174, %v4269
        %4356 = vst.msk [vmem:[#allocation3 + $0xc8] sm:$0xff] %vm3174, %v4271
        %4357 = vst.msk [vmem:[#allocation3 + $0xd8] sm:$0xff] %vm3174, %v4273
        %4358 = vst.msk [vmem:[#allocation3 + $0xe8] sm:$0xff] %vm3174, %v4275
        %4359 = vst.msk [vmem:[#allocation3 + $0xf8] sm:$0xff] %vm3174, %v4277
        %4360 = vst.msk [vmem:[#allocation3 + $0x108] sm:$0xff] %vm3174, %v4279
        %4361 = vst.msk [vmem:[#allocation3 + $0x118] sm:$0xff] %vm3174, %v4281
        %4362 = vst.msk [vmem:[#allocation3 + $0x128] sm:$0xff] %vm3174, %v4283
        %4363 = vst.msk [vmem:[#allocation3 + $0x138] sm:$0xff] %vm3174, %v4285
        %4364 = vst.msk [vmem:[#allocation3 + $0x148] sm:$0xff] %vm3174, %v4287
        %4365 = vst.msk [vmem:[#allocation3 + $0x158] sm:$0xff] %vm3174, %v4289
        %4366 = vst.msk [vmem:[#allocation3 + $0x168] sm:$0xff] %vm3174, %v4291
        %4367 = vst.msk [vmem:[#allocation3 + $0x178] sm:$0xff] %vm3174, %v4293
        %4368 = vst.msk [vmem:[#allocation3 + $0x188] sm:$0xff] %vm3174, %v4295
        %4369 = vst.msk [vmem:[#allocation3 + $0x198] sm:$0xff] %vm3174, %v4297
        %4370 = vst.msk [vmem:[#allocation3 + $0x1a8] sm:$0xff] %vm3174, %v4299
        %4371 = vst.msk [vmem:[#allocation3 + $0x1b8] sm:$0xff] %vm3174, %v4301
        %4372 = vst.msk [vmem:[#allocation3 + $0x1c8] sm:$0xff] %vm3174, %v4303
        %4373 = vst.msk [vmem:[#allocation3 + $0x1d8] sm:$0xff] %vm3174, %v4305
        %4374 = vst.msk [vmem:[#allocation3 + $0x1e8] sm:$0xff] %vm3174, %v4307
        %4375 = vst.msk [vmem:[#allocation3 + $0x1f8] sm:$0xff] %vm3174, %v4309
        %4376 = vst.msk [vmem:[#allocation3 + $0x208] sm:$0xff] %vm3174, %v4311
        %vm4377 = vcmask 522240
        %4378 = vst.msk [vmem:[#allocation3 + $0x218] sm:$0x7f] %vm4377, %v4310
        %v4379 = vld [vmem:[#allocation3] sm:$0xff]
        %v4380 = vld [vmem:[#allocation3 + $0x8] sm:$0xff]
        %v4381 = vld [vmem:[#allocation3 + $0x10] sm:$0xff]
        %v4382 = vld [vmem:[#allocation3 + $0x18] sm:$0xff]
        %v4383 = vld [vmem:[#allocation3 + $0x20] sm:$0xff]
        %v4384 = vld [vmem:[#allocation3 + $0x28] sm:$0xff]
        %v4385 = vld [vmem:[#allocation3 + $0x30] sm:$0xff]
        %v4386 = vld [vmem:[#allocation3 + $0x38] sm:$0xff]
        %v4387 = vld [vmem:[#allocation3 + $0x40] sm:$0xff]
        %v4388 = vld [vmem:[#allocation3 + $0x48] sm:$0xff]
        %v4389 = vld [vmem:[#allocation3 + $0x50] sm:$0xff]
        %v4390 = vld [vmem:[#allocation3 + $0x58] sm:$0xff]
        %v4391 = vld [vmem:[#allocation3 + $0x60] sm:$0xff]
        %v4392 = vld [vmem:[#allocation3 + $0x68] sm:$0xff]
        %v4393 = vld [vmem:[#allocation3 + $0x70] sm:$0xff]
        %v4394 = vld [vmem:[#allocation3 + $0x78] sm:$0xff]
        %v4395 = vld [vmem:[#allocation3 + $0x80] sm:$0xff]
        %v4396 = vld [vmem:[#allocation3 + $0x88] sm:$0xff]
        %v4397 = vld [vmem:[#allocation3 + $0x90] sm:$0xff]
        %v4398 = vld [vmem:[#allocation3 + $0x98] sm:$0xff]
        %v4399 = vld [vmem:[#allocation3 + $0xa0] sm:$0xff]
        %v4400 = vld [vmem:[#allocation3 + $0xa8] sm:$0xff]
        %v4401 = vld [vmem:[#allocation3 + $0xb0] sm:$0xff]
        %v4402 = vld [vmem:[#allocation3 + $0xb8] sm:$0xff]
        %v4403 = vld [vmem:[#allocation3 + $0xc0] sm:$0xff]
        %v4404 = vld [vmem:[#allocation3 + $0xc8] sm:$0xff]
        %v4405 = vld [vmem:[#allocation3 + $0xd0] sm:$0xff]
        %v4406 = vld [vmem:[#allocation3 + $0xd8] sm:$0xff]
        %v4407 = vld [vmem:[#allocation3 + $0xe0] sm:$0xff]
        %v4408 = vld [vmem:[#allocation3 + $0xe8] sm:$0xff]
        %v4409 = vld [vmem:[#allocation3 + $0xf0] sm:$0xff]
        %v4410 = vld [vmem:[#allocation3 + $0xf8] sm:$0xff]
        %v4411 = vld [vmem:[#allocation3 + $0x100] sm:$0xff]
        %v4412 = vld [vmem:[#allocation3 + $0x108] sm:$0xff]
        %v4413 = vld [vmem:[#allocation3 + $0x110] sm:$0xff]
        %v4414 = vld [vmem:[#allocation3 + $0x118] sm:$0xff]
        %v4415 = vld [vmem:[#allocation3 + $0x120] sm:$0xff]
        %v4416 = vld [vmem:[#allocation3 + $0x128] sm:$0xff]
        %v4417 = vld [vmem:[#allocation3 + $0x130] sm:$0xff]
        %v4418 = vld [vmem:[#allocation3 + $0x138] sm:$0xff]
        %v4419 = vld [vmem:[#allocation3 + $0x140] sm:$0xff]
        %v4420 = vld [vmem:[#allocation3 + $0x148] sm:$0xff]
        %v4421 = vld [vmem:[#allocation3 + $0x150] sm:$0xff]
        %v4422 = vld [vmem:[#allocation3 + $0x158] sm:$0xff]
        %v4423 = vld [vmem:[#allocation3 + $0x160] sm:$0xff]
        %v4424 = vld [vmem:[#allocation3 + $0x168] sm:$0xff]
        %v4425 = vld [vmem:[#allocation3 + $0x170] sm:$0xff]
        %v4426 = vld [vmem:[#allocation3 + $0x178] sm:$0xff]
        %v4427 = vld [vmem:[#allocation3 + $0x180] sm:$0xff]
        %v4428 = vld [vmem:[#allocation3 + $0x188] sm:$0xff]
        %v4429 = vld [vmem:[#allocation3 + $0x190] sm:$0xff]
        %v4430 = vld [vmem:[#allocation3 + $0x198] sm:$0xff]
        %v4431 = vld [vmem:[#allocation3 + $0x1a0] sm:$0xff]
        %v4432 = vld [vmem:[#allocation3 + $0x1a8] sm:$0xff]
        %v4433 = vld [vmem:[#allocation3 + $0x1b0] sm:$0xff]
        %v4434 = vld [vmem:[#allocation3 + $0x1b8] sm:$0xff]
        %v4435 = vld [vmem:[#allocation3 + $0x1c0] sm:$0xff]
        %v4436 = vld [vmem:[#allocation3 + $0x1c8] sm:$0xff]
        %v4437 = vld [vmem:[#allocation3 + $0x1d0] sm:$0xff]
        %v4438 = vld [vmem:[#allocation3 + $0x1d8] sm:$0xff]
        %v4439 = vld [vmem:[#allocation3 + $0x1e0] sm:$0xff]
        %v4440 = vld [vmem:[#allocation3 + $0x1e8] sm:$0xff]
        %v4441 = vld [vmem:[#allocation3 + $0x1f0] sm:$0xff]
        %v4442 = vld [vmem:[#allocation3 + $0x1f8] sm:$0xff]
        %v4443 = vld [vmem:[%s9] sm:$0xff]
        %v4444 = vld [vmem:[%s9 + $0x8] sm:$0xff]
        %v4445 = vld [vmem:[%s9 + $0x10] sm:$0xff]
        %v4446 = vld [vmem:[%s9 + $0x18] sm:$0xff]
        %v4447 = vld [vmem:[%s9 + $0x20] sm:$0xff]
        %v4448 = vld [vmem:[%s9 + $0x28] sm:$0xff]
        %v4449 = vld [vmem:[%s9 + $0x30] sm:$0xff]
        %v4450 = vld [vmem:[%s9 + $0x38] sm:$0xff]
        %v4451 = vld [vmem:[%s9 + $0x40] sm:$0xff]
        %v4452 = vld [vmem:[%s9 + $0x48] sm:$0xff]
        %v4453 = vld [vmem:[%s9 + $0x50] sm:$0xff]
        %v4454 = vld [vmem:[%s9 + $0x58] sm:$0xff]
        %v4455 = vld [vmem:[%s9 + $0x60] sm:$0xff]
        %v4456 = vld [vmem:[%s9 + $0x68] sm:$0xff]
        %v4457 = vld [vmem:[%s9 + $0x70] sm:$0xff]
        %v4458 = vld [vmem:[%s9 + $0x78] sm:$0xff]
        %v4459 = vld [vmem:[%s9 + $0x80] sm:$0xff]
        %v4460 = vld [vmem:[%s9 + $0x88] sm:$0xff]
        %v4461 = vld [vmem:[%s9 + $0x90] sm:$0xff]
        %v4462 = vld [vmem:[%s9 + $0x98] sm:$0xff]
        %v4463 = vld [vmem:[%s9 + $0xa0] sm:$0xff]
        %v4464 = vld [vmem:[%s9 + $0xa8] sm:$0xff]
        %v4465 = vld [vmem:[%s9 + $0xb0] sm:$0xff]
        %v4466 = vld [vmem:[%s9 + $0xb8] sm:$0xff]
        %v4467 = vld [vmem:[#allocation3 + $0x200] sm:$0xff]
        %v4468 = vld [vmem:[#allocation3 + $0x208] sm:$0xff]
        %v4469 = vld [vmem:[#allocation3 + $0x210] sm:$0xff]
        %v4470 = vld [vmem:[#allocation3 + $0x218] sm:$0xff]
        %s4471 = scalar_lea.vmem %s9, 192
        %v4472 = vld [vmem:[%s4471] sm:$0xff]
        %v4473 = vld [vmem:[%s4471 + $0x8] sm:$0xff]
        %v4474 = vld [vmem:[%s4471 + $0x10] sm:$0xff]
        %v4475 = vld [vmem:[%s4471 + $0x18] sm:$0xff]
        %v4476 = vld [vmem:[%s4471 + $0x20] sm:$0xff]
        %v4477 = vld [vmem:[%s4471 + $0x28] sm:$0xff]
        %v4478 = vld [vmem:[%s4471 + $0x30] sm:$0xff]
        %v4479 = vld [vmem:[%s4471 + $0x38] sm:$0xff]
        %v4480 = vld [vmem:[%s4471 + $0x40] sm:$0xff]
        %v4481 = vld [vmem:[%s4471 + $0x48] sm:$0xff]
        %v4482 = vld [vmem:[%s4471 + $0x50] sm:$0xff]
        %v4483 = vld [vmem:[%s4471 + $0x58] sm:$0xff]
        %v4484 = vld [vmem:[%s4471 + $0x60] sm:$0xff]
        %v4485 = vld [vmem:[%s4471 + $0x68] sm:$0xff]
        %v4486 = vld [vmem:[%s4471 + $0x70] sm:$0xff]
        %v4487 = vld [vmem:[%s4471 + $0x78] sm:$0xff]
        %v4488 = vld [vmem:[%s4471 + $0x80] sm:$0xff]
        %v4489 = vld [vmem:[%s4471 + $0x88] sm:$0xff]
        %v4490 = vld [vmem:[%s4471 + $0x90] sm:$0xff]
        %v4491 = vld [vmem:[%s4471 + $0x98] sm:$0xff]
        %v4492 = vld [vmem:[%s4471 + $0xa0] sm:$0xff]
        %v4493 = vld [vmem:[%s4471 + $0xa8] sm:$0xff]
        %v4494 = vld [vmem:[%s4471 + $0xb0] sm:$0xff]
        %v4495 = vld [vmem:[%s4471 + $0xb8] sm:$0xff]
        %v4497 = vsel %vm3174, %v4384, 0
        %v4500 = vsel %vm3174, %v4386, 0
        %v4503 = vsel %vm3174, %v4388, 0
        %v4506 = vsel %vm3174, %v4390, 0
        %v4509 = vsel %vm3174, %v4392, 0
        %v4512 = vsel %vm3174, %v4394, 0
        %v4515 = vsel %vm3174, %v4396, 0
        %v4518 = vsel %vm3174, %v4398, 0
        %v4521 = vsel %vm3174, %v4400, 0
        %v4524 = vsel %vm3174, %v4402, 0
        %v4527 = vsel %vm3174, %v4404, 0
        %v4530 = vsel %vm3174, %v4406, 0
        %v4533 = vsel %vm3174, %v4408, 0
        %v4536 = vsel %vm3174, %v4410, 0
        %v4539 = vsel %vm3174, %v4412, 0
        %v4542 = vsel %vm3174, %v4414, 0
        %v4545 = vsel %vm3174, %v4416, 0
        %v4548 = vsel %vm3174, %v4418, 0
        %v4551 = vsel %vm3174, %v4420, 0
        %v4554 = vsel %vm3174, %v4422, 0
        %v4557 = vsel %vm3174, %v4424, 0
        %v4560 = vsel %vm3174, %v4426, 0
        %v4563 = vsel %vm3174, %v4428, 0
        %v4566 = vsel %vm3174, %v4430, 0
        %v4569 = vsel %vm3174, %v4432, 0
        %v4572 = vsel %vm3174, %v4434, 0
        %v4575 = vsel %vm3174, %v4436, 0
        %v4578 = vsel %vm3174, %v4438, 0
        %v4581 = vsel %vm3174, %v4440, 0
        %v4584 = vsel %vm3174, %v4442, 0
        %v4587 = vsel %vm3174, %v4468, 0
        %v4590 = vsel %vm3174, %v4470, 0
        %4592 = vmatprep.subr.mxu0 0.0
        %4593 = vmatpush1.msra.mxu0 %v4472
        %4594 = vmatprep.subr.mxu0 0.0
        %4595 = vmatpush1.msra.mxu0 %v4473
        %4596 = vmatprep.subr.mxu0 0.0
        %4597 = vmatpush1.msra.mxu0 %v4474
        %4598 = vmatprep.subr.mxu0 0.0
        %4599 = vmatpush1.msra.mxu0 %v4475
        %4600 = vmatprep.subr.mxu0 0.0
        %4601 = vmatpush1.msra.mxu0 %v4476
        %4602 = vmatprep.subr.mxu0 0.0
        %4603 = vmatpush1.msra.mxu0 %v4477
        %4604 = vmatprep.subr.mxu0 0.0
        %4605 = vmatpush1.msra.mxu0 %v4478
        %4606 = vmatprep.subr.mxu0 0.0
        %4607 = vmatpush1.msra.mxu0 %v4479
        %4608 = vmatprep.subr.mxu0 0.0
        %4609 = vmatpush1.msra.mxu0 %v4480
        %4610 = vmatprep.subr.mxu0 0.0
        %4611 = vmatpush1.msra.mxu0 %v4481
        %4612 = vmatprep.subr.mxu0 0.0
        %4613 = vmatpush1.msra.mxu0 %v4482
        %4614 = vmatprep.subr.mxu0 0.0
        %4615 = vmatpush1.msra.mxu0 %v4483
        %4616 = vmatprep.subr.mxu0 0.0
        %4617 = vmatpush1.msra.mxu0 %v4484
        %4618 = vmatprep.subr.mxu0 0.0
        %4619 = vmatpush1.msra.mxu0 %v4485
        %4620 = vmatprep.subr.mxu0 0.0
        %4621 = vmatpush1.msra.mxu0 %v4486
        %4622 = vmatprep.subr.mxu0 0.0
        %4623 = vmatpush1.msra.mxu0 %v4487
        %4624 = vmatprep.subr.mxu0 0.0
        %4625 = vmatpush1.msra.mxu0 %v4488
        %4626 = vmatprep.subr.mxu0 0.0
        %4627 = vmatpush1.msra.mxu0 %v4489
        %4628 = vmatprep.subr.mxu0 0.0
        %4629 = vmatpush1.msra.mxu0 %v4490
        %4630 = vmatprep.subr.mxu0 0.0
        %4631 = vmatpush1.msra.mxu0 %v4491
        %4632 = vmatprep.subr.mxu0 0.0
        %4633 = vmatpush1.msra.mxu0 %v4492
        %4634 = vmatprep.subr.mxu0 0.0
        %4635 = vmatpush1.msra.mxu0 %v4493
        %4636 = vmatprep.subr.mxu0 0.0
        %4637 = vmatpush1.msra.mxu0 %v4494
        %4638 = vmatprep.subr.mxu0 0.0
        %4639 = vmatpush1.msra.mxu0 %v4495
        %4640 = vmatprep.subr.mxu0 0.0
        %4641 = vmatpush1.msra.mxu0 0.0
        %4642 = vmatprep.subr.mxu0 0.0
        %4643 = vmatpush1.msra.mxu0 0.0
        %4644 = vmatprep.subr.mxu0 0.0
        %4645 = vmatpush1.msra.mxu0 0.0
        %4646 = vmatprep.subr.mxu0 0.0
        %4647 = vmatpush1.msra.mxu0 0.0
        %4648 = vmatprep.subr.mxu0 0.0
        %4649 = vmatpush1.msra.mxu0 0.0
        %4650 = vmatprep.subr.mxu0 0.0
        %4651 = vmatpush1.msra.mxu0 0.0
        %4652 = vmatprep.subr.mxu0 0.0
        %4653 = vmatpush1.msra.mxu0 0.0
        %4654 = vmatprep.subr.mxu0 0.0
        %4655 = vmatpush1.msra.mxu0 0.0
        %4656 = vmatprep.mubr.f32.mxu0 %v4497
        %4657 = vmatmul.mubr.f32.gmra.mrb[0].mxu0 %v4383
        %v4658 = vpop.f32.mrb[0].mxu0
        %v4659 = vadd.f32 0.0, %v4658
        %v4660 = vpop.f32.mrb[0].mxu0
        %4661 = vmatprep.mubr.f32.mxu0 %v4500
        %4662 = vmatmul.mubr.f32.gmra.mrb[0].mxu0 %v4385
        %v4663 = vpop.f32.mrb[0].mxu0
        %v4664 = vadd.f32 0.0, %v4663
        %v4665 = vpop.f32.mrb[0].mxu0
        %4666 = vmatprep.mubr.f32.mxu0 %v4503
        %4667 = vmatmul.mubr.f32.gmra.mrb[0].mxu0 %v4387
        %v4668 = vpop.f32.mrb[0].mxu0
        %v4669 = vadd.f32 0.0, %v4668
        %v4670 = vpop.f32.mrb[0].mxu0
        %4671 = vmatprep.mubr.f32.mxu0 %v4506
        %4672 = vmatmul.mubr.f32.gmra.mrb[0].mxu0 %v4389
        %v4673 = vpop.f32.mrb[0].mxu0
        %v4674 = vadd.f32 0.0, %v4673
        %v4675 = vpop.f32.mrb[0].mxu0
        %4676 = vmatprep.mubr.f32.mxu0 %v4509
        %4677 = vmatmul.mubr.f32.gmra.mrb[0].mxu0 %v4391
        %v4678 = vpop.f32.mrb[0].mxu0
        %v4679 = vadd.f32 0.0, %v4678
        %v4680 = vpop.f32.mrb[0].mxu0
        %4681 = vmatprep.mubr.f32.mxu0 %v4512
        %4682 = vmatmul.mubr.f32.gmra.mrb[0].mxu0 %v4393
        %v4683 = vpop.f32.mrb[0].mxu0
        %v4684 = vadd.f32 0.0, %v4683
        %v4685 = vpop.f32.mrb[0].mxu0
        %4686 = vmatprep.mubr.f32.mxu0 %v4515
        %4687 = vmatmul.mubr.f32.gmra.mrb[0].mxu0 %v4395
        %v4688 = vpop.f32.mrb[0].mxu0
        %v4689 = vadd.f32 0.0, %v4688
        %v4690 = vpop.f32.mrb[0].mxu0
        %4691 = vmatprep.mubr.f32.mxu0 %v4518
        %4692 = vmatmul.mubr.f32.gmra.mrb[0].mxu0 %v4397
        %v4693 = vpop.f32.mrb[0].mxu0
        %v4694 = vadd.f32 0.0, %v4693
        %v4695 = vpop.f32.mrb[0].mxu0
        %4696 = vmatprep.mubr.f32.mxu0 %v4521
        %4697 = vmatmul.mubr.f32.gmra.mrb[0].mxu0 %v4399
        %v4698 = vpop.f32.mrb[0].mxu0
        %v4699 = vadd.f32 0.0, %v4698
        %v4700 = vpop.f32.mrb[0].mxu0
        %4701 = vmatprep.mubr.f32.mxu0 %v4524
        %4702 = vmatmul.mubr.f32.gmra.mrb[0].mxu0 %v4401
        %v4703 = vpop.f32.mrb[0].mxu0
        %v4704 = vadd.f32 0.0, %v4703
        %v4705 = vpop.f32.mrb[0].mxu0
        %4706 = vmatprep.mubr.f32.mxu0 %v4527
        %4707 = vmatmul.mubr.f32.gmra.mrb[0].mxu0 %v4403
        %v4708 = vpop.f32.mrb[0].mxu0
        %v4709 = vadd.f32 0.0, %v4708
        %v4710 = vpop.f32.mrb[0].mxu0
        %4711 = vmatprep.mubr.f32.mxu0 %v4530
        %4712 = vmatmul.mubr.f32.gmra.mrb[0].mxu0 %v4405
        %v4713 = vpop.f32.mrb[0].mxu0
        %v4714 = vadd.f32 0.0, %v4713
        %v4715 = vpop.f32.mrb[0].mxu0
        %4716 = vmatprep.mubr.f32.mxu0 %v4533
        %4717 = vmatmul.mubr.f32.gmra.mrb[0].mxu0 %v4407
        %v4718 = vpop.f32.mrb[0].mxu0
        %v4719 = vadd.f32 0.0, %v4718
        %v4720 = vpop.f32.mrb[0].mxu0
        %4721 = vmatprep.mubr.f32.mxu0 %v4536
        %4722 = vmatmul.mubr.f32.gmra.mrb[0].mxu0 %v4409
        %v4723 = vpop.f32.mrb[0].mxu0
        %v4724 = vadd.f32 0.0, %v4723
        %v4725 = vpop.f32.mrb[0].mxu0
        %4726 = vmatprep.mubr.f32.mxu0 %v4539
        %4727 = vmatmul.mubr.f32.gmra.mrb[0].mxu0 %v4411
        %v4728 = vpop.f32.mrb[0].mxu0
        %v4729 = vadd.f32 0.0, %v4728
        %v4730 = vpop.f32.mrb[0].mxu0
        %4731 = vmatprep.mubr.f32.mxu0 %v4542
        %4732 = vmatmul.mubr.f32.gmra.mrb[0].mxu0 %v4413
        %v4733 = vpop.f32.mrb[0].mxu0
        %v4734 = vadd.f32 0.0, %v4733
        %v4735 = vpop.f32.mrb[0].mxu0
        %4736 = vmatprep.mubr.f32.mxu0 %v4545
        %4737 = vmatmul.mubr.f32.gmra.mrb[0].mxu0 %v4415
        %v4738 = vpop.f32.mrb[0].mxu0
        %v4739 = vadd.f32 0.0, %v4738
        %v4740 = vpop.f32.mrb[0].mxu0
        %4741 = vmatprep.mubr.f32.mxu0 %v4548
        %4742 = vmatmul.mubr.f32.gmra.mrb[0].mxu0 %v4417
        %v4743 = vpop.f32.mrb[0].mxu0
        %v4744 = vadd.f32 0.0, %v4743
        %v4745 = vpop.f32.mrb[0].mxu0
        %4746 = vmatprep.mubr.f32.mxu0 %v4551
        %4747 = vmatmul.mubr.f32.gmra.mrb[0].mxu0 %v4419
        %v4748 = vpop.f32.mrb[0].mxu0
        %v4749 = vadd.f32 0.0, %v4748
        %v4750 = vpop.f32.mrb[0].mxu0
        %4751 = vmatprep.mubr.f32.mxu0 %v4554
        %4752 = vmatmul.mubr.f32.gmra.mrb[0].mxu0 %v4421
        %v4753 = vpop.f32.mrb[0].mxu0
        %v4754 = vadd.f32 0.0, %v4753
        %v4755 = vpop.f32.mrb[0].mxu0
        %4756 = vmatprep.mubr.f32.mxu0 %v4557
        %4757 = vmatmul.mubr.f32.gmra.mrb[0].mxu0 %v4423
        %v4758 = vpop.f32.mrb[0].mxu0
        %v4759 = vadd.f32 0.0, %v4758
        %v4760 = vpop.f32.mrb[0].mxu0
        %4761 = vmatprep.mubr.f32.mxu0 %v4560
        %4762 = vmatmul.mubr.f32.gmra.mrb[0].mxu0 %v4425
        %v4763 = vpop.f32.mrb[0].mxu0
        %v4764 = vadd.f32 0.0, %v4763
        %v4765 = vpop.f32.mrb[0].mxu0
        %4766 = vmatprep.mubr.f32.mxu0 %v4563
        %4767 = vmatmul.mubr.f32.gmra.mrb[0].mxu0 %v4427
        %v4768 = vpop.f32.mrb[0].mxu0
        %v4769 = vadd.f32 0.0, %v4768
        %v4770 = vpop.f32.mrb[0].mxu0
        %4771 = vmatprep.mubr.f32.mxu0 %v4566
        %4772 = vmatmul.mubr.f32.gmra.mrb[0].mxu0 %v4429
        %v4773 = vpop.f32.mrb[0].mxu0
        %v4774 = vadd.f32 0.0, %v4773
        %v4775 = vpop.f32.mrb[0].mxu0
        %4776 = vmatprep.mubr.f32.mxu0 %v4569
        %4777 = vmatmul.mubr.f32.gmra.mrb[0].mxu0 %v4431
        %v4778 = vpop.f32.mrb[0].mxu0
        %v4779 = vadd.f32 0.0, %v4778
        %v4780 = vpop.f32.mrb[0].mxu0
        %4781 = vmatprep.mubr.f32.mxu0 %v4572
        %4782 = vmatmul.mubr.f32.gmra.mrb[0].mxu0 %v4433
        %v4783 = vpop.f32.mrb[0].mxu0
        %v4784 = vadd.f32 0.0, %v4783
        %v4785 = vpop.f32.mrb[0].mxu0
        %4786 = vmatprep.mubr.f32.mxu0 %v4575
        %4787 = vmatmul.mubr.f32.gmra.mrb[0].mxu0 %v4435
        %v4788 = vpop.f32.mrb[0].mxu0
        %v4789 = vadd.f32 0.0, %v4788
        %v4790 = vpop.f32.mrb[0].mxu0
        %4791 = vmatprep.mubr.f32.mxu0 %v4578
        %4792 = vmatmul.mubr.f32.gmra.mrb[0].mxu0 %v4437
        %v4793 = vpop.f32.mrb[0].mxu0
        %v4794 = vadd.f32 0.0, %v4793
        %v4795 = vpop.f32.mrb[0].mxu0
        %4796 = vmatprep.mubr.f32.mxu0 %v4581
        %4797 = vmatmul.mubr.f32.gmra.mrb[0].mxu0 %v4439
        %v4798 = vpop.f32.mrb[0].mxu0
        %v4799 = vadd.f32 0.0, %v4798
        %v4800 = vpop.f32.mrb[0].mxu0
        %4801 = vmatprep.mubr.f32.mxu0 %v4584
        %4802 = vmatmul.mubr.f32.gmra.mrb[0].mxu0 %v4441
        %v4803 = vpop.f32.mrb[0].mxu0
        %v4804 = vadd.f32 0.0, %v4803
        %v4805 = vpop.f32.mrb[0].mxu0
        %4806 = vmatprep.mubr.f32.mxu0 %v4587
        %4807 = vmatmul.mubr.f32.gmra.mrb[0].mxu0 %v4467
        %v4808 = vpop.f32.mrb[0].mxu0
        %v4809 = vadd.f32 0.0, %v4808
        %v4810 = vpop.f32.mrb[0].mxu0
        %4811 = vmatprep.mubr.f32.mxu0 %v4590
        %4812 = vmatmul.mubr.f32.gmra.mrb[0].mxu0 %v4469
        %v4813 = vpop.f32.mrb[0].mxu0
        %v4814 = vadd.f32 0.0, %v4813
        %v4815 = vpop.f32.mrb[0].mxu0
        %4816 = vdwg.mxu0
        %v4818 = vsel %vm3174, %v4380, 0
        %v4821 = vsel %vm3174, %v4382, 0
        %4823 = vmatprep.subr.mxu0 0.0
        %4824 = vmatpush1.msra.mxu0 %v4443
        %4825 = vmatprep.subr.mxu0 0.0
        %4826 = vmatpush1.msra.mxu0 %v4444
        %4827 = vmatprep.subr.mxu0 0.0
        %4828 = vmatpush1.msra.mxu0 %v4445
        %4829 = vmatprep.subr.mxu0 0.0
        %4830 = vmatpush1.msra.mxu0 %v4446
        %4831 = vmatprep.subr.mxu0 0.0
        %4832 = vmatpush1.msra.mxu0 %v4447
        %4833 = vmatprep.subr.mxu0 0.0
        %4834 = vmatpush1.msra.mxu0 %v4448
        %4835 = vmatprep.subr.mxu0 0.0
        %4836 = vmatpush1.msra.mxu0 %v4449
        %4837 = vmatprep.subr.mxu0 0.0
        %4838 = vmatpush1.msra.mxu0 %v4450
        %4839 = vmatprep.subr.mxu0 0.0
        %4840 = vmatpush1.msra.mxu0 %v4451
        %4841 = vmatprep.subr.mxu0 0.0
        %4842 = vmatpush1.msra.mxu0 %v4452
        %4843 = vmatprep.subr.mxu0 0.0
        %4844 = vmatpush1.msra.mxu0 %v4453
        %4845 = vmatprep.subr.mxu0 0.0
        %4846 = vmatpush1.msra.mxu0 %v4454
        %4847 = vmatprep.subr.mxu0 0.0
        %4848 = vmatpush1.msra.mxu0 %v4455
        %4849 = vmatprep.subr.mxu0 0.0
        %4850 = vmatpush1.msra.mxu0 %v4456
        %4851 = vmatprep.subr.mxu0 0.0
        %4852 = vmatpush1.msra.mxu0 %v4457
        %4853 = vmatprep.subr.mxu0 0.0
        %4854 = vmatpush1.msra.mxu0 %v4458
        %4855 = vmatprep.subr.mxu0 0.0
        %4856 = vmatpush1.msra.mxu0 %v4459
        %4857 = vmatprep.subr.mxu0 0.0
        %4858 = vmatpush1.msra.mxu0 %v4460
        %4859 = vmatprep.subr.mxu0 0.0
        %4860 = vmatpush1.msra.mxu0 %v4461
        %4861 = vmatprep.subr.mxu0 0.0
        %4862 = vmatpush1.msra.mxu0 %v4462
        %4863 = vmatprep.subr.mxu0 0.0
        %4864 = vmatpush1.msra.mxu0 %v4463
        %4865 = vmatprep.subr.mxu0 0.0
        %4866 = vmatpush1.msra.mxu0 %v4464
        %4867 = vmatprep.subr.mxu0 0.0
        %4868 = vmatpush1.msra.mxu0 %v4465
        %4869 = vmatprep.subr.mxu0 0.0
        %4870 = vmatpush1.msra.mxu0 %v4466
        %4871 = vmatprep.subr.mxu0 0.0
        %4872 = vmatpush1.msra.mxu0 0.0
        %4873 = vmatprep.subr.mxu0 0.0
        %4874 = vmatpush1.msra.mxu0 0.0
        %4875 = vmatprep.subr.mxu0 0.0
        %4876 = vmatpush1.msra.mxu0 0.0
        %4877 = vmatprep.subr.mxu0 0.0
        %4878 = vmatpush1.msra.mxu0 0.0
        %4879 = vmatprep.subr.mxu0 0.0
        %4880 = vmatpush1.msra.mxu0 0.0
        %4881 = vmatprep.subr.mxu0 0.0
        %4882 = vmatpush1.msra.mxu0 0.0
        %4883 = vmatprep.subr.mxu0 0.0
        %4884 = vmatpush1.msra.mxu0 0.0
        %4885 = vmatprep.subr.mxu0 0.0
        %4886 = vmatpush1.msra.mxu0 0.0
        %4887 = vmatprep.mubr.f32.mxu0 %v4818
        %4888 = vmatmul.mubr.f32.gmra.mrb[0].mxu0 %v4379
        %v4889 = vpop.f32.mrb[0].mxu0
        %v4890 = vadd.f32 %v4659, %v4889
        %v4891 = vpop.f32.mrb[0].mxu0
        %4892 = vmatprep.mubr.f32.mxu0 %v4821
        %4893 = vmatmul.mubr.f32.gmra.mrb[0].mxu0 %v4381
        %v4894 = vpop.f32.mrb[0].mxu0
        %v4895 = vadd.f32 %v4664, %v4894
        %v4896 = vpop.f32.mrb[0].mxu0
        %4897 = vmatprep.mubr.f32.mxu0 %v4497
        %4898 = vmatmul.mubr.f32.gmra.mrb[0].mxu0 %v4383
        %v4899 = vpop.f32.mrb[0].mxu0
        %v4900 = vadd.f32 %v4669, %v4899
        %v4901 = vpop.f32.mrb[0].mxu0
        %4902 = vmatprep.mubr.f32.mxu0 %v4500
        %4903 = vmatmul.mubr.f32.gmra.mrb[0].mxu0 %v4385
        %v4904 = vpop.f32.mrb[0].mxu0
        %v4905 = vadd.f32 %v4674, %v4904
        %v4906 = vpop.f32.mrb[0].mxu0
        %4907 = vmatprep.mubr.f32.mxu0 %v4503
        %4908 = vmatmul.mubr.f32.gmra.mrb[0].mxu0 %v4387
        %v4909 = vpop.f32.mrb[0].mxu0
        %v4910 = vadd.f32 %v4679, %v4909
        %v4911 = vpop.f32.mrb[0].mxu0
        %4912 = vmatprep.mubr.f32.mxu0 %v4506
        %4913 = vmatmul.mubr.f32.gmra.mrb[0].mxu0 %v4389
        %v4914 = vpop.f32.mrb[0].mxu0
        %v4915 = vadd.f32 %v4684, %v4914
        %v4916 = vpop.f32.mrb[0].mxu0
        %4917 = vmatprep.mubr.f32.mxu0 %v4509
        %4918 = vmatmul.mubr.f32.gmra.mrb[0].mxu0 %v4391
        %v4919 = vpop.f32.mrb[0].mxu0
        %v4920 = vadd.f32 %v4689, %v4919
        %v4921 = vpop.f32.mrb[0].mxu0
        %4922 = vmatprep.mubr.f32.mxu0 %v4512
        %4923 = vmatmul.mubr.f32.gmra.mrb[0].mxu0 %v4393
        %v4924 = vpop.f32.mrb[0].mxu0
        %v4925 = vadd.f32 %v4694, %v4924
        %v4926 = vpop.f32.mrb[0].mxu0
        %4927 = vmatprep.mubr.f32.mxu0 %v4515
        %4928 = vmatmul.mubr.f32.gmra.mrb[0].mxu0 %v4395
        %v4929 = vpop.f32.mrb[0].mxu0
        %v4930 = vadd.f32 %v4699, %v4929
        %v4931 = vpop.f32.mrb[0].mxu0
        %4932 = vmatprep.mubr.f32.mxu0 %v4518
        %4933 = vmatmul.mubr.f32.gmra.mrb[0].mxu0 %v4397
        %v4934 = vpop.f32.mrb[0].mxu0
        %v4935 = vadd.f32 %v4704, %v4934
        %v4936 = vpop.f32.mrb[0].mxu0
        %4937 = vmatprep.mubr.f32.mxu0 %v4521
        %4938 = vmatmul.mubr.f32.gmra.mrb[0].mxu0 %v4399
        %v4939 = vpop.f32.mrb[0].mxu0
        %v4940 = vadd.f32 %v4709, %v4939
        %v4941 = vpop.f32.mrb[0].mxu0
        %4942 = vmatprep.mubr.f32.mxu0 %v4524
        %4943 = vmatmul.mubr.f32.gmra.mrb[0].mxu0 %v4401
        %v4944 = vpop.f32.mrb[0].mxu0
        %v4945 = vadd.f32 %v4714, %v4944
        %v4946 = vpop.f32.mrb[0].mxu0
        %4947 = vmatprep.mubr.f32.mxu0 %v4527
        %4948 = vmatmul.mubr.f32.gmra.mrb[0].mxu0 %v4403
        %v4949 = vpop.f32.mrb[0].mxu0
        %v4950 = vadd.f32 %v4719, %v4949
        %v4951 = vpop.f32.mrb[0].mxu0
        %4952 = vmatprep.mubr.f32.mxu0 %v4530
        %4953 = vmatmul.mubr.f32.gmra.mrb[0].mxu0 %v4405
        %v4954 = vpop.f32.mrb[0].mxu0
        %v4955 = vadd.f32 %v4724, %v4954
        %v4956 = vpop.f32.mrb[0].mxu0
        %4957 = vmatprep.mubr.f32.mxu0 %v4533
        %4958 = vmatmul.mubr.f32.gmra.mrb[0].mxu0 %v4407
        %v4959 = vpop.f32.mrb[0].mxu0
        %v4960 = vadd.f32 %v4729, %v4959
        %v4961 = vpop.f32.mrb[0].mxu0
        %4962 = vmatprep.mubr.f32.mxu0 %v4536
        %4963 = vmatmul.mubr.f32.gmra.mrb[0].mxu0 %v4409
        %v4964 = vpop.f32.mrb[0].mxu0
        %v4965 = vadd.f32 %v4734, %v4964
        %v4966 = vpop.f32.mrb[0].mxu0
        %4967 = vmatprep.mubr.f32.mxu0 %v4539
        %4968 = vmatmul.mubr.f32.gmra.mrb[0].mxu0 %v4411
        %v4969 = vpop.f32.mrb[0].mxu0
        %v4970 = vadd.f32 %v4739, %v4969
        %v4971 = vpop.f32.mrb[0].mxu0
        %4972 = vmatprep.mubr.f32.mxu0 %v4542
        %4973 = vmatmul.mubr.f32.gmra.mrb[0].mxu0 %v4413
        %v4974 = vpop.f32.mrb[0].mxu0
        %v4975 = vadd.f32 %v4744, %v4974
        %v4976 = vpop.f32.mrb[0].mxu0
        %4977 = vmatprep.mubr.f32.mxu0 %v4545
        %4978 = vmatmul.mubr.f32.gmra.mrb[0].mxu0 %v4415
        %v4979 = vpop.f32.mrb[0].mxu0
        %v4980 = vadd.f32 %v4749, %v4979
        %v4981 = vpop.f32.mrb[0].mxu0
        %4982 = vmatprep.mubr.f32.mxu0 %v4548
        %4983 = vmatmul.mubr.f32.gmra.mrb[0].mxu0 %v4417
        %v4984 = vpop.f32.mrb[0].mxu0
        %v4985 = vadd.f32 %v4754, %v4984
        %v4986 = vpop.f32.mrb[0].mxu0
        %4987 = vmatprep.mubr.f32.mxu0 %v4551
        %4988 = vmatmul.mubr.f32.gmra.mrb[0].mxu0 %v4419
        %v4989 = vpop.f32.mrb[0].mxu0
        %v4990 = vadd.f32 %v4759, %v4989
        %v4991 = vpop.f32.mrb[0].mxu0
        %4992 = vmatprep.mubr.f32.mxu0 %v4554
        %4993 = vmatmul.mubr.f32.gmra.mrb[0].mxu0 %v4421
        %v4994 = vpop.f32.mrb[0].mxu0
        %v4995 = vadd.f32 %v4764, %v4994
        %v4996 = vpop.f32.mrb[0].mxu0
        %4997 = vmatprep.mubr.f32.mxu0 %v4557
        %4998 = vmatmul.mubr.f32.gmra.mrb[0].mxu0 %v4423
        %v4999 = vpop.f32.mrb[0].mxu0
        %v5000 = vadd.f32 %v4769, %v4999
        %v5001 = vpop.f32.mrb[0].mxu0
        %5002 = vmatprep.mubr.f32.mxu0 %v4560
        %5003 = vmatmul.mubr.f32.gmra.mrb[0].mxu0 %v4425
        %v5004 = vpop.f32.mrb[0].mxu0
        %v5005 = vadd.f32 %v4774, %v5004
        %v5006 = vpop.f32.mrb[0].mxu0
        %5007 = vmatprep.mubr.f32.mxu0 %v4563
        %5008 = vmatmul.mubr.f32.gmra.mrb[0].mxu0 %v4427
        %v5009 = vpop.f32.mrb[0].mxu0
        %v5010 = vadd.f32 %v4779, %v5009
        %v5011 = vpop.f32.mrb[0].mxu0
        %5012 = vmatprep.mubr.f32.mxu0 %v4566
        %5013 = vmatmul.mubr.f32.gmra.mrb[0].mxu0 %v4429
        %v5014 = vpop.f32.mrb[0].mxu0
        %v5015 = vadd.f32 %v4784, %v5014
        %v5016 = vpop.f32.mrb[0].mxu0
        %5017 = vmatprep.mubr.f32.mxu0 %v4569
        %5018 = vmatmul.mubr.f32.gmra.mrb[0].mxu0 %v4431
        %v5019 = vpop.f32.mrb[0].mxu0
        %v5020 = vadd.f32 %v4789, %v5019
        %v5021 = vpop.f32.mrb[0].mxu0
        %5022 = vmatprep.mubr.f32.mxu0 %v4572
        %5023 = vmatmul.mubr.f32.gmra.mrb[0].mxu0 %v4433
        %v5024 = vpop.f32.mrb[0].mxu0
        %v5025 = vadd.f32 %v4794, %v5024
        %v5026 = vpop.f32.mrb[0].mxu0
        %5027 = vmatprep.mubr.f32.mxu0 %v4575
        %5028 = vmatmul.mubr.f32.gmra.mrb[0].mxu0 %v4435
        %v5029 = vpop.f32.mrb[0].mxu0
        %v5030 = vadd.f32 %v4799, %v5029
        %v5031 = vpop.f32.mrb[0].mxu0
        %5032 = vmatprep.mubr.f32.mxu0 %v4578
        %5033 = vmatmul.mubr.f32.gmra.mrb[0].mxu0 %v4437
        %v5034 = vpop.f32.mrb[0].mxu0
        %v5035 = vadd.f32 %v4804, %v5034
        %v5036 = vpop.f32.mrb[0].mxu0
        %5037 = vmatprep.mubr.f32.mxu0 %v4581
        %5038 = vmatmul.mubr.f32.gmra.mrb[0].mxu0 %v4439
        %v5039 = vpop.f32.mrb[0].mxu0
        %v5040 = vadd.f32 %v4809, %v5039
        %v5041 = vpop.f32.mrb[0].mxu0
        %5042 = vmatprep.mubr.f32.mxu0 %v4584
        %5043 = vmatmul.mubr.f32.gmra.mrb[0].mxu0 %v4441
        %v5044 = vpop.f32.mrb[0].mxu0
        %v5045 = vadd.f32 %v4814, %v5044
        %v5046 = vpop.f32.mrb[0].mxu0
        %5047 = vdwg.mxu0
        %v5048 = vld [vmem:[#allocation3 + $0x40] sm:$0xff]
        %v5049 = vld [vmem:[#allocation3 + $0x48] sm:$0xff]
        %v5050 = vld [vmem:[#allocation3 + $0x50] sm:$0xff]
        %v5051 = vld [vmem:[#allocation3 + $0x58] sm:$0xff]
        %v5052 = vld [vmem:[#allocation3 + $0x60] sm:$0xff]
        %v5053 = vld [vmem:[#allocation3 + $0x68] sm:$0xff]
        %v5054 = vld [vmem:[#allocation3 + $0x70] sm:$0xff]
        %v5055 = vld [vmem:[#allocation3 + $0x78] sm:$0xff]
        %v5056 = vld [vmem:[#allocation3 + $0x80] sm:$0xff]
        %v5057 = vld [vmem:[#allocation3 + $0x88] sm:$0xff]
        %v5058 = vld [vmem:[#allocation3 + $0x90] sm:$0xff]
        %v5059 = vld [vmem:[#allocation3 + $0x98] sm:$0xff]
        %v5060 = vld [vmem:[#allocation3 + $0xa0] sm:$0xff]
        %v5061 = vld [vmem:[#allocation3 + $0xa8] sm:$0xff]
        %v5062 = vld [vmem:[#allocation3 + $0xb0] sm:$0xff]
        %v5063 = vld [vmem:[#allocation3 + $0xb8] sm:$0xff]
        %v5064 = vld [vmem:[#allocation3 + $0xc0] sm:$0xff]
        %v5065 = vld [vmem:[#allocation3 + $0xc8] sm:$0xff]
        %v5066 = vld [vmem:[#allocation3 + $0xd0] sm:$0xff]
        %v5067 = vld [vmem:[#allocation3 + $0xd8] sm:$0xff]
        %v5068 = vld [vmem:[#allocation3 + $0xe0] sm:$0xff]
        %v5069 = vld [vmem:[#allocation3 + $0xe8] sm:$0xff]
        %v5070 = vld [vmem:[#allocation3 + $0xf0] sm:$0xff]
        %v5071 = vld [vmem:[#allocation3 + $0xf8] sm:$0xff]
        %v5072 = vld [vmem:[#allocation3 + $0x100] sm:$0xff]
        %v5073 = vld [vmem:[#allocation3 + $0x108] sm:$0xff]
        %v5074 = vld [vmem:[#allocation3 + $0x110] sm:$0xff]
        %v5075 = vld [vmem:[#allocation3 + $0x118] sm:$0xff]
        %v5076 = vld [vmem:[#allocation3 + $0x120] sm:$0xff]
        %v5077 = vld [vmem:[#allocation3 + $0x128] sm:$0xff]
        %v5078 = vld [vmem:[#allocation3 + $0x130] sm:$0xff]
        %v5079 = vld [vmem:[#allocation3 + $0x138] sm:$0xff]
        %v5080 = vld [vmem:[#allocation3 + $0x140] sm:$0xff]
        %v5081 = vld [vmem:[#allocation3 + $0x148] sm:$0xff]
        %v5082 = vld [vmem:[#allocation3 + $0x150] sm:$0xff]
        %v5083 = vld [vmem:[#allocation3 + $0x158] sm:$0xff]
        %v5084 = vld [vmem:[#allocation3 + $0x160] sm:$0xff]
        %v5085 = vld [vmem:[#allocation3 + $0x168] sm:$0xff]
        %v5086 = vld [vmem:[#allocation3 + $0x170] sm:$0xff]
        %v5087 = vld [vmem:[#allocation3 + $0x178] sm:$0xff]
        %v5088 = vld [vmem:[#allocation3 + $0x180] sm:$0xff]
        %v5089 = vld [vmem:[#allocation3 + $0x188] sm:$0xff]
        %v5090 = vld [vmem:[#allocation3 + $0x190] sm:$0xff]
        %v5091 = vld [vmem:[#allocation3 + $0x198] sm:$0xff]
        %v5092 = vld [vmem:[#allocation3 + $0x1a0] sm:$0xff]
        %v5093 = vld [vmem:[#allocation3 + $0x1a8] sm:$0xff]
        %v5094 = vld [vmem:[#allocation3 + $0x1b0] sm:$0xff]
        %v5095 = vld [vmem:[#allocation3 + $0x1b8] sm:$0xff]
        %v5096 = vld [vmem:[#allocation3 + $0x1c0] sm:$0xff]
        %v5097 = vld [vmem:[#allocation3 + $0x1c8] sm:$0xff]
        %v5098 = vld [vmem:[#allocation3 + $0x1d0] sm:$0xff]
        %v5099 = vld [vmem:[#allocation3 + $0x1d8] sm:$0xff]
        %v5100 = vld [vmem:[#allocation3 + $0x1e0] sm:$0xff]
        %v5101 = vld [vmem:[#allocation3 + $0x1e8] sm:$0xff]
        %v5102 = vld [vmem:[#allocation3 + $0x1f0] sm:$0xff]
        %v5103 = vld [vmem:[#allocation3 + $0x1f8] sm:$0xff]
        %v5104 = vld [vmem:[#allocation3 + $0x200] sm:$0xff]
        %v5105 = vld [vmem:[#allocation3 + $0x208] sm:$0xff]
        %v5106 = vld [vmem:[#allocation3 + $0x210] sm:$0xff]
        %v5107 = vld [vmem:[#allocation3 + $0x218] sm:$0xff]
        %v5108 = vld [vmem:[#allocation3 + $0x220] sm:$0xff]
        %v5109 = vld [vmem:[#allocation3 + $0x228] sm:$0xff]
        %v5110 = vld [vmem:[#allocation3 + $0x230] sm:$0xff]
        %v5111 = vld [vmem:[#allocation3 + $0x238] sm:$0xff]
        %s5112 = scalar_lea.vmem %s9, 384
        %v5113 = vld [vmem:[%s5112] sm:$0xff]
        %v5114 = vld [vmem:[%s5112 + $0x8] sm:$0xff]
        %v5115 = vld [vmem:[%s5112 + $0x10] sm:$0xff]
        %v5116 = vld [vmem:[%s5112 + $0x18] sm:$0xff]
        %v5117 = vld [vmem:[%s5112 + $0x20] sm:$0xff]
        %v5118 = vld [vmem:[%s5112 + $0x28] sm:$0xff]
        %v5119 = vld [vmem:[%s5112 + $0x30] sm:$0xff]
        %v5120 = vld [vmem:[%s5112 + $0x38] sm:$0xff]
        %v5121 = vld [vmem:[%s5112 + $0x40] sm:$0xff]
        %v5122 = vld [vmem:[%s5112 + $0x48] sm:$0xff]
        %v5123 = vld [vmem:[%s5112 + $0x50] sm:$0xff]
        %v5124 = vld [vmem:[%s5112 + $0x58] sm:$0xff]
        %v5125 = vld [vmem:[%s5112 + $0x60] sm:$0xff]
        %v5126 = vld [vmem:[%s5112 + $0x68] sm:$0xff]
        %v5127 = vld [vmem:[%s5112 + $0x70] sm:$0xff]
        %v5128 = vld [vmem:[%s5112 + $0x78] sm:$0xff]
        %v5129 = vld [vmem:[%s5112 + $0x80] sm:$0xff]
        %v5130 = vld [vmem:[%s5112 + $0x88] sm:$0xff]
        %v5131 = vld [vmem:[%s5112 + $0x90] sm:$0xff]
        %v5132 = vld [vmem:[%s5112 + $0x98] sm:$0xff]
        %v5133 = vld [vmem:[%s5112 + $0xa0] sm:$0xff]
        %v5134 = vld [vmem:[%s5112 + $0xa8] sm:$0xff]
        %v5135 = vld [vmem:[%s5112 + $0xb0] sm:$0xff]
        %v5136 = vld [vmem:[%s5112 + $0xb8] sm:$0xff]
        %v5138 = vsel %vm3174, %v5049, 0
        %v5141 = vsel %vm3174, %v5051, 0
        %v5144 = vsel %vm3174, %v5053, 0
        %v5147 = vsel %vm3174, %v5055, 0
        %v5150 = vsel %vm3174, %v5057, 0
        %v5153 = vsel %vm3174, %v5059, 0
        %v5156 = vsel %vm3174, %v5061, 0
        %v5159 = vsel %vm3174, %v5063, 0
        %v5162 = vsel %vm3174, %v5065, 0
        %v5165 = vsel %vm3174, %v5067, 0
        %v5168 = vsel %vm3174, %v5069, 0
        %v5171 = vsel %vm3174, %v5071, 0
        %v5174 = vsel %vm3174, %v5073, 0
        %v5177 = vsel %vm3174, %v5075, 0
        %v5180 = vsel %vm3174, %v5077, 0
        %v5183 = vsel %vm3174, %v5079, 0
        %v5186 = vsel %vm3174, %v5081, 0
        %v5189 = vsel %vm3174, %v5083, 0
        %v5192 = vsel %vm3174, %v5085, 0
        %v5195 = vsel %vm3174, %v5087, 0
        %v5198 = vsel %vm3174, %v5089, 0
        %v5201 = vsel %vm3174, %v5091, 0
        %v5204 = vsel %vm3174, %v5093, 0
        %v5207 = vsel %vm3174, %v5095, 0
        %v5210 = vsel %vm3174, %v5097, 0
        %v5213 = vsel %vm3174, %v5099, 0
        %v5216 = vsel %vm3174, %v5101, 0
        %v5219 = vsel %vm3174, %v5103, 0
        %v5222 = vsel %vm3174, %v5105, 0
        %v5225 = vsel %vm3174, %v5107, 0
        %v5228 = vsel %vm3174, %v5109, 0
        %v5231 = vsel %vm3174, %v5111, 0
        %5233 = vmatprep.subr.mxu0 0.0
        %5234 = vmatpush1.msra.mxu0 %v5113
        %5235 = vmatprep.subr.mxu0 0.0
        %5236 = vmatpush1.msra.mxu0 %v5114
        %5237 = vmatprep.subr.mxu0 0.0
        %5238 = vmatpush1.msra.mxu0 %v5115
        %5239 = vmatprep.subr.mxu0 0.0
        %5240 = vmatpush1.msra.mxu0 %v5116
        %5241 = vmatprep.subr.mxu0 0.0
        %5242 = vmatpush1.msra.mxu0 %v5117
        %5243 = vmatprep.subr.mxu0 0.0
        %5244 = vmatpush1.msra.mxu0 %v5118
        %5245 = vmatprep.subr.mxu0 0.0
        %5246 = vmatpush1.msra.mxu0 %v5119
        %5247 = vmatprep.subr.mxu0 0.0
        %5248 = vmatpush1.msra.mxu0 %v5120
        %5249 = vmatprep.subr.mxu0 0.0
        %5250 = vmatpush1.msra.mxu0 %v5121
        %5251 = vmatprep.subr.mxu0 0.0
        %5252 = vmatpush1.msra.mxu0 %v5122
        %5253 = vmatprep.subr.mxu0 0.0
        %5254 = vmatpush1.msra.mxu0 %v5123
        %5255 = vmatprep.subr.mxu0 0.0
        %5256 = vmatpush1.msra.mxu0 %v5124
        %5257 = vmatprep.subr.mxu0 0.0
        %5258 = vmatpush1.msra.mxu0 %v5125
        %5259 = vmatprep.subr.mxu0 0.0
        %5260 = vmatpush1.msra.mxu0 %v5126
        %5261 = vmatprep.subr.mxu0 0.0
        %5262 = vmatpush1.msra.mxu0 %v5127
        %5263 = vmatprep.subr.mxu0 0.0
        %5264 = vmatpush1.msra.mxu0 %v5128
        %5265 = vmatprep.subr.mxu0 0.0
        %5266 = vmatpush1.msra.mxu0 %v5129
        %5267 = vmatprep.subr.mxu0 0.0
        %5268 = vmatpush1.msra.mxu0 %v5130
        %5269 = vmatprep.subr.mxu0 0.0
        %5270 = vmatpush1.msra.mxu0 %v5131
        %5271 = vmatprep.subr.mxu0 0.0
        %5272 = vmatpush1.msra.mxu0 %v5132
        %5273 = vmatprep.subr.mxu0 0.0
        %5274 = vmatpush1.msra.mxu0 %v5133
        %5275 = vmatprep.subr.mxu0 0.0
        %5276 = vmatpush1.msra.mxu0 %v5134
        %5277 = vmatprep.subr.mxu0 0.0
        %5278 = vmatpush1.msra.mxu0 %v5135
        %5279 = vmatprep.subr.mxu0 0.0
        %5280 = vmatpush1.msra.mxu0 %v5136
        %5281 = vmatprep.subr.mxu0 0.0
        %5282 = vmatpush1.msra.mxu0 0.0
        %5283 = vmatprep.subr.mxu0 0.0
        %5284 = vmatpush1.msra.mxu0 0.0
        %5285 = vmatprep.subr.mxu0 0.0
        %5286 = vmatpush1.msra.mxu0 0.0
        %5287 = vmatprep.subr.mxu0 0.0
        %5288 = vmatpush1.msra.mxu0 0.0
        %5289 = vmatprep.subr.mxu0 0.0
        %5290 = vmatpush1.msra.mxu0 0.0
        %5291 = vmatprep.subr.mxu0 0.0
        %5292 = vmatpush1.msra.mxu0 0.0
        %5293 = vmatprep.subr.mxu0 0.0
        %5294 = vmatpush1.msra.mxu0 0.0
        %5295 = vmatprep.subr.mxu0 0.0
        %5296 = vmatpush1.msra.mxu0 0.0
        %5297 = vmatprep.mubr.f32.mxu0 %v5138
        %5298 = vmatmul.mubr.f32.gmra.mrb[0].mxu0 %v5048
        %v5299 = vpop.f32.mrb[0].mxu0
        %v5300 = vadd.f32 0.0, %v5299
        %v5301 = vpop.f32.mrb[0].mxu0
        %5302 = vmatprep.mubr.f32.mxu0 %v5141
        %5303 = vmatmul.mubr.f32.gmra.mrb[0].mxu0 %v5050
        %v5304 = vpop.f32.mrb[0].mxu0
        %v5305 = vadd.f32 0.0, %v5304
        %v5306 = vpop.f32.mrb[0].mxu0
        %5307 = vmatprep.mubr.f32.mxu0 %v5144
        %5308 = vmatmul.mubr.f32.gmra.mrb[0].mxu0 %v5052
        %v5309 = vpop.f32.mrb[0].mxu0
        %v5310 = vadd.f32 0.0, %v5309
        %v5311 = vpop.f32.mrb[0].mxu0
        %5312 = vmatprep.mubr.f32.mxu0 %v5147
        %5313 = vmatmul.mubr.f32.gmra.mrb[0].mxu0 %v5054
        %v5314 = vpop.f32.mrb[0].mxu0
        %v5315 = vadd.f32 0.0, %v5314
        %v5316 = vpop.f32.mrb[0].mxu0
        %5317 = vmatprep.mubr.f32.mxu0 %v5150
        %5318 = vmatmul.mubr.f32.gmra.mrb[0].mxu0 %v5056
        %v5319 = vpop.f32.mrb[0].mxu0
        %v5320 = vadd.f32 0.0, %v5319
        %v5321 = vpop.f32.mrb[0].mxu0
        %5322 = vmatprep.mubr.f32.mxu0 %v5153
        %5323 = vmatmul.mubr.f32.gmra.mrb[0].mxu0 %v5058
        %v5324 = vpop.f32.mrb[0].mxu0
        %v5325 = vadd.f32 0.0, %v5324
        %v5326 = vpop.f32.mrb[0].mxu0
        %5327 = vmatprep.mubr.f32.mxu0 %v5156
        %5328 = vmatmul.mubr.f32.gmra.mrb[0].mxu0 %v5060
        %v5329 = vpop.f32.mrb[0].mxu0
        %v5330 = vadd.f32 0.0, %v5329
        %v5331 = vpop.f32.mrb[0].mxu0
        %5332 = vmatprep.mubr.f32.mxu0 %v5159
        %5333 = vmatmul.mubr.f32.gmra.mrb[0].mxu0 %v5062
        %v5334 = vpop.f32.mrb[0].mxu0
        %v5335 = vadd.f32 0.0, %v5334
        %v5336 = vpop.f32.mrb[0].mxu0
        %5337 = vmatprep.mubr.f32.mxu0 %v5162
        %5338 = vmatmul.mubr.f32.gmra.mrb[0].mxu0 %v5064
        %v5339 = vpop.f32.mrb[0].mxu0
        %v5340 = vadd.f32 0.0, %v5339
        %v5341 = vpop.f32.mrb[0].mxu0
        %5342 = vmatprep.mubr.f32.mxu0 %v5165
        %5343 = vmatmul.mubr.f32.gmra.mrb[0].mxu0 %v5066
        %v5344 = vpop.f32.mrb[0].mxu0
        %v5345 = vadd.f32 0.0, %v5344
        %v5346 = vpop.f32.mrb[0].mxu0
        %5347 = vmatprep.mubr.f32.mxu0 %v5168
        %5348 = vmatmul.mubr.f32.gmra.mrb[0].mxu0 %v5068
        %v5349 = vpop.f32.mrb[0].mxu0
        %v5350 = vadd.f32 0.0, %v5349
        %v5351 = vpop.f32.mrb[0].mxu0
        %5352 = vmatprep.mubr.f32.mxu0 %v5171
        %5353 = vmatmul.mubr.f32.gmra.mrb[0].mxu0 %v5070
        %v5354 = vpop.f32.mrb[0].mxu0
        %v5355 = vadd.f32 0.0, %v5354
        %v5356 = vpop.f32.mrb[0].mxu0
        %5357 = vmatprep.mubr.f32.mxu0 %v5174
        %5358 = vmatmul.mubr.f32.gmra.mrb[0].mxu0 %v5072
        %v5359 = vpop.f32.mrb[0].mxu0
        %v5360 = vadd.f32 0.0, %v5359
        %v5361 = vpop.f32.mrb[0].mxu0
        %5362 = vmatprep.mubr.f32.mxu0 %v5177
        %5363 = vmatmul.mubr.f32.gmra.mrb[0].mxu0 %v5074
        %v5364 = vpop.f32.mrb[0].mxu0
        %v5365 = vadd.f32 0.0, %v5364
        %v5366 = vpop.f32.mrb[0].mxu0
        %5367 = vmatprep.mubr.f32.mxu0 %v5180
        %5368 = vmatmul.mubr.f32.gmra.mrb[0].mxu0 %v5076
        %v5369 = vpop.f32.mrb[0].mxu0
        %v5370 = vadd.f32 0.0, %v5369
        %v5371 = vpop.f32.mrb[0].mxu0
        %5372 = vmatprep.mubr.f32.mxu0 %v5183
        %5373 = vmatmul.mubr.f32.gmra.mrb[0].mxu0 %v5078
        %v5374 = vpop.f32.mrb[0].mxu0
        %v5375 = vadd.f32 0.0, %v5374
        %v5376 = vpop.f32.mrb[0].mxu0
        %5377 = vmatprep.mubr.f32.mxu0 %v5186
        %5378 = vmatmul.mubr.f32.gmra.mrb[0].mxu0 %v5080
        %v5379 = vpop.f32.mrb[0].mxu0
        %v5380 = vadd.f32 0.0, %v5379
        %v5381 = vpop.f32.mrb[0].mxu0
        %5382 = vmatprep.mubr.f32.mxu0 %v5189
        %5383 = vmatmul.mubr.f32.gmra.mrb[0].mxu0 %v5082
        %v5384 = vpop.f32.mrb[0].mxu0
        %v5385 = vadd.f32 0.0, %v5384
        %v5386 = vpop.f32.mrb[0].mxu0
        %5387 = vmatprep.mubr.f32.mxu0 %v5192
        %5388 = vmatmul.mubr.f32.gmra.mrb[0].mxu0 %v5084
        %v5389 = vpop.f32.mrb[0].mxu0
        %v5390 = vadd.f32 0.0, %v5389
        %v5391 = vpop.f32.mrb[0].mxu0
        %5392 = vmatprep.mubr.f32.mxu0 %v5195
        %5393 = vmatmul.mubr.f32.gmra.mrb[0].mxu0 %v5086
        %v5394 = vpop.f32.mrb[0].mxu0
        %v5395 = vadd.f32 0.0, %v5394
        %v5396 = vpop.f32.mrb[0].mxu0
        %5397 = vmatprep.mubr.f32.mxu0 %v5198
        %5398 = vmatmul.mubr.f32.gmra.mrb[0].mxu0 %v5088
        %v5399 = vpop.f32.mrb[0].mxu0
        %v5400 = vadd.f32 0.0, %v5399
        %v5401 = vpop.f32.mrb[0].mxu0
        %5402 = vmatprep.mubr.f32.mxu0 %v5201
        %5403 = vmatmul.mubr.f32.gmra.mrb[0].mxu0 %v5090
        %v5404 = vpop.f32.mrb[0].mxu0
        %v5405 = vadd.f32 0.0, %v5404
        %v5406 = vpop.f32.mrb[0].mxu0
        %5407 = vmatprep.mubr.f32.mxu0 %v5204
        %5408 = vmatmul.mubr.f32.gmra.mrb[0].mxu0 %v5092
        %v5409 = vpop.f32.mrb[0].mxu0
        %v5410 = vadd.f32 0.0, %v5409
        %v5411 = vpop.f32.mrb[0].mxu0
        %5412 = vmatprep.mubr.f32.mxu0 %v5207
        %5413 = vmatmul.mubr.f32.gmra.mrb[0].mxu0 %v5094
        %v5414 = vpop.f32.mrb[0].mxu0
        %v5415 = vadd.f32 0.0, %v5414
        %v5416 = vpop.f32.mrb[0].mxu0
        %5417 = vmatprep.mubr.f32.mxu0 %v5210
        %5418 = vmatmul.mubr.f32.gmra.mrb[0].mxu0 %v5096
        %v5419 = vpop.f32.mrb[0].mxu0
        %v5420 = vadd.f32 0.0, %v5419
        %v5421 = vpop.f32.mrb[0].mxu0
        %5422 = vmatprep.mubr.f32.mxu0 %v5213
        %5423 = vmatmul.mubr.f32.gmra.mrb[0].mxu0 %v5098
        %v5424 = vpop.f32.mrb[0].mxu0
        %v5425 = vadd.f32 0.0, %v5424
        %v5426 = vpop.f32.mrb[0].mxu0
        %5427 = vmatprep.mubr.f32.mxu0 %v5216
        %5428 = vmatmul.mubr.f32.gmra.mrb[0].mxu0 %v5100
        %v5429 = vpop.f32.mrb[0].mxu0
        %v5430 = vadd.f32 0.0, %v5429
        %v5431 = vpop.f32.mrb[0].mxu0
        %5432 = vmatprep.mubr.f32.mxu0 %v5219
        %5433 = vmatmul.mubr.f32.gmra.mrb[0].mxu0 %v5102
        %v5434 = vpop.f32.mrb[0].mxu0
        %v5435 = vadd.f32 0.0, %v5434
        %v5436 = vpop.f32.mrb[0].mxu0
        %5437 = vmatprep.mubr.f32.mxu0 %v5222
        %5438 = vmatmul.mubr.f32.gmra.mrb[0].mxu0 %v5104
        %v5439 = vpop.f32.mrb[0].mxu0
        %v5440 = vadd.f32 0.0, %v5439
        %v5441 = vpop.f32.mrb[0].mxu0
        %5442 = vmatprep.mubr.f32.mxu0 %v5225
        %5443 = vmatmul.mubr.f32.gmra.mrb[0].mxu0 %v5106
        %v5444 = vpop.f32.mrb[0].mxu0
        %v5445 = vadd.f32 0.0, %v5444
        %v5446 = vpop.f32.mrb[0].mxu0
        %5447 = vmatprep.mubr.f32.mxu0 %v5228
        %5448 = vmatmul.mubr.f32.gmra.mrb[0].mxu0 %v5108
        %v5449 = vpop.f32.mrb[0].mxu0
        %v5450 = vadd.f32 0.0, %v5449
        %v5451 = vpop.f32.mrb[0].mxu0
        %5452 = vmatprep.mubr.f32.mxu0 %v5231
        %5453 = vmatmul.mubr.f32.gmra.mrb[0].mxu0 %v5110
        %v5454 = vpop.f32.mrb[0].mxu0
        %v5455 = vadd.f32 0.0, %v5454
        %v5456 = vpop.f32.mrb[0].mxu0
        %5457 = vdwg.mxu0
        %v5458 = vadd.f32 %v4890, %v5300
        %v5459 = vadd.f32 %v4895, %v5305
        %v5460 = vadd.f32 %v4900, %v5310
        %v5461 = vadd.f32 %v4905, %v5315
        %v5462 = vadd.f32 %v4910, %v5320
        %v5463 = vadd.f32 %v4915, %v5325
        %v5464 = vadd.f32 %v4920, %v5330
        %v5465 = vadd.f32 %v4925, %v5335
        %v5466 = vadd.f32 %v4930, %v5340
        %v5467 = vadd.f32 %v4935, %v5345
        %v5468 = vadd.f32 %v4940, %v5350
        %v5469 = vadd.f32 %v4945, %v5355
        %v5470 = vadd.f32 %v4950, %v5360
        %v5471 = vadd.f32 %v4955, %v5365
        %v5472 = vadd.f32 %v4960, %v5370
        %v5473 = vadd.f32 %v4965, %v5375
        %v5474 = vadd.f32 %v4970, %v5380
        %v5475 = vadd.f32 %v4975, %v5385
        %v5476 = vadd.f32 %v4980, %v5390
        %v5477 = vadd.f32 %v4985, %v5395
        %v5478 = vadd.f32 %v4990, %v5400
        %v5479 = vadd.f32 %v4995, %v5405
        %v5480 = vadd.f32 %v5000, %v5410
        %v5481 = vadd.f32 %v5005, %v5415
        %v5482 = vadd.f32 %v5010, %v5420
        %v5483 = vadd.f32 %v5015, %v5425
        %v5484 = vadd.f32 %v5020, %v5430
        %v5485 = vadd.f32 %v5025, %v5435
        %v5486 = vadd.f32 %v5030, %v5440
        %v5487 = vadd.f32 %v5035, %v5445
        %v5488 = vadd.f32 %v5040, %v5450
        %v5489 = vadd.f32 %v5045, %v5455
        %v5490 = vld [vmem:[%s11] sm:$0xff]
        %v5491 = vld [vmem:[%s11 + $0x8] sm:$0xff]
        %v5492 = vld [vmem:[%s11 + $0x10] sm:$0xff]
        %v5493 = vld [vmem:[%s11 + $0x18] sm:$0xff]
        %v5495 = vsel %vm982, %v453, 0
        %v5498 = vsel %vm982, %v454, 0
        %v5501 = vsel %vm982, %v455, 0
        %v5504 = vsel %vm982, %v456, 0
        %v5507 = vsel %vm982, %v457, 0
        %v5510 = vsel %vm982, %v458, 0
        %v5513 = vsel %vm982, %v459, 0
        %v5516 = vsel %vm982, %v460, 0
        %v5519 = vsel %vm982, %v461, 0
        %v5522 = vsel %vm982, %v462, 0
        %v5525 = vsel %vm982, %v463, 0
        %v5528 = vsel %vm982, %v464, 0
        %v5531 = vsel %vm982, %v465, 0
        %v5534 = vsel %vm982, %v466, 0
        %v5537 = vsel %vm982, %v467, 0
        %v5540 = vsel %vm982, %v468, 0
        %v5543 = vsel %vm982, %v485, 0
        %v5546 = vsel %vm982, %v486, 0
        %v5549 = vsel %vm982, %v487, 0
        %v5552 = vsel %vm982, %v488, 0
        %v5555 = vsel %vm982, %v489, 0
        %v5558 = vsel %vm982, %v490, 0
        %v5561 = vsel %vm982, %v491, 0
        %v5564 = vsel %vm982, %v492, 0
        %v5567 = vsel %vm982, %v493, 0
        %v5570 = vsel %vm982, %v494, 0
        %v5573 = vsel %vm982, %v495, 0
        %v5576 = vsel %vm982, %v496, 0
        %v5579 = vsel %vm982, %v497, 0
        %v5582 = vsel %vm982, %v498, 0
        %v5585 = vsel %vm982, %v499, 0
        %v5588 = vsel %vm982, %v500, 0
        %5590 = vmatprep.subr.mxu0 0.0
        %5591 = vmatpush1.msra.mxu0 %v5490
        %5592 = vmatprep.subr.mxu0 0.0
        %5593 = vmatpush1.msra.mxu0 %v5491
        %5594 = vmatprep.subr.mxu0 0.0
        %5595 = vmatpush1.msra.mxu0 %v5492
        %5596 = vmatprep.subr.mxu0 0.0
        %5597 = vmatpush1.msra.mxu0 %v5493
        %5598 = vmatprep.subr.mxu0 0.0
        %5599 = vmatpush1.msra.mxu0 0.0
        %5600 = vmatprep.subr.mxu0 0.0
        %5601 = vmatpush1.msra.mxu0 0.0
        %5602 = vmatprep.subr.mxu0 0.0
        %5603 = vmatpush1.msra.mxu0 0.0
        %5604 = vmatprep.subr.mxu0 0.0
        %5605 = vmatpush1.msra.mxu0 0.0
        %5606 = vmatprep.subr.mxu0 0.0
        %5607 = vmatpush1.msra.mxu0 0.0
        %5608 = vmatprep.subr.mxu0 0.0
        %5609 = vmatpush1.msra.mxu0 0.0
        %5610 = vmatprep.subr.mxu0 0.0
        %5611 = vmatpush1.msra.mxu0 0.0
        %5612 = vmatprep.subr.mxu0 0.0
        %5613 = vmatpush1.msra.mxu0 0.0
        %5614 = vmatprep.subr.mxu0 0.0
        %5615 = vmatpush1.msra.mxu0 0.0
        %5616 = vmatprep.subr.mxu0 0.0
        %5617 = vmatpush1.msra.mxu0 0.0
        %5618 = vmatprep.subr.mxu0 0.0
        %5619 = vmatpush1.msra.mxu0 0.0
        %5620 = vmatprep.subr.mxu0 0.0
        %5621 = vmatpush1.msra.mxu0 0.0
        %5622 = vmatprep.subr.mxu0 0.0
        %5623 = vmatpush1.msra.mxu0 0.0
        %5624 = vmatprep.subr.mxu0 0.0
        %5625 = vmatpush1.msra.mxu0 0.0
        %5626 = vmatprep.subr.mxu0 0.0
        %5627 = vmatpush1.msra.mxu0 0.0
        %5628 = vmatprep.subr.mxu0 0.0
        %5629 = vmatpush1.msra.mxu0 0.0
        %5630 = vmatprep.subr.mxu0 0.0
        %5631 = vmatpush1.msra.mxu0 0.0
        %5632 = vmatprep.subr.mxu0 0.0
        %5633 = vmatpush1.msra.mxu0 0.0
        %5634 = vmatprep.subr.mxu0 0.0
        %5635 = vmatpush1.msra.mxu0 0.0
        %5636 = vmatprep.subr.mxu0 0.0
        %5637 = vmatpush1.msra.mxu0 0.0
        %5638 = vmatprep.subr.mxu0 0.0
        %5639 = vmatpush1.msra.mxu0 0.0
        %5640 = vmatprep.subr.mxu0 0.0
        %5641 = vmatpush1.msra.mxu0 0.0
        %5642 = vmatprep.subr.mxu0 0.0
        %5643 = vmatpush1.msra.mxu0 0.0
        %5644 = vmatprep.subr.mxu0 0.0
        %5645 = vmatpush1.msra.mxu0 0.0
        %5646 = vmatprep.subr.mxu0 0.0
        %5647 = vmatpush1.msra.mxu0 0.0
        %5648 = vmatprep.subr.mxu0 0.0
        %5649 = vmatpush1.msra.mxu0 0.0
        %5650 = vmatprep.subr.mxu0 0.0
        %5651 = vmatpush1.msra.mxu0 0.0
        %5652 = vmatprep.subr.mxu0 0.0
        %5653 = vmatpush1.msra.mxu0 0.0
        %5654 = vmatprep.mubr.f32.mxu0 0.0
        %5655 = vmatmul.mubr.f32.gmra.mrb[0].mxu0 %v5495
        %v5656 = vpop.f32.mrb[0].mxu0
        %v5657 = vadd.f32 0.0, %v5656
        %v5658 = vpop.f32.mrb[0].mxu0
        %5659 = vmatprep.mubr.f32.mxu0 0.0
        %5660 = vmatmul.mubr.f32.gmra.mrb[0].mxu0 %v5498
        %v5661 = vpop.f32.mrb[0].mxu0
        %v5662 = vadd.f32 0.0, %v5661
        %v5663 = vpop.f32.mrb[0].mxu0
        %5664 = vmatprep.mubr.f32.mxu0 0.0
        %5665 = vmatmul.mubr.f32.gmra.mrb[0].mxu0 %v5501
        %v5666 = vpop.f32.mrb[0].mxu0
        %v5667 = vadd.f32 0.0, %v5666
        %v5668 = vpop.f32.mrb[0].mxu0
        %5669 = vmatprep.mubr.f32.mxu0 0.0
        %5670 = vmatmul.mubr.f32.gmra.mrb[0].mxu0 %v5504
        %v5671 = vpop.f32.mrb[0].mxu0
        %v5672 = vadd.f32 0.0, %v5671
        %v5673 = vpop.f32.mrb[0].mxu0
        %5674 = vmatprep.mubr.f32.mxu0 0.0
        %5675 = vmatmul.mubr.f32.gmra.mrb[0].mxu0 %v5507
        %v5676 = vpop.f32.mrb[0].mxu0
        %v5677 = vadd.f32 0.0, %v5676
        %v5678 = vpop.f32.mrb[0].mxu0
        %5679 = vmatprep.mubr.f32.mxu0 0.0
        %5680 = vmatmul.mubr.f32.gmra.mrb[0].mxu0 %v5510
        %v5681 = vpop.f32.mrb[0].mxu0
        %v5682 = vadd.f32 0.0, %v5681
        %v5683 = vpop.f32.mrb[0].mxu0
        %5684 = vmatprep.mubr.f32.mxu0 0.0
        %5685 = vmatmul.mubr.f32.gmra.mrb[0].mxu0 %v5513
        %v5686 = vpop.f32.mrb[0].mxu0
        %v5687 = vadd.f32 0.0, %v5686
        %v5688 = vpop.f32.mrb[0].mxu0
        %5689 = vmatprep.mubr.f32.mxu0 0.0
        %5690 = vmatmul.mubr.f32.gmra.mrb[0].mxu0 %v5516
        %v5691 = vpop.f32.mrb[0].mxu0
        %v5692 = vadd.f32 0.0, %v5691
        %v5693 = vpop.f32.mrb[0].mxu0
        %5694 = vmatprep.mubr.f32.mxu0 0.0
        %5695 = vmatmul.mubr.f32.gmra.mrb[0].mxu0 %v5519
        %v5696 = vpop.f32.mrb[0].mxu0
        %v5697 = vadd.f32 0.0, %v5696
        %v5698 = vpop.f32.mrb[0].mxu0
        %5699 = vmatprep.mubr.f32.mxu0 0.0
        %5700 = vmatmul.mubr.f32.gmra.mrb[0].mxu0 %v5522
        %v5701 = vpop.f32.mrb[0].mxu0
        %v5702 = vadd.f32 0.0, %v5701
        %v5703 = vpop.f32.mrb[0].mxu0
        %5704 = vmatprep.mubr.f32.mxu0 0.0
        %5705 = vmatmul.mubr.f32.gmra.mrb[0].mxu0 %v5525
        %v5706 = vpop.f32.mrb[0].mxu0
        %v5707 = vadd.f32 0.0, %v5706
        %v5708 = vpop.f32.mrb[0].mxu0
        %5709 = vmatprep.mubr.f32.mxu0 0.0
        %5710 = vmatmul.mubr.f32.gmra.mrb[0].mxu0 %v5528
        %v5711 = vpop.f32.mrb[0].mxu0
        %v5712 = vadd.f32 0.0, %v5711
        %v5713 = vpop.f32.mrb[0].mxu0
        %5714 = vmatprep.mubr.f32.mxu0 0.0
        %5715 = vmatmul.mubr.f32.gmra.mrb[0].mxu0 %v5531
        %v5716 = vpop.f32.mrb[0].mxu0
        %v5717 = vadd.f32 0.0, %v5716
        %v5718 = vpop.f32.mrb[0].mxu0
        %5719 = vmatprep.mubr.f32.mxu0 0.0
        %5720 = vmatmul.mubr.f32.gmra.mrb[0].mxu0 %v5534
        %v5721 = vpop.f32.mrb[0].mxu0
        %v5722 = vadd.f32 0.0, %v5721
        %v5723 = vpop.f32.mrb[0].mxu0
        %5724 = vmatprep.mubr.f32.mxu0 0.0
        %5725 = vmatmul.mubr.f32.gmra.mrb[0].mxu0 %v5537
        %v5726 = vpop.f32.mrb[0].mxu0
        %v5727 = vadd.f32 0.0, %v5726
        %v5728 = vpop.f32.mrb[0].mxu0
        %5729 = vmatprep.mubr.f32.mxu0 0.0
        %5730 = vmatmul.mubr.f32.gmra.mrb[0].mxu0 %v5540
        %v5731 = vpop.f32.mrb[0].mxu0
        %v5732 = vadd.f32 0.0, %v5731
        %v5733 = vpop.f32.mrb[0].mxu0
        %5734 = vmatprep.mubr.f32.mxu0 0.0
        %5735 = vmatmul.mubr.f32.gmra.mrb[0].mxu0 %v5543
        %v5736 = vpop.f32.mrb[0].mxu0
        %v5737 = vadd.f32 0.0, %v5736
        %v5738 = vpop.f32.mrb[0].mxu0
        %5739 = vmatprep.mubr.f32.mxu0 0.0
        %5740 = vmatmul.mubr.f32.gmra.mrb[0].mxu0 %v5546
        %v5741 = vpop.f32.mrb[0].mxu0
        %v5742 = vadd.f32 0.0, %v5741
        %v5743 = vpop.f32.mrb[0].mxu0
        %5744 = vmatprep.mubr.f32.mxu0 0.0
        %5745 = vmatmul.mubr.f32.gmra.mrb[0].mxu0 %v5549
        %v5746 = vpop.f32.mrb[0].mxu0
        %v5747 = vadd.f32 0.0, %v5746
        %v5748 = vpop.f32.mrb[0].mxu0
        %5749 = vmatprep.mubr.f32.mxu0 0.0
        %5750 = vmatmul.mubr.f32.gmra.mrb[0].mxu0 %v5552
        %v5751 = vpop.f32.mrb[0].mxu0
        %v5752 = vadd.f32 0.0, %v5751
        %v5753 = vpop.f32.mrb[0].mxu0
        %5754 = vmatprep.mubr.f32.mxu0 0.0
        %5755 = vmatmul.mubr.f32.gmra.mrb[0].mxu0 %v5555
        %v5756 = vpop.f32.mrb[0].mxu0
        %v5757 = vadd.f32 0.0, %v5756
        %v5758 = vpop.f32.mrb[0].mxu0
        %5759 = vmatprep.mubr.f32.mxu0 0.0
        %5760 = vmatmul.mubr.f32.gmra.mrb[0].mxu0 %v5558
        %v5761 = vpop.f32.mrb[0].mxu0
        %v5762 = vadd.f32 0.0, %v5761
        %v5763 = vpop.f32.mrb[0].mxu0
        %5764 = vmatprep.mubr.f32.mxu0 0.0
        %5765 = vmatmul.mubr.f32.gmra.mrb[0].mxu0 %v5561
        %v5766 = vpop.f32.mrb[0].mxu0
        %v5767 = vadd.f32 0.0, %v5766
        %v5768 = vpop.f32.mrb[0].mxu0
        %5769 = vmatprep.mubr.f32.mxu0 0.0
        %5770 = vmatmul.mubr.f32.gmra.mrb[0].mxu0 %v5564
        %v5771 = vpop.f32.mrb[0].mxu0
        %v5772 = vadd.f32 0.0, %v5771
        %v5773 = vpop.f32.mrb[0].mxu0
        %5774 = vmatprep.mubr.f32.mxu0 0.0
        %5775 = vmatmul.mubr.f32.gmra.mrb[0].mxu0 %v5567
        %v5776 = vpop.f32.mrb[0].mxu0
        %v5777 = vadd.f32 0.0, %v5776
        %v5778 = vpop.f32.mrb[0].mxu0
        %5779 = vmatprep.mubr.f32.mxu0 0.0
        %5780 = vmatmul.mubr.f32.gmra.mrb[0].mxu0 %v5570
        %v5781 = vpop.f32.mrb[0].mxu0
        %v5782 = vadd.f32 0.0, %v5781
        %v5783 = vpop.f32.mrb[0].mxu0
        %5784 = vmatprep.mubr.f32.mxu0 0.0
        %5785 = vmatmul.mubr.f32.gmra.mrb[0].mxu0 %v5573
        %v5786 = vpop.f32.mrb[0].mxu0
        %v5787 = vadd.f32 0.0, %v5786
        %v5788 = vpop.f32.mrb[0].mxu0
        %5789 = vmatprep.mubr.f32.mxu0 0.0
        %5790 = vmatmul.mubr.f32.gmra.mrb[0].mxu0 %v5576
        %v5791 = vpop.f32.mrb[0].mxu0
        %v5792 = vadd.f32 0.0, %v5791
        %v5793 = vpop.f32.mrb[0].mxu0
        %5794 = vmatprep.mubr.f32.mxu0 0.0
        %5795 = vmatmul.mubr.f32.gmra.mrb[0].mxu0 %v5579
        %v5796 = vpop.f32.mrb[0].mxu0
        %v5797 = vadd.f32 0.0, %v5796
        %v5798 = vpop.f32.mrb[0].mxu0
        %5799 = vmatprep.mubr.f32.mxu0 0.0
        %5800 = vmatmul.mubr.f32.gmra.mrb[0].mxu0 %v5582
        %v5801 = vpop.f32.mrb[0].mxu0
        %v5802 = vadd.f32 0.0, %v5801
        %v5803 = vpop.f32.mrb[0].mxu0
        %5804 = vmatprep.mubr.f32.mxu0 0.0
        %5805 = vmatmul.mubr.f32.gmra.mrb[0].mxu0 %v5585
        %v5806 = vpop.f32.mrb[0].mxu0
        %v5807 = vadd.f32 0.0, %v5806
        %v5808 = vpop.f32.mrb[0].mxu0
        %5809 = vmatprep.mubr.f32.mxu0 0.0
        %5810 = vmatmul.mubr.f32.gmra.mrb[0].mxu0 %v5588
        %v5811 = vpop.f32.mrb[0].mxu0
        %v5812 = vadd.f32 0.0, %v5811
        %v5813 = vpop.f32.mrb[0].mxu0
        %5814 = vdwg.mxu0
        %v5815 = vadd.f32 %v5458, %v5657
        %v5816 = vadd.f32 %v5459, %v5662
        %v5817 = vadd.f32 %v5460, %v5667
        %v5818 = vadd.f32 %v5461, %v5672
        %v5819 = vadd.f32 %v5462, %v5677
        %v5820 = vadd.f32 %v5463, %v5682
        %v5821 = vadd.f32 %v5464, %v5687
        %v5822 = vadd.f32 %v5465, %v5692
        %v5823 = vadd.f32 %v5466, %v5697
        %v5824 = vadd.f32 %v5467, %v5702
        %v5825 = vadd.f32 %v5468, %v5707
        %v5826 = vadd.f32 %v5469, %v5712
        %v5827 = vadd.f32 %v5470, %v5717
        %v5828 = vadd.f32 %v5471, %v5722
        %v5829 = vadd.f32 %v5472, %v5727
        %v5830 = vadd.f32 %v5473, %v5732
        %v5831 = vadd.f32 %v5474, %v5737
        %v5832 = vadd.f32 %v5475, %v5742
        %v5833 = vadd.f32 %v5476, %v5747
        %v5834 = vadd.f32 %v5477, %v5752
        %v5835 = vadd.f32 %v5478, %v5757
        %v5836 = vadd.f32 %v5479, %v5762
        %v5837 = vadd.f32 %v5480, %v5767
        %v5838 = vadd.f32 %v5481, %v5772
        %v5839 = vadd.f32 %v5482, %v5777
        %v5840 = vadd.f32 %v5483, %v5782
        %v5841 = vadd.f32 %v5484, %v5787
        %v5842 = vadd.f32 %v5485, %v5792
        %v5843 = vadd.f32 %v5486, %v5797
        %v5844 = vadd.f32 %v5487, %v5802
        %v5845 = vadd.f32 %v5488, %v5807
        %v5846 = vadd.f32 %v5489, %v5812
        %v5847 = vld [vmem:[%s10] sm:$0x1]
        %v5849 = vlaneseq
        %v5850 = vshrl.u32 %v5849, 7
        %v5851 = vsub.s32 0, %v5850
        %v5852 = vrot.slane %v5847, %v5851
        %v5854 = vadd.f32 %v5815, %v5852
        %v5855 = vadd.f32 %v5816, %v5852
        %v5856 = vadd.f32 %v5817, %v5852
        %v5857 = vadd.f32 %v5818, %v5852
        %v5858 = vadd.f32 %v5819, %v5852
        %v5859 = vadd.f32 %v5820, %v5852
        %v5860 = vadd.f32 %v5821, %v5852
        %v5861 = vadd.f32 %v5822, %v5852
        %v5862 = vadd.f32 %v5823, %v5852
        %v5863 = vadd.f32 %v5824, %v5852
        %v5864 = vadd.f32 %v5825, %v5852
        %v5865 = vadd.f32 %v5826, %v5852
        %v5866 = vadd.f32 %v5827, %v5852
        %v5867 = vadd.f32 %v5828, %v5852
        %v5868 = vadd.f32 %v5829, %v5852
        %v5869 = vadd.f32 %v5830, %v5852
        %v5870 = vadd.f32 %v5831, %v5852
        %v5871 = vadd.f32 %v5832, %v5852
        %v5872 = vadd.f32 %v5833, %v5852
        %v5873 = vadd.f32 %v5834, %v5852
        %v5874 = vadd.f32 %v5835, %v5852
        %v5875 = vadd.f32 %v5836, %v5852
        %v5876 = vadd.f32 %v5837, %v5852
        %v5877 = vadd.f32 %v5838, %v5852
        %v5878 = vadd.f32 %v5839, %v5852
        %v5879 = vadd.f32 %v5840, %v5852
        %v5880 = vadd.f32 %v5841, %v5852
        %v5881 = vadd.f32 %v5842, %v5852
        %v5882 = vadd.f32 %v5843, %v5852
        %v5883 = vadd.f32 %v5844, %v5852
        %v5884 = vadd.f32 %v5845, %v5852
        %v5885 = vadd.f32 %v5846, %v5852
        %5886 = vxpose.xlu0.b32.start [1/16] %v5854, 128
        %5887 = vxpose.xlu0.b32.cont [2/16] %v5855, 128
        %5888 = vxpose.xlu0.b32.cont [3/16] %v5856, 128
        %5889 = vxpose.xlu0.b32.cont [4/16] %v5857, 128
        %5890 = vxpose.xlu0.b32.cont [5/16] %v5858, 128
        %5891 = vxpose.xlu0.b32.cont [6/16] %v5859, 128
        %5892 = vxpose.xlu0.b32.cont [7/16] %v5860, 128
        %5893 = vxpose.xlu0.b32.cont [8/16] %v5861, 128
        %5894 = vxpose.xlu0.b32.cont [9/16] %v5862, 128
        %5895 = vxpose.xlu0.b32.cont [10/16] %v5863, 128
        %5896 = vxpose.xlu0.b32.cont [11/16] %v5864, 128
        %5897 = vxpose.xlu0.b32.cont [12/16] %v5865, 128
        %5898 = vxpose.xlu0.b32.cont [13/16] %v5866, 128
        %5899 = vxpose.xlu0.b32.cont [14/16] %v5867, 128
        %5900 = vxpose.xlu0.b32.cont [15/16] %v5868, 128
        %5901 = vxpose.xlu0.b32.end [16/16] %v5869, 128
        %v5902 = vpop.trf.xlu0
        %v5903 = vpop.trf.xlu0
        %v5904 = vpop.trf.xlu0
        %v5905 = vpop.trf.xlu0
        %v5906 = vpop.trf.xlu0
        %v5907 = vpop.trf.xlu0
        %v5908 = vpop.trf.xlu0
        %v5909 = vpop.trf.xlu0
        %v5910 = vpop.trf.xlu0
        %v5911 = vpop.trf.xlu0
        %v5912 = vpop.trf.xlu0
        %v5913 = vpop.trf.xlu0
        %v5914 = vpop.trf.xlu0
        %v5915 = vpop.trf.xlu0
        %v5916 = vpop.trf.xlu0
        %v5917 = vpop.trf.xlu0
        %5918 = vxpose.xlu0.b32.start [1/16] %v5870, 128
        %5919 = vxpose.xlu0.b32.cont [2/16] %v5871, 128
        %5920 = vxpose.xlu0.b32.cont [3/16] %v5872, 128
        %5921 = vxpose.xlu0.b32.cont [4/16] %v5873, 128
        %5922 = vxpose.xlu0.b32.cont [5/16] %v5874, 128
        %5923 = vxpose.xlu0.b32.cont [6/16] %v5875, 128
        %5924 = vxpose.xlu0.b32.cont [7/16] %v5876, 128
        %5925 = vxpose.xlu0.b32.cont [8/16] %v5877, 128
        %5926 = vxpose.xlu0.b32.cont [9/16] %v5878, 128
        %5927 = vxpose.xlu0.b32.cont [10/16] %v5879, 128
        %5928 = vxpose.xlu0.b32.cont [11/16] %v5880, 128
        %5929 = vxpose.xlu0.b32.cont [12/16] %v5881, 128
        %5930 = vxpose.xlu0.b32.cont [13/16] %v5882, 128
        %5931 = vxpose.xlu0.b32.cont [14/16] %v5883, 128
        %5932 = vxpose.xlu0.b32.cont [15/16] %v5884, 128
        %5933 = vxpose.xlu0.b32.end [16/16] %v5885, 128
        %v5934 = vpop.trf.xlu0
        %v5935 = vpop.trf.xlu0
        %v5936 = vpop.trf.xlu0
        %v5937 = vpop.trf.xlu0
        %v5938 = vpop.trf.xlu0
        %v5939 = vpop.trf.xlu0
        %v5940 = vpop.trf.xlu0
        %v5941 = vpop.trf.xlu0
        %v5942 = vpop.trf.xlu0
        %v5943 = vpop.trf.xlu0
        %v5944 = vpop.trf.xlu0
        %v5945 = vpop.trf.xlu0
        %v5946 = vpop.trf.xlu0
        %v5947 = vpop.trf.xlu0
        %v5948 = vpop.trf.xlu0
        %v5949 = vpop.trf.xlu0
        %5950 = vst [vmem:[%s428] sm:$0xff] %v5902
        %5951 = vst [vmem:[%s428 + $0x8] sm:$0xff] %v5934
        %5952 = vst [vmem:[%s428 + $0x10] sm:$0xff] %v5903
        %5953 = vst [vmem:[%s428 + $0x18] sm:$0xff] %v5935
        %5954 = vst [vmem:[%s428 + $0x20] sm:$0xff] %v5904
        %5955 = vst [vmem:[%s428 + $0x28] sm:$0xff] %v5936
        %5956 = vst [vmem:[%s428 + $0x30] sm:$0xff] %v5905
        %5957 = vst [vmem:[%s428 + $0x38] sm:$0xff] %v5937
        %5958 = vst [vmem:[%s428 + $0x40] sm:$0xff] %v5906
        %5959 = vst [vmem:[%s428 + $0x48] sm:$0xff] %v5938
        %5960 = vst [vmem:[%s428 + $0x50] sm:$0xff] %v5907
        %5961 = vst [vmem:[%s428 + $0x58] sm:$0xff] %v5939
        %5962 = vst [vmem:[%s428 + $0x60] sm:$0xff] %v5908
        %5963 = vst [vmem:[%s428 + $0x68] sm:$0xff] %v5940
        %5964 = vst [vmem:[%s428 + $0x70] sm:$0xff] %v5909
        %5965 = vst [vmem:[%s428 + $0x78] sm:$0xff] %v5941
        %p5966 = scmp.lt.s32.totalorder %s24, 1
        %s5967 = scalar_select %p5966, %s24, 1
        %s5968 = smul.addr %s5967, 16
        %s5969 = smul.addr %s5968, 8
        %s5970 = scalar_lea.vmem %s12, %s5969
        // Predicated region
        $region73: #{residual_block.1} parent=67 // pred_check
          %p5971 = pneg %p299
        $region74: #{residual_block.1} parent=67 // pred_check_branch
          %5973 = sbr.rel (%p5971) target = $region76
        $region75: #{residual_block.1} parent=67 // pred_region
          _
        $region76: #{residual_block.1} parent=67 // pred_fallthru
          _
      $region68: #{residual_block.1} parent=5 // pred_fallthru
        _
      %p5974 = scmp.le.s32.totalorder 2, %s19
      // Predicated region
      $region77: #{residual_block.1} parent=5 // pred_check
        %p5975 = pneg %p5974
      $region78: #{residual_block.1} parent=5 // pred_check_branch
        %5977 = sbr.rel (%p5975) target = $region80
      $region79: #{residual_block.1} parent=5 // pred_region
        %s5978 = ssub.s32 %s19, 2
        // Predicated region
        $region81: #{residual_block.1} parent=79 // pred_check
          %p5979 = pneg %p305
        $region82: #{residual_block.1} parent=79 // pred_check_branch
          %5981 = sbr.rel (%p5979) target = $region84
        $region83: #{residual_block.1} parent=79 // pred_region
          %p5982 = scmp.lt.s32.totalorder %s25, 1
          %s5983 = scalar_select %p5982, %s25, 1
          %s5984 = smul.addr %s5983, 16
          %s5985 = smul.addr %s5984, 8
          %s5986 = scalar_lea.vmem %s12, %s5985
        $region84: #{residual_block.1} parent=79 // pred_fallthru
          _
      $region80: #{residual_block.1} parent=5 // pred_fallthru
        _
    $region6: #{residual_block.1} parent=1 // loop_footer
      %s23 = sadd.s32 1, %s19
    $region7: #{residual_block.1} parent=1 // loop_footer_branch
      %18 = sbr.rel target = $region3
    $region8: #{residual_block.1} parent=1 // loop_exit
      _
    %5987 = vsyncpa [#allocation5], 1
    %s5988 = scalar_lea.sflag [#allocation5], 1
    %5989 = vsyncpa %s5988, 1

</llo_original>
